<compile_context>
chip_gen: v6e
topology: v6e:2x2x1
jax: 0.10.0
libtpu: 0.0.40
codegen_flags: <defaults>
</compile_context>

<pallas_src>
import copy
import math

import jax
import jax.numpy as jnp
from jax.experimental import pallas as pl
from jax.experimental.pallas import tpu as pltpu


CPAD = 128  # lane-dense channel padding (v5e MXU-native; see TODO above for 256 on v6e/v7x)


# ----------------------------------------------------------------------------
# VMEM limit + Buffered(1) support probe
# ----------------------------------------------------------------------------
_VMEM_LIMIT = None


def _vmem_limit_bytes():
    global _VMEM_LIMIT
    if _VMEM_LIMIT is None:
        try:
            cap = pltpu.get_tpu_info().vmem_capacity_bytes
        except Exception:
            cap = 64 * 1024 * 1024
        # leave ~1/8 headroom, never above 100 MiB (v5e/v6e), ~56 MiB on v7x
        _VMEM_LIMIT = int(min(100 * 1024 * 1024, cap - cap // 8))
    return _VMEM_LIMIT


_BUFFERED_SUPPORT = None


def _buffered_supported():
    """Probe whether pipeline_mode=pl.Buffered(1) compiles+runs on this JAX/TPU."""
    global _BUFFERED_SUPPORT
    if _BUFFERED_SUPPORT is None:
        try:
            def _k(x_ref, o_ref):
                o_ref[...] = x_ref[...] + 1.0

            spec = pl.BlockSpec((8, 128), lambda i: (0, 0),
                                pipeline_mode=pl.Buffered(1))
            f = pl.pallas_call(
                _k,
                out_shape=jax.ShapeDtypeStruct((8, 128), jnp.float32),
                grid=(2,),
                in_specs=[spec],
                out_specs=pl.BlockSpec((8, 128), lambda i: (0, 0)),
            )
            jax.block_until_ready(f(jnp.zeros((8, 128), jnp.float32)))
            _BUFFERED_SUPPORT = True
        except Exception:
            _BUFFERED_SUPPORT = False
    return _BUFFERED_SUPPORT


def _resident_spec(shape, index_map):
    """BlockSpec for a block whose index map is constant across the grid:
    single-buffered (no pointless double-buffer of never-changing data)."""
    if _buffered_supported():
        return pl.BlockSpec(shape, index_map, pipeline_mode=pl.Buffered(1))
    return pl.BlockSpec(shape, index_map)


# ----------------------------------------------------------------------------
# Pallas kernel 1: fused im2col-free 3x3 "same" conv + bias + optional SiLU
#   x0/x1/x2 : (N, (Hpad+2)*Wpad, C) bf16 — width-pre-shifted row-flattened views
#   w9       : (9, C, Cout)          bf16
#   b        : (1, Cout)             f32
#   out      : (N, Hpad*Wpad, Cout)  bf16, gridded over H tiles
# Every tap is one 16-aligned leading-dim pl.ds slice + one bf16 MXU matmul.
# ----------------------------------------------------------------------------
def _conv3x3_kernel(apply_silu, TH, Wp, C, Cout, N):
    rows = TH * Wp

    def kernel(x0_ref, x1_ref, x2_ref, w_ref, b_ref, o_ref):
        h0 = pl.program_id(0) * TH
        xrefs = (x0_ref, x1_ref, x2_ref)
        for n in range(N):                                   # static unroll over batch
            acc = jnp.zeros((rows, Cout), jnp.float32)
            for kh in range(3):
                start = pl.multiple_of((h0 + kh) * Wp, 16)   # Wp % 16 == 0
                for kw in range(3):
                    patch = xrefs[kw][n, pl.ds(start, rows), :]   # (rows, C) bf16
                    acc = acc + jnp.dot(patch, w_ref[3 * kh + kw],
                                        preferred_element_type=jnp.float32)
            acc = acc + b_ref[...]                  # f32 bias epilogue
            if apply_silu:
                acc = acc * jax.nn.sigmoid(acc)     # f32 epilogue (v5e-safe)
            o_ref[n, :, :] = acc.astype(o_ref.dtype)

    return kernel


def conv3x3(x, w9, b, apply_silu=False):
    """x: (N, H, W, C) bf16, w9: (9, C, Cout) bf16, b: (1, Cout) f32."""
    N, H, W, C = x.shape
    Cout = w9.shape[-1]

    # W padded to a multiple of 16 (bf16 sublane packing) so every flattened
    # row-slice start is aligned; H padded up to a multiple of TH instead of
    # shrinking TH (avoids the TH=1 per-step-overhead pathology).
    Wpad = max(16, -(-W // 16) * 16)
    TH = max(1, 256 // Wpad)            # ~256 rows/dot -> acc stays in vregs,
    TH = min(TH, H)                     # N*256-512 flattened rows per grid step
    if H >= 2:
        TH = min(TH, -(-H // 2))        # keep grid >= 2 (v7x megacore split)
    Hpad = -(-H // TH) * TH
    grid_h = Hpad // TH
    Hp = Hpad + 2

    # spatial zero pad (conv halo + alignment pad); fuses with producer under jit
    xp = jnp.pad(x, ((0, 0), (1, 1 + Hpad - H), (1, 1 + Wpad - W), (0, 0)))
    # three width-pre-shifted, row-flattened views (kw = 0, 1, 2)
    xk = [xp[:, :, kw:kw + Wpad, :].reshape(N, Hp * Wpad, C) for kw in range(3)]

    out = pl.pallas_call(
        _conv3x3_kernel(apply_silu, TH, Wpad, C, Cout, N),
        out_shape=jax.ShapeDtypeStruct((N, Hpad * Wpad, Cout), x.dtype),
        grid=(grid_h,),
        in_specs=[
            _resident_spec((N, Hp * Wpad, C), lambda i: (0, 0, 0)),
            _resident_spec((N, Hp * Wpad, C), lambda i: (0, 0, 0)),
            _resident_spec((N, Hp * Wpad, C), lambda i: (0, 0, 0)),
            _resident_spec((9, C, Cout), lambda i: (0, 0, 0)),
            _resident_spec((1, Cout), lambda i: (0, 0)),
        ],
        out_specs=pl.BlockSpec((N, TH * Wpad, Cout), lambda i: (0, i, 0)),
        compiler_params=pltpu.CompilerParams(
            dimension_semantics=("parallel",),
            vmem_limit_bytes=_vmem_limit_bytes()),
    )(*xk, w9, b)

    return out.reshape(N, Hpad, Wpad, Cout)[:, :H, :W, :]


# ----------------------------------------------------------------------------
# Pallas kernel 2: fused row-tiled matmul + bias (+ SiLU) for 1x1 convs
#   a: (R, K) bf16 (batch*spatial folded into rows), w: (K, C) bf16, b: (1, C) f32
# ----------------------------------------------------------------------------
def _matmul_kernel(apply_silu):
    def kernel(a_ref, w_ref, b_ref, o_ref):
        acc = jnp.dot(a_ref[...], w_ref[...], preferred_element_type=jnp.float32)
        acc = acc + b_ref[...]
        if apply_silu:
            acc = acc * jax.nn.sigmoid(acc)
        o_ref[...] = acc.astype(o_ref.dtype)

    return kernel


def matmul_bias(a, w, b, apply_silu=False):
    R, K = a.shape
    C = w.shape[-1]
    TR = min(R, 512)
    if R >= 32:
        TR = min(TR, -(-R // 2))        # grid >= 2 so v7x megacore gets both TCs
    TR = max(16, (TR // 16) * 16)       # sublane-aligned bf16 row tiles
    Rpad = -(-R // TR) * TR
    ap = jnp.pad(a, ((0, Rpad - R), (0, 0))) if Rpad != R else a

    out = pl.pallas_call(
        _matmul_kernel(apply_silu),
        out_shape=jax.ShapeDtypeStruct((Rpad, C), a.dtype),
        grid=(Rpad // TR,),
        in_specs=[
            pl.BlockSpec((TR, K), lambda i: (i, 0)),
            _resident_spec((K, C), lambda i: (0, 0)),
            _resident_spec((1, C), lambda i: (0, 0)),
        ],
        out_specs=pl.BlockSpec((TR, C), lambda i: (i, 0)),
        compiler_params=pltpu.CompilerParams(
            dimension_semantics=("parallel",),
            vmem_limit_bytes=_vmem_limit_bytes()),
    )(ap, w, b)
    return out[:R] if Rpad != R else out


# ----------------------------------------------------------------------------
# Weight init: logical (small) channel widths, zero-padded to CPAD lanes.
# ----------------------------------------------------------------------------
def _pad_conv3(w, b):
    ci, co = w.shape[2], w.shape[3]
    wp = jnp.zeros((3, 3, CPAD, CPAD), jnp.float32).at[:, :, :ci, :co].set(w)
    bp = jnp.zeros((CPAD,), jnp.float32).at[:co].set(b)
    return wp.reshape(9, CPAD, CPAD).astype(jnp.bfloat16), bp.reshape(1, CPAD)


def _pad_conv1(w, b):
    ci, co = w.shape
    wp = jnp.zeros((CPAD, CPAD), jnp.float32).at[:ci, :co].set(w)
    bp = jnp.zeros((CPAD,), jnp.float32).at[:co].set(b)
    return wp.astype(jnp.bfloat16), bp.reshape(1, CPAD)


def _init_conv3(key, cin, cout):
    return jax.random.normal(key, (3, 3, cin, cout), jnp.float32) / math.sqrt(9 * cin)


def _init_conv1(key, cin, cout):
    return jax.random.normal(key, (cin, cout), jnp.float32) / math.sqrt(cin)


# ----------------------------------------------------------------------------
# Minimal nn.Module-like block machinery (forward hooks, graph mutation)
# ----------------------------------------------------------------------------
class HookHandle:
    def __init__(self, hooks, fn):
        self._hooks, self._fn = hooks, fn

    def remove(self):
        if self._fn in self._hooks:
            self._hooks.remove(self._fn)


class Block:
    def __init__(self):
        self._forward_hooks = []
        self.consumes_skip = True

    def register_forward_hook(self, fn):
        self._forward_hooks.append(fn)
        return HookHandle(self._forward_hooks, fn)

    def forward(self, *args, **kwargs):
        raise NotImplementedError

    def __call__(self, *args, **kwargs):
        out = self.forward(*args, **kwargs)
        for h in list(self._forward_hooks):
            h(self, args, out)
        return out


class DownBlock(Block):
    def __init__(self, key, c, c_out=None, downsample=False):
        super().__init__()
        k1, k2 = jax.random.split(key)
        self.w_res, self.b_res = _pad_conv3(_init_conv3(k1, c, c), jnp.zeros((c,)))
        self.downsample = downsample
        if downsample:
            self.w_down, self.b_down = _pad_conv1(_init_conv1(k2, c, c_out),
                                                  jnp.zeros((c_out,)))

    def forward(self, h):
        r = conv3x3(h, self.w_res, self.b_res, apply_silu=True)
        skip = r
        if self.downsample:
            # TODO(synk): fold the stride-2 select + 1x1 matmul into the conv3x3
            # epilogue to skip one activation round-trip (largest win on v5e).
            N, H, W, C = r.shape
            d = r[:, ::2, ::2, :]                       # stride-2; fused by XLA under jit
            d = d.reshape(N * (H // 2) * (W // 2), C)   # batch folded into rows
            h = matmul_bias(d, self.w_down, self.b_down)
            h = h.reshape(N, H // 2, W // 2, CPAD)
        else:
            h = r
        return h, skip


class MidBlock(Block):
    def __init__(self, key, c):
        super().__init__()
        self.w, self.b = _pad_conv3(_init_conv3(key, c, c), jnp.zeros((c,)))

    def forward(self, h):
        return conv3x3(h, self.w, self.b, apply_silu=True)


class UpBlock(Block):
    def __init__(self, key, c, c_up_out=None, upsample=False):
        super().__init__()
        k1, k2 = jax.random.split(key)
        self.w_res, self.b_res = _pad_conv3(_init_conv3(k1, c, c), jnp.zeros((c,)))
        self.upsample = upsample
        if upsample:
            self.w_up, self.b_up = _pad_conv3(_init_conv3(k2, c, c_up_out),
                                              jnp.zeros((c_up_out,)))

    def forward(self, h, skip):
        if skip is not None:
            h = h + skip   # fuses with the spatial pad producer of the next conv under jit
        h = conv3x3(h, self.w_res, self.b_res, apply_silu=True)
        if self.upsample:
            # TODO(synk): fuse nearest-2x upsample into the conv (h->h//2 indexing)
            # to avoid materializing the 4x activation in HBM (v5e bandwidth win).
            h = jnp.repeat(jnp.repeat(h, 2, axis=1), 2, axis=2)
            h = conv3x3(h, self.w_up, self.b_up, apply_silu=False)
        return h


# ----------------------------------------------------------------------------
# Synthetic stand-in for UNet2DConditionModel (NCHW interface, NHWC/128 inside)
# ----------------------------------------------------------------------------
class UNet2DConditionModel:
    def __init__(self, key, c_in=4, c=8, c_out=4):
        ks = jax.random.split(key, 8)
        self.w_in, self.b_in = _pad_conv3(_init_conv3(ks[0], c_in, c), jnp.zeros((c,)))
        self.down_blocks = [
            DownBlock(ks[1], c, 2 * c, downsample=True),
            DownBlock(ks[2], 2 * c, downsample=False),
        ]
        self.mid_block = MidBlock(ks[3], 2 * c)
        self.up_blocks = [
            UpBlock(ks[4], 2 * c, c, upsample=True),    # up_blocks[-2] -> cached
            UpBlock(ks[5], c, upsample=False),          # up_blocks[-1]
        ]
        self.w_out, self.b_out = _pad_conv3(_init_conv3(ks[6], c, c_out),
                                            jnp.zeros((c_out,)))
        self.config = {"in_channels": c_in, "out_channels": c_out,
                       "block_out_channels": (c, 2 * c)}
        self.device = jax.devices()[0]

    def forward(self, sample, timestep=None, encoder_hidden_states=None, **kwargs):
        # TODO(synk): timestep embedding and cross-attention conditioning omitted.
        h = jnp.transpose(sample, (0, 2, 3, 1))                      # NCHW -> NHWC
        cin = h.shape[-1]
        h = jnp.pad(h, ((0, 0), (0, 0), (0, 0), (0, CPAD - cin)))    # lane-dense channels
        h = h.astype(jnp.bfloat16)
        h = conv3x3(h, self.w_in, self.b_in, apply_silu=True)
        skips = []
        for db in self.down_blocks:
            h, skip = db(h)
            skips.append(skip)
        if self.mid_block is not None:
            h = self.mid_block(h)
        for ub in self.up_blocks:
            skip = skips.pop() if getattr(ub, "consumes_skip", True) else None
            h = ub(h, skip)
        out = conv3x3(h, self.w_out, self.b_out, apply_silu=False)
        out = out[..., :self.config["out_channels"]].astype(sample.dtype)
        return {"sample": jnp.transpose(out, (0, 3, 1, 2))}          # NHWC -> NCHW


# ----------------------------------------------------------------------------
# ClockworkWrapper — faithful port of the PyTorch wrapper semantics.
# Each graph variant (full UNet / adaptor graph) is jitted once so a diffusion
# step is a single compiled program (no per-conv eager dispatch, no re-tracing
# on clockwork graph switches).
# ----------------------------------------------------------------------------
class ClockworkWrapper:
    def __init__(self, unet, clock: int = 4):
        assert isinstance(unet, UNet2DConditionModel), (
            f"ClockworkWrapper expects a UNet of type UNet2DConditionModel. "
            f"You passed {unet.__class__}.")
        self.unet = unet
        self.down_blocks = self.unet.down_blocks
        self.mid_block = self.unet.mid_block
        self.up_blocks = self.unet.up_blocks
        self.adaptor_block = copy.copy(self.up_blocks[-2])
        self.adaptor_block._forward_hooks = []
        self.adaptor_block.forward = self._forward_adaptor
        # analog of `adaptor_block.resnets = adaptor_block.resnets[0:1]`:
        # the adaptor consumes no residual from the (absent) deeper down blocks.
        self.adaptor_block.consumes_skip = False
        self.clock = clock
        self._time = 0
        self.cached_features_r_out = None
        self.is_adaptor_graph = False
        self.is_full_unet_graph = True
        self._switch_graph_to_full_unet()
        self.config = self.unet.config
        self.device = self.unet.device
        self.add_embedding = getattr(self.unet, "add_embedding", None)
        # one jitted executable per clockwork graph variant (traced lazily)
        self._jit_full = jax.jit(self._run_full_unet)
        self._jit_adaptor = jax.jit(self._run_adaptor_graph)

    # --- jitted graph variants -------------------------------------------
    def _run_full_unet(self, *args, **kwargs):
        outputs = self.unet.forward(*args, **kwargs)
        # hook on up_blocks[-2] ran inside this trace -> thread the cached
        # feature out as a jit output so the eager wrapper sees concrete values.
        return outputs, self.cached_features_r_out

    def _run_adaptor_graph(self, cached_r_out, *args, **kwargs):
        prev = self.cached_features_r_out
        self.cached_features_r_out = cached_r_out   # identity adaptor reads this
        try:
            outputs = self.unet.forward(*args, **kwargs)
        finally:
            self.cached_features_r_out = prev       # never leave a tracer behind
        return outputs

    # --- wrapper API ------------------------------------------------------
    def forward(self, *args, **kwargs) -> dict:
        if self._use_full_unet and self.is_adaptor_graph:
            self._switch_graph_to_full_unet()
        elif self._use_adaptor and self.is_full_unet_graph:
            self._switch_graph_to_adaptor()
        if self._use_full_unet:
            outputs, cached = self._jit_full(*args, **kwargs)
            self.cached_features_r_out = cached
        else:
            outputs = self._jit_adaptor(self.cached_features_r_out, *args, **kwargs)
        self._tick()
        return outputs

    __call__ = forward

    def reset(self) -> None:
        self._time = 0

    @property
    def _use_full_unet(self):
        return self._time % self.clock == 0

    @property
    def _use_adaptor(self):
        return not self._use_full_unet

    def _tick(self) -> None:
        self._time += 1

    def _forward_adaptor(self, *args, **kwargs):
        return self.cached_features_r_out

    def _switch_graph_to_adaptor(self) -> None:
        self.hook_cache_features_zK.remove()
        self.unet.down_blocks = self.down_blocks[0:1]
        self.unet.mid_block = None
        self.unet.up_blocks = self.up_blocks[-2:]
        self.unet.up_blocks[0] = self.adaptor_block
        self.is_adaptor_graph = True
        self.is_full_unet_graph = False

    def _switch_graph_to_full_unet(self) -> None:
        self.unet.down_blocks = self.down_blocks
        self.unet.mid_block = self.mid_block
        self.unet.up_blocks = self.up_blocks

        def handler_cache_features_r_out(module, inp, out):
            assert self._use_full_unet, (
                "You are trying to cache the UNet intermediate features while "
                "not using the full UNet graph.")
            self.cached_features_r_out = jax.lax.stop_gradient(out)

        self.hook_cache_features_zK = self.unet.up_blocks[-2].register_forward_hook(
            handler_cache_features_r_out)
        self.is_adaptor_graph = False
        self.is_full_unet_graph = True


# ----------------------------------------------------------------------------
def _conv3x3_reference(x, w9, b):
    """Pure-jnp f32 reference of the fused conv kernel (same bf16 inputs)."""
    N, H, W, C = x.shape
    xp = jnp.pad(x.astype(jnp.float32), ((0, 0), (1, 1), (1, 1), (0, 0)))
    acc = jnp.zeros((N, H, W, w9.shape[-1]), jnp.float32)
    for kh in range(3):
        for kw in range(3):
            acc = acc + jnp.einsum("nhwc,cd->nhwd",
                                   xp[:, kh:kh + H, kw:kw + W, :],
                                   w9[3 * kh + kw].astype(jnp.float32),
                                   precision="highest")
    return acc + b.reshape(1, 1, 1, -1)


if __name__ == "__main__":
    key = jax.random.PRNGKey(0)
    k_params, k_x = jax.random.split(key)

    # quick numerical check of the fused im2col-free conv kernel (also runs the
    # Buffered(1) support probe eagerly, before any jit tracing happens)
    xt = jax.random.normal(jax.random.PRNGKey(1), (2, 16, 16, CPAD),
                           jnp.float32).astype(jnp.bfloat16)
    wt = (jax.random.normal(jax.random.PRNGKey(2), (9, CPAD, CPAD),
                            jnp.float32) * 0.05).astype(jnp.bfloat16)
    bt = jax.random.normal(jax.random.PRNGKey(3), (1, CPAD), jnp.float32) * 0.1
    got = conv3x3(xt, wt, bt, apply_silu=False).astype(jnp.float32)
    ref = _conv3x3_reference(xt, wt, bt)
    assert jnp.allclose(got, ref, atol=2e-2, rtol=2e-2), \
        float(jnp.max(jnp.abs(got - ref)))

    # non-multiple-of-16 width path (W=8, like the mid block) also checked
    got8 = conv3x3(xt[:, :8, :8, :], wt, bt, apply_silu=False).astype(jnp.float32)
    ref8 = _conv3x3_reference(xt[:, :8, :8, :], wt, bt)
    assert jnp.allclose(got8, ref8, atol=2e-2, rtol=2e-2), \
        float(jnp.max(jnp.abs(got8 - ref8)))

    unet = UNet2DConditionModel(k_params, c_in=4, c=8, c_out=4)
    wrapper = ClockworkWrapper(unet, clock=4)

    # NCHW input, like PyTorch diffusion latents.
    x = jax.random.normal(k_x, (2, 4, 16, 16), jnp.float32)

    outs = []
    for step in range(6):  # steps 0,4 -> full UNet; steps 1,2,3,5 -> adaptor graph
        out = wrapper(x * (1.0 - 0.05 * step))["sample"]
        outs.append(out)

    jax.block_until_ready(outs)

    for o in outs:
        assert o.shape == (2, 4, 16, 16), o.shape
        assert bool(jnp.all(jnp.isfinite(o)))
    assert wrapper._time == 6
    assert wrapper.cached_features_r_out is not None

    print("KERNEL_OK")
</pallas_src>

<mosaic_0001>
module attributes {stable_mosaic.version = 11 : i64} {
  func.func @_k(%arg0: i32, %arg1: memref<8x128xf32, #tpu.memory_space<vmem>>, %arg2: memref<8x128xf32, #tpu.memory_space<vmem>>) attributes {dimension_semantics = [#tpu.dimension_semantics<arbitrary>], iteration_bounds = array<i64: 2>, scalar_prefetch = 0 : i64, scratch_operands = 0 : i64, tpu.core_type = #tpu.core_type<tc>, window_params = [{pipeline_mode = #tpu.pipeline_mode<synchronous>, transform_indices = @transform_0, window_bounds = array<i64: 8, 128>}, {pipeline_mode = #tpu.pipeline_mode<synchronous>, transform_indices = @transform_1, window_bounds = array<i64: 8, 128>}]} {
    %c0 = arith.constant 0 : index
    %c0_0 = arith.constant 0 : index
    %0 = vector.load %arg1[%c0, %c0_0] : memref<8x128xf32, #tpu.memory_space<vmem>>, vector<8x128xf32>
    %cst = arith.constant 1.000000e+00 : f32
    %1 = vector.broadcast %cst : f32 to vector<8x128xf32>
    %2 = arith.addf %0, %1 : vector<8x128xf32>
    %c0_1 = arith.constant 0 : index
    %c0_2 = arith.constant 0 : index
    %3 = vector.load %arg2[%c0_1, %c0_2] : memref<8x128xf32, #tpu.memory_space<vmem>>, vector<8x128xf32>
    tpu.vector_store %arg2[%c0_1, %c0_2], %2 {strides = array<i32>} : memref<8x128xf32, #tpu.memory_space<vmem>>, vector<8x128xf32>,
    return
  }
  func.func @transform_0(%arg0: i32) -> (i32, i32) {
    %c0_i32 = arith.constant 0 : i32
    %c0_i32_0 = arith.constant 0 : i32
    %c0_i32_1 = arith.constant 0 : i32
    return %c0_i32, %c0_i32_0 : i32, i32
  }
  func.func @transform_1(%arg0: i32) -> (i32, i32) {
    %c0_i32 = arith.constant 0 : i32
    %c0_i32_0 = arith.constant 0 : i32
    %c0_i32_1 = arith.constant 0 : i32
    return %c0_i32, %c0_i32_0 : i32, i32
  }
}

module attributes {stable_mosaic.version = 11 : i64} {
  func.func @kernel(%arg0: i32, %arg1: memref<2x288x128xbf16, #tpu.memory_space<vmem>>, %arg2: memref<2x288x128xbf16, #tpu.memory_space<vmem>>, %arg3: memref<2x288x128xbf16, #tpu.memory_space<vmem>>, %arg4: memref<9x128x128xbf16, #tpu.memory_space<vmem>>, %arg5: memref<1x128xf32, #tpu.memory_space<vmem>>, %arg6: memref<2x128x128xbf16, #tpu.memory_space<vmem>>) attributes {dimension_semantics = [#tpu.dimension_semantics<parallel>], iteration_bounds = array<i64: 2>, scalar_prefetch = 0 : i64, scratch_operands = 0 : i64, tpu.core_type = #tpu.core_type<tc>, window_params = [{pipeline_mode = #tpu.pipeline_mode<synchronous>, transform_indices = @transform_0, window_bounds = array<i64: 2, 288, 128>}, {pipeline_mode = #tpu.pipeline_mode<synchronous>, transform_indices = @transform_1, window_bounds = array<i64: 2, 288, 128>}, {pipeline_mode = #tpu.pipeline_mode<synchronous>, transform_indices = @transform_2, window_bounds = array<i64: 2, 288, 128>}, {pipeline_mode = #tpu.pipeline_mode<synchronous>, transform_indices = @transform_3, window_bounds = array<i64: 9, 128, 128>}, {pipeline_mode = #tpu.pipeline_mode<synchronous>, transform_indices = @transform_4, window_bounds = array<i64: 1, 128>}, {transform_indices = @transform_5, window_bounds = array<i64: 2, 128, 128>}]} {
    %c8_i32 = arith.constant 8 : i32
    %0 = arith.muli %arg0, %c8_i32 : i32
    %cst = arith.constant 0.000000e+00 : f32
    %1 = vector.broadcast %cst : f32 to vector<128x128xf32>
    %c0_i32 = arith.constant 0 : i32
    %2 = arith.addi %0, %c0_i32 : i32
    %c16_i32 = arith.constant 16 : i32
    %3 = arith.muli %2, %c16_i32 : i32
    %4 = tpu.assume_multiple %3, 16 : i32
    %c0 = arith.constant 0 : index
    %5 = arith.index_cast %4 : i32 to index
    %c0_0 = arith.constant 0 : index
    %6 = vector.load %arg1[%c0, %5, %c0_0] : memref<2x288x128xbf16, #tpu.memory_space<vmem>>, vector<1x128x128xbf16>
    %7 = vector.shape_cast %6 : vector<1x128x128xbf16> to vector<128x128xbf16>
    %c0_1 = arith.constant 0 : index
    %c0_2 = arith.constant 0 : index
    %c0_3 = arith.constant 0 : index
    %8 = vector.load %arg4[%c0_1, %c0_2, %c0_3] : memref<9x128x128xbf16, #tpu.memory_space<vmem>>, vector<1x128x128xbf16>
    %9 = vector.shape_cast %8 : vector<1x128x128xbf16> to vector<128x128xbf16>
    %cst_4 = arith.constant dense<0.000000e+00> : vector<128x128xf32>
    %10 = tpu.matmul %7, %9, %cst_4 {dimension_numbers = #tpu.dot_dimension_numbers<[1], [0], [0], [1], [0, 0, 1, 1], [], []>} : vector<128x128xbf16>, vector<128x128xbf16>, vector<128x128xf32> -> vector<128x128xf32>
    %11 = arith.addf %1, %10 : vector<128x128xf32>
    %c0_5 = arith.constant 0 : index
    %12 = arith.index_cast %4 : i32 to index
    %c0_6 = arith.constant 0 : index
    %13 = vector.load %arg2[%c0_5, %12, %c0_6] : memref<2x288x128xbf16, #tpu.memory_space<vmem>>, vector<1x128x128xbf16>
    %14 = vector.shape_cast %13 : vector<1x128x128xbf16> to vector<128x128xbf16>
    %c1 = arith.constant 1 : index
    %c0_7 = arith.constant 0 : index
    %c0_8 = arith.constant 0 : index
    %15 = vector.load %arg4[%c1, %c0_7, %c0_8] : memref<9x128x128xbf16, #tpu.memory_space<vmem>>, vector<1x128x128xbf16>
    %16 = vector.shape_cast %15 : vector<1x128x128xbf16> to vector<128x128xbf16>
    %cst_9 = arith.constant dense<0.000000e+00> : vector<128x128xf32>
    %17 = tpu.matmul %14, %16, %cst_9 {dimension_numbers = #tpu.dot_dimension_numbers<[1], [0], [0], [1], [0, 0, 1, 1], [], []>} : vector<128x128xbf16>, vector<128x128xbf16>, vector<128x128xf32> -> vector<128x128xf32>
    %18 = arith.addf %11, %17 : vector<128x128xf32>
    %c0_10 = arith.constant 0 : index
    %19 = arith.index_cast %4 : i32 to index
    %c0_11 = arith.constant 0 : index
    %20 = vector.load %arg3[%c0_10, %19, %c0_11] : memref<2x288x128xbf16, #tpu.memory_space<vmem>>, vector<1x128x128xbf16>
    %21 = vector.shape_cast %20 : vector<1x128x128xbf16> to vector<128x128xbf16>
    %c2 = arith.constant 2 : index
    %c0_12 = arith.constant 0 : index
    %c0_13 = arith.constant 0 : index
    %22 = vector.load %arg4[%c2, %c0_12, %c0_13] : memref<9x128x128xbf16, #tpu.memory_space<vmem>>, vector<1x128x128xbf16>
    %23 = vector.shape_cast %22 : vector<1x128x128xbf16> to vector<128x128xbf16>
    %cst_14 = arith.constant dense<0.000000e+00> : vector<128x128xf32>
    %24 = tpu.matmul %21, %23, %cst_14 {dimension_numbers = #tpu.dot_dimension_numbers<[1], [0], [0], [1], [0, 0, 1, 1], [], []>} : vector<128x128xbf16>, vector<128x128xbf16>, vector<128x128xf32> -> vector<128x128xf32>
    %25 = arith.addf %18, %24 : vector<128x128xf32>
    %c1_i32 = arith.constant 1 : i32
    %26 = arith.addi %0, %c1_i32 : i32
    %c16_i32_15 = arith.constant 16 : i32
    %27 = arith.muli %26, %c16_i32_15 : i32
    %28 = tpu.assume_multiple %27, 16 : i32
    %c0_16 = arith.constant 0 : index
    %29 = arith.index_cast %28 : i32 to index
    %c0_17 = arith.constant 0 : index
    %30 = vector.load %arg1[%c0_16, %29, %c0_17] : memref<2x288x128xbf16, #tpu.memory_space<vmem>>, vector<1x128x128xbf16>
    %31 = vector.shape_cast %30 : vector<1x128x128xbf16> to vector<128x128xbf16>
    %c3 = arith.constant 3 : index
    %c0_18 = arith.constant 0 : index
    %c0_19 = arith.constant 0 : index
    %32 = vector.load %arg4[%c3, %c0_18, %c0_19] : memref<9x128x128xbf16, #tpu.memory_space<vmem>>, vector<1x128x128xbf16>
    %33 = vector.shape_cast %32 : vector<1x128x128xbf16> to vector<128x128xbf16>
    %cst_20 = arith.constant dense<0.000000e+00> : vector<128x128xf32>
    %34 = tpu.matmul %31, %33, %cst_20 {dimension_numbers = #tpu.dot_dimension_numbers<[1], [0], [0], [1], [0, 0, 1, 1], [], []>} : vector<128x128xbf16>, vector<128x128xbf16>, vector<128x128xf32> -> vector<128x128xf32>
    %35 = arith.addf %25, %34 : vector<128x128xf32>
    %c0_21 = arith.constant 0 : index
    %36 = arith.index_cast %28 : i32 to index
    %c0_22 = arith.constant 0 : index
    %37 = vector.load %arg2[%c0_21, %36, %c0_22] : memref<2x288x128xbf16, #tpu.memory_space<vmem>>, vector<1x128x128xbf16>
    %38 = vector.shape_cast %37 : vector<1x128x128xbf16> to vector<128x128xbf16>
    %c4 = arith.constant 4 : index
    %c0_23 = arith.constant 0 : index
    %c0_24 = arith.constant 0 : index
    %39 = vector.load %arg4[%c4, %c0_23, %c0_24] : memref<9x128x128xbf16, #tpu.memory_space<vmem>>, vector<1x128x128xbf16>
    %40 = vector.shape_cast %39 : vector<1x128x128xbf16> to vector<128x128xbf16>
    %cst_25 = arith.constant dense<0.000000e+00> : vector<128x128xf32>
    %41 = tpu.matmul %38, %40, %cst_25 {dimension_numbers = #tpu.dot_dimension_numbers<[1], [0], [0], [1], [0, 0, 1, 1], [], []>} : vector<128x128xbf16>, vector<128x128xbf16>, vector<128x128xf32> -> vector<128x128xf32>
    %42 = arith.addf %35, %41 : vector<128x128xf32>
    %c0_26 = arith.constant 0 : index
    %43 = arith.index_cast %28 : i32 to index
    %c0_27 = arith.constant 0 : index
    %44 = vector.load %arg3[%c0_26, %43, %c0_27] : memref<2x288x128xbf16, #tpu.memory_space<vmem>>, vector<1x128x128xbf16>
    %45 = vector.shape_cast %44 : vector<1x128x128xbf16> to vector<128x128xbf16>
    %c5 = arith.constant 5 : index
    %c0_28 = arith.constant 0 : index
    %c0_29 = arith.constant 0 : index
    %46 = vector.load %arg4[%c5, %c0_28, %c0_29] : memref<9x128x128xbf16, #tpu.memory_space<vmem>>, vector<1x128x128xbf16>
    %47 = vector.shape_cast %46 : vector<1x128x128xbf16> to vector<128x128xbf16>
    %cst_30 = arith.constant dense<0.000000e+00> : vector<128x128xf32>
    %48 = tpu.matmul %45, %47, %cst_30 {dimension_numbers = #tpu.dot_dimension_numbers<[1], [0], [0], [1], [0, 0, 1, 1], [], []>} : vector<128x128xbf16>, vector<128x128xbf16>, vector<128x128xf32> -> vector<128x128xf32>
    %49 = arith.addf %42, %48 : vector<128x128xf32>
    %c2_i32 = arith.constant 2 : i32
    %50 = arith.addi %0, %c2_i32 : i32
    %c16_i32_31 = arith.constant 16 : i32
    %51 = arith.muli %50, %c16_i32_31 : i32
    %52 = tpu.assume_multiple %51, 16 : i32
    %c0_32 = arith.constant 0 : index
    %53 = arith.index_cast %52 : i32 to index
    %c0_33 = arith.constant 0 : index
    %54 = vector.load %arg1[%c0_32, %53, %c0_33] : memref<2x288x128xbf16, #tpu.memory_space<vmem>>, vector<1x128x128xbf16>
    %55 = vector.shape_cast %54 : vector<1x128x128xbf16> to vector<128x128xbf16>
    %c6 = arith.constant 6 : index
    %c0_34 = arith.constant 0 : index
    %c0_35 = arith.constant 0 : index
    %56 = vector.load %arg4[%c6, %c0_34, %c0_35] : memref<9x128x128xbf16, #tpu.memory_space<vmem>>, vector<1x128x128xbf16>
    %57 = vector.shape_cast %56 : vector<1x128x128xbf16> to vector<128x128xbf16>
    %cst_36 = arith.constant dense<0.000000e+00> : vector<128x128xf32>
    %58 = tpu.matmul %55, %57, %cst_36 {dimension_numbers = #tpu.dot_dimension_numbers<[1], [0], [0], [1], [0, 0, 1, 1], [], []>} : vector<128x128xbf16>, vector<128x128xbf16>, vector<128x128xf32> -> vector<128x128xf32>
    %59 = arith.addf %49, %58 : vector<128x128xf32>
    %c0_37 = arith.constant 0 : index
    %60 = arith.index_cast %52 : i32 to index
    %c0_38 = arith.constant 0 : index
    %61 = vector.load %arg2[%c0_37, %60, %c0_38] : memref<2x288x128xbf16, #tpu.memory_space<vmem>>, vector<1x128x128xbf16>
    %62 = vector.shape_cast %61 : vector<1x128x128xbf16> to vector<128x128xbf16>
    %c7 = arith.constant 7 : index
    %c0_39 = arith.constant 0 : index
    %c0_40 = arith.constant 0 : index
    %63 = vector.load %arg4[%c7, %c0_39, %c0_40] : memref<9x128x128xbf16, #tpu.memory_space<vmem>>, vector<1x128x128xbf16>
    %64 = vector.shape_cast %63 : vector<1x128x128xbf16> to vector<128x128xbf16>
    %cst_41 = arith.constant dense<0.000000e+00> : vector<128x128xf32>
    %65 = tpu.matmul %62, %64, %cst_41 {dimension_numbers = #tpu.dot_dimension_numbers<[1], [0], [0], [1], [0, 0, 1, 1], [], []>} : vector<128x128xbf16>, vector<128x128xbf16>, vector<128x128xf32> -> vector<128x128xf32>
    %66 = arith.addf %59, %65 : vector<128x128xf32>
    %c0_42 = arith.constant 0 : index
    %67 = arith.index_cast %52 : i32 to index
    %c0_43 = arith.constant 0 : index
    %68 = vector.load %arg3[%c0_42, %67, %c0_43] : memref<2x288x128xbf16, #tpu.memory_space<vmem>>, vector<1x128x128xbf16>
    %69 = vector.shape_cast %68 : vector<1x128x128xbf16> to vector<128x128xbf16>
    %c8 = arith.constant 8 : index
    %c0_44 = arith.constant 0 : index
    %c0_45 = arith.constant 0 : index
    %70 = vector.load %arg4[%c8, %c0_44, %c0_45] : memref<9x128x128xbf16, #tpu.memory_space<vmem>>, vector<1x128x128xbf16>
    %71 = vector.shape_cast %70 : vector<1x128x128xbf16> to vector<128x128xbf16>
    %cst_46 = arith.constant dense<0.000000e+00> : vector<128x128xf32>
    %72 = tpu.matmul %69, %71, %cst_46 {dimension_numbers = #tpu.dot_dimension_numbers<[1], [0], [0], [1], [0, 0, 1, 1], [], []>} : vector<128x128xbf16>, vector<128x128xbf16>, vector<128x128xf32> -> vector<128x128xf32>
    %73 = arith.addf %66, %72 : vector<128x128xf32>
    %c0_47 = arith.constant 0 : index
    %c0_48 = arith.constant 0 : index
    %74 = vector.load %arg5[%c0_47, %c0_48] : memref<1x128xf32, #tpu.memory_space<vmem>>, vector<1x128xf32>
    %75 = vector.broadcast %74 : vector<1x128xf32> to vector<128x128xf32>
    %76 = arith.addf %73, %75 : vector<128x128xf32>
    %77 = arith.truncf %76 : vector<128x128xf32> to vector<128x128xbf16>
    %c0_49 = arith.constant 0 : index
    %c0_50 = arith.constant 0 : index
    %c0_51 = arith.constant 0 : index
    %78 = vector.load %arg6[%c0_49, %c0_50, %c0_51] : memref<2x128x128xbf16, #tpu.memory_space<vmem>>, vector<1x128x128xbf16>
    %79 = vector.shape_cast %78 : vector<1x128x128xbf16> to vector<128x128xbf16>
    %80 = vector.shape_cast %77 : vector<128x128xbf16> to vector<1x128x128xbf16>
    tpu.vector_store %arg6[%c0_49, %c0_50, %c0_51], %80 {strides = array<i32>} : memref<2x128x128xbf16, #tpu.memory_space<vmem>>, vector<1x128x128xbf16>,
    %cst_52 = arith.constant 0.000000e+00 : f32
    %81 = vector.broadcast %cst_52 : f32 to vector<128x128xf32>
    %c0_i32_53 = arith.constant 0 : i32
    %82 = arith.addi %0, %c0_i32_53 : i32
    %c16_i32_54 = arith.constant 16 : i32
    %83 = arith.muli %82, %c16_i32_54 : i32
    %84 = tpu.assume_multiple %83, 16 : i32
    %c1_55 = arith.constant 1 : index
    %85 = arith.index_cast %84 : i32 to index
    %c0_56 = arith.constant 0 : index
    %86 = vector.load %arg1[%c1_55, %85, %c0_56] : memref<2x288x128xbf16, #tpu.memory_space<vmem>>, vector<1x128x128xbf16>
    %87 = vector.shape_cast %86 : vector<1x128x128xbf16> to vector<128x128xbf16>
    %c0_57 = arith.constant 0 : index
    %c0_58 = arith.constant 0 : index
    %c0_59 = arith.constant 0 : index
    %88 = vector.load %arg4[%c0_57, %c0_58, %c0_59] : memref<9x128x128xbf16, #tpu.memory_space<vmem>>, vector<1x128x128xbf16>
    %89 = vector.shape_cast %88 : vector<1x128x128xbf16> to vector<128x128xbf16>
    %cst_60 = arith.constant dense<0.000000e+00> : vector<128x128xf32>
    %90 = tpu.matmul %87, %89, %cst_60 {dimension_numbers = #tpu.dot_dimension_numbers<[1], [0], [0], [1], [0, 0, 1, 1], [], []>} : vector<128x128xbf16>, vector<128x128xbf16>, vector<128x128xf32> -> vector<128x128xf32>
    %91 = arith.addf %81, %90 : vector<128x128xf32>
    %c1_61 = arith.constant 1 : index
    %92 = arith.index_cast %84 : i32 to index
    %c0_62 = arith.constant 0 : index
    %93 = vector.load %arg2[%c1_61, %92, %c0_62] : memref<2x288x128xbf16, #tpu.memory_space<vmem>>, vector<1x128x128xbf16>
    %94 = vector.shape_cast %93 : vector<1x128x128xbf16> to vector<128x128xbf16>
    %c1_63 = arith.constant 1 : index
    %c0_64 = arith.constant 0 : index
    %c0_65 = arith.constant 0 : index
    %95 = vector.load %arg4[%c1_63, %c0_64, %c0_65] : memref<9x128x128xbf16, #tpu.memory_space<vmem>>, vector<1x128x128xbf16>
    %96 = vector.shape_cast %95 : vector<1x128x128xbf16> to vector<128x128xbf16>
    %cst_66 = arith.constant dense<0.000000e+00> : vector<128x128xf32>
    %97 = tpu.matmul %94, %96, %cst_66 {dimension_numbers = #tpu.dot_dimension_numbers<[1], [0], [0], [1], [0, 0, 1, 1], [], []>} : vector<128x128xbf16>, vector<128x128xbf16>, vector<128x128xf32> -> vector<128x128xf32>
    %98 = arith.addf %91, %97 : vector<128x128xf32>
    %c1_67 = arith.constant 1 : index
    %99 = arith.index_cast %84 : i32 to index
    %c0_68 = arith.constant 0 : index
    %100 = vector.load %arg3[%c1_67, %99, %c0_68] : memref<2x288x128xbf16, #tpu.memory_space<vmem>>, vector<1x128x128xbf16>
    %101 = vector.shape_cast %100 : vector<1x128x128xbf16> to vector<128x128xbf16>
    %c2_69 = arith.constant 2 : index
    %c0_70 = arith.constant 0 : index
    %c0_71 = arith.constant 0 : index
    %102 = vector.load %arg4[%c2_69, %c0_70, %c0_71] : memref<9x128x128xbf16, #tpu.memory_space<vmem>>, vector<1x128x128xbf16>
    %103 = vector.shape_cast %102 : vector<1x128x128xbf16> to vector<128x128xbf16>
    %cst_72 = arith.constant dense<0.000000e+00> : vector<128x128xf32>
    %104 = tpu.matmul %101, %103, %cst_72 {dimension_numbers = #tpu.dot_dimension_numbers<[1], [0], [0], [1], [0, 0, 1, 1], [], []>} : vector<128x128xbf16>, vector<128x128xbf16>, vector<128x128xf32> -> vector<128x128xf32>
    %105 = arith.addf %98, %104 : vector<128x128xf32>
    %c1_i32_73 = arith.constant 1 : i32
    %106 = arith.addi %0, %c1_i32_73 : i32
    %c16_i32_74 = arith.constant 16 : i32
    %107 = arith.muli %106, %c16_i32_74 : i32
    %108 = tpu.assume_multiple %107, 16 : i32
    %c1_75 = arith.constant 1 : index
    %109 = arith.index_cast %108 : i32 to index
    %c0_76 = arith.constant 0 : index
    %110 = vector.load %arg1[%c1_75, %109, %c0_76] : memref<2x288x128xbf16, #tpu.memory_space<vmem>>, vector<1x128x128xbf16>
    %111 = vector.shape_cast %110 : vector<1x128x128xbf16> to vector<128x128xbf16>
    %c3_77 = arith.constant 3 : index
    %c0_78 = arith.constant 0 : index
    %c0_79 = arith.constant 0 : index
    %112 = vector.load %arg4[%c3_77, %c0_78, %c0_79] : memref<9x128x128xbf16, #tpu.memory_space<vmem>>, vector<1x128x128xbf16>
    %113 = vector.shape_cast %112 : vector<1x128x128xbf16> to vector<128x128xbf16>
    %cst_80 = arith.constant dense<0.000000e+00> : vector<128x128xf32>
    %114 = tpu.matmul %111, %113, %cst_80 {dimension_numbers = #tpu.dot_dimension_numbers<[1], [0], [0], [1], [0, 0, 1, 1], [], []>} : vector<128x128xbf16>, vector<128x128xbf16>, vector<128x128xf32> -> vector<128x128xf32>
    %115 = arith.addf %105, %114 : vector<128x128xf32>
    %c1_81 = arith.constant 1 : index
    %116 = arith.index_cast %108 : i32 to index
    %c0_82 = arith.constant 0 : index
    %117 = vector.load %arg2[%c1_81, %116, %c0_82] : memref<2x288x128xbf16, #tpu.memory_space<vmem>>, vector<1x128x128xbf16>
    %118 = vector.shape_cast %117 : vector<1x128x128xbf16> to vector<128x128xbf16>
    %c4_83 = arith.constant 4 : index
    %c0_84 = arith.constant 0 : index
    %c0_85 = arith.constant 0 : index
    %119 = vector.load %arg4[%c4_83, %c0_84, %c0_85] : memref<9x128x128xbf16, #tpu.memory_space<vmem>>, vector<1x128x128xbf16>
    %120 = vector.shape_cast %119 : vector<1x128x128xbf16> to vector<128x128xbf16>
    %cst_86 = arith.constant dense<0.000000e+00> : vector<128x128xf32>
    %121 = tpu.matmul %118, %120, %cst_86 {dimension_numbers = #tpu.dot_dimension_numbers<[1], [0], [0], [1], [0, 0, 1, 1], [], []>} : vector<128x128xbf16>, vector<128x128xbf16>, vector<128x128xf32> -> vector<128x128xf32>
    %122 = arith.addf %115, %121 : vector<128x128xf32>
    %c1_87 = arith.constant 1 : index
    %123 = arith.index_cast %108 : i32 to index
    %c0_88 = arith.constant 0 : index
    %124 = vector.load %arg3[%c1_87, %123, %c0_88] : memref<2x288x128xbf16, #tpu.memory_space<vmem>>, vector<1x128x128xbf16>
    %125 = vector.shape_cast %124 : vector<1x128x128xbf16> to vector<128x128xbf16>
    %c5_89 = arith.constant 5 : index
    %c0_90 = arith.constant 0 : index
    %c0_91 = arith.constant 0 : index
    %126 = vector.load %arg4[%c5_89, %c0_90, %c0_91] : memref<9x128x128xbf16, #tpu.memory_space<vmem>>, vector<1x128x128xbf16>
    %127 = vector.shape_cast %126 : vector<1x128x128xbf16> to vector<128x128xbf16>
    %cst_92 = arith.constant dense<0.000000e+00> : vector<128x128xf32>
    %128 = tpu.matmul %125, %127, %cst_92 {dimension_numbers = #tpu.dot_dimension_numbers<[1], [0], [0], [1], [0, 0, 1, 1], [], []>} : vector<128x128xbf16>, vector<128x128xbf16>, vector<128x128xf32> -> vector<128x128xf32>
    %129 = arith.addf %122, %128 : vector<128x128xf32>
    %c2_i32_93 = arith.constant 2 : i32
    %130 = arith.addi %0, %c2_i32_93 : i32
    %c16_i32_94 = arith.constant 16 : i32
    %131 = arith.muli %130, %c16_i32_94 : i32
    %132 = tpu.assume_multiple %131, 16 : i32
    %c1_95 = arith.constant 1 : index
    %133 = arith.index_cast %132 : i32 to index
    %c0_96 = arith.constant 0 : index
    %134 = vector.load %arg1[%c1_95, %133, %c0_96] : memref<2x288x128xbf16, #tpu.memory_space<vmem>>, vector<1x128x128xbf16>
    %135 = vector.shape_cast %134 : vector<1x128x128xbf16> to vector<128x128xbf16>
    %c6_97 = arith.constant 6 : index
    %c0_98 = arith.constant 0 : index
    %c0_99 = arith.constant 0 : index
    %136 = vector.load %arg4[%c6_97, %c0_98, %c0_99] : memref<9x128x128xbf16, #tpu.memory_space<vmem>>, vector<1x128x128xbf16>
    %137 = vector.shape_cast %136 : vector<1x128x128xbf16> to vector<128x128xbf16>
    %cst_100 = arith.constant dense<0.000000e+00> : vector<128x128xf32>
    %138 = tpu.matmul %135, %137, %cst_100 {dimension_numbers = #tpu.dot_dimension_numbers<[1], [0], [0], [1], [0, 0, 1, 1], [], []>} : vector<128x128xbf16>, vector<128x128xbf16>, vector<128x128xf32> -> vector<128x128xf32>
    %139 = arith.addf %129, %138 : vector<128x128xf32>
    %c1_101 = arith.constant 1 : index
    %140 = arith.index_cast %132 : i32 to index
    %c0_102 = arith.constant 0 : index
    %141 = vector.load %arg2[%c1_101, %140, %c0_102] : memref<2x288x128xbf16, #tpu.memory_space<vmem>>, vector<1x128x128xbf16>
    %142 = vector.shape_cast %141 : vector<1x128x128xbf16> to vector<128x128xbf16>
    %c7_103 = arith.constant 7 : index
    %c0_104 = arith.constant 0 : index
    %c0_105 = arith.constant 0 : index
    %143 = vector.load %arg4[%c7_103, %c0_104, %c0_105] : memref<9x128x128xbf16, #tpu.memory_space<vmem>>, vector<1x128x128xbf16>
    %144 = vector.shape_cast %143 : vector<1x128x128xbf16> to vector<128x128xbf16>
    %cst_106 = arith.constant dense<0.000000e+00> : vector<128x128xf32>
    %145 = tpu.matmul %142, %144, %cst_106 {dimension_numbers = #tpu.dot_dimension_numbers<[1], [0], [0], [1], [0, 0, 1, 1], [], []>} : vector<128x128xbf16>, vector<128x128xbf16>, vector<128x128xf32> -> vector<128x128xf32>
    %146 = arith.addf %139, %145 : vector<128x128xf32>
    %c1_107 = arith.constant 1 : index
    %147 = arith.index_cast %132 : i32 to index
    %c0_108 = arith.constant 0 : index
    %148 = vector.load %arg3[%c1_107, %147, %c0_108] : memref<2x288x128xbf16, #tpu.memory_space<vmem>>, vector<1x128x128xbf16>
    %149 = vector.shape_cast %148 : vector<1x128x128xbf16> to vector<128x128xbf16>
    %c8_109 = arith.constant 8 : index
    %c0_110 = arith.constant 0 : index
    %c0_111 = arith.constant 0 : index
    %150 = vector.load %arg4[%c8_109, %c0_110, %c0_111] : memref<9x128x128xbf16, #tpu.memory_space<vmem>>, vector<1x128x128xbf16>
    %151 = vector.shape_cast %150 : vector<1x128x128xbf16> to vector<128x128xbf16>
    %cst_112 = arith.constant dense<0.000000e+00> : vector<128x128xf32>
    %152 = tpu.matmul %149, %151, %cst_112 {dimension_numbers = #tpu.dot_dimension_numbers<[1], [0], [0], [1], [0, 0, 1, 1], [], []>} : vector<128x128xbf16>, vector<128x128xbf16>, vector<128x128xf32> -> vector<128x128xf32>
    %153 = arith.addf %146, %152 : vector<128x128xf32>
    %c0_113 = arith.constant 0 : index
    %c0_114 = arith.constant 0 : index
    %154 = vector.load %arg5[%c0_113, %c0_114] : memref<1x128xf32, #tpu.memory_space<vmem>>, vector<1x128xf32>
    %155 = vector.broadcast %154 : vector<1x128xf32> to vector<128x128xf32>
    %156 = arith.addf %153, %155 : vector<128x128xf32>
    %157 = arith.truncf %156 : vector<128x128xf32> to vector<128x128xbf16>
    %c1_115 = arith.constant 1 : index
    %c0_116 = arith.constant 0 : index
    %c0_117 = arith.constant 0 : index
    %158 = vector.load %arg6[%c1_115, %c0_116, %c0_117] : memref<2x128x128xbf16, #tpu.memory_space<vmem>>, vector<1x128x128xbf16>
    %159 = vector.shape_cast %158 : vector<1x128x128xbf16> to vector<128x128xbf16>
    %160 = vector.shape_cast %157 : vector<128x128xbf16> to vector<1x128x128xbf16>
    tpu.vector_store %arg6[%c1_115, %c0_116, %c0_117], %160 {strides = array<i32>} : memref<2x128x128xbf16, #tpu.memory_space<vmem>>, vector<1x128x128xbf16>,
    return
  }
  func.func @transform_0(%arg0: i32) -> (i32, i32, i32) {
    %c0_i32 = arith.constant 0 : i32
    %c0_i32_0 = arith.constant 0 : i32
    %c0_i32_1 = arith.constant 0 : i32
    %c0_i32_2 = arith.constant 0 : i32
    return %c0_i32, %c0_i32_0, %c0_i32_1 : i32, i32, i32
  }
  func.func @transform_1(%arg0: i32) -> (i32, i32, i32) {
    %c0_i32 = arith.constant 0 : i32
    %c0_i32_0 = arith.constant 0 : i32
    %c0_i32_1 = arith.constant 0 : i32
    %c0_i32_2 = arith.constant 0 : i32
    return %c0_i32, %c0_i32_0, %c0_i32_1 : i32, i32, i32
  }
  func.func @transform_2(%arg0: i32) -> (i32, i32, i32) {
    %c0_i32 = arith.constant 0 : i32
    %c0_i32_0 = arith.constant 0 : i32
    %c0_i32_1 = arith.constant 0 : i32
    %c0_i32_2 = arith.constant 0 : i32
    return %c0_i32, %c0_i32_0, %c0_i32_1 : i32, i32, i32
  }
  func.func @transform_3(%arg0: i32) -> (i32, i32, i32) {
    %c0_i32 = arith.constant 0 : i32
    %c0_i32_0 = arith.constant 0 : i32
    %c0_i32_1 = arith.constant 0 : i32
    %c0_i32_2 = arith.constant 0 : i32
    return %c0_i32, %c0_i32_0, %c0_i32_1 : i32, i32, i32
  }
  func.func @transform_4(%arg0: i32) -> (i32, i32) {
    %c0_i32 = arith.constant 0 : i32
    %c0_i32_0 = arith.constant 0 : i32
    %c0_i32_1 = arith.constant 0 : i32
    return %c0_i32, %c0_i32_0 : i32, i32
  }
  func.func @transform_5(%arg0: i32) -> (i32, i32, i32) {
    %c0_i32 = arith.constant 0 : i32
    %c0_i32_0 = arith.constant 0 : i32
    %c0_i32_1 = arith.constant 0 : i32
    return %c0_i32, %arg0, %c0_i32_0 : i32, i32, i32
  }
}

</mosaic_0001>

<llo_original>
// kernel: tpu_custom_call.1
$region0: #{tpu_custom_call.1}
  #allocation0 [shape = 'u32[]', space=smem, size = 0x4, offset = 0x4, fixed_abs, tag = 'smem constant byte address 0x4 - core index']
  #allocation1 [shape = 'u32[144,128]{1,0:T(1,128)}', space=vmem, size = 0x12000, scoped, tag = 'internal scratch']
  %s0 = inlined_call_operand.hbm [shape: f32[8,128], index: 0, kind: input, shape index: {}]
  %s1 = inlined_call_operand.hbm [shape: f32[8,128], index: 1, kind: output, shape index: {}]
  %s2 = sld [smem:[#allocation0]]
  $region41: #{tpu_custom_call.1} parent=0
    _
  %s4 = ssub.s32 1, %s2
  %s5 = scalar_select 0, %s4, %s2
  $region1: #{tpu_custom_call.1} parent=0
    #allocation2 [shape = 'u8[4096]{0}', space=vmem, size = 0x1000, scoped, tag = 'input window, operand 0, single buffered']
    #allocation3 [shape = 's32[2]{0}', space=sflag, size = 0x8, scoped, tag = 'scoped memory for tpu_custom_call.1']
    #allocation4 [shape = 's32[2]{0}', space=sflag, size = 0x8, scoped, tag = 'scoped memory for tpu_custom_call.1']
    #allocation5 [shape = 'u8[4096]{0}', space=vmem, size = 0x1000, scoped, tag = 'output window, operand 0, single buffered']
    %6 = vsyncpa [#allocation3], 0
    %7 = vsyncpa [#allocation4], 0
    loop: start=0, step=1, limit=4
    $region2: #{tpu_custom_call.1} parent=1 // loop_pre_header
      _
    $region3: #{tpu_custom_call.1} parent=1 // loop_header
      %s9 = sphi 0, %s13
      %p10 = scmp.ge.s32.totalorder %s9, 4
      %s17 = sphi 0, %s17
      %s19 = sphi 0, %s17
      %s20 = sphi 0, %s19
      %s34 = sphi 0, %s20
      %s38 = sphi 0, %s38
      %s40 = sphi 0, %s38
      %s41 = sphi 0, %s40
      %s55 = sphi 0, %s41
    $region4: #{tpu_custom_call.1} parent=1 // loop_header_branch
      %12 = sbr.rel (%p10) target = $region8
    $region5: #{tpu_custom_call.1} parent=1 // loop_body
      %s14 = ssub.s32 %s9, 1
      %s15 = ssub.s32 %s9, 2
      %s16 = sadd.s32 %s9, 1
      %s18 = sadd.s32 %s17, 1
      %p21 = scmp.eq.s32.totalorder %s9, 1
      %p22 = scmp.ne.s32.totalorder %s17, %s19
      %p23 = scmp.eq.s32.totalorder %s9, 0
      %p24 = por %p22, %p23
      %p25 = scmp.ne.s32.totalorder %s17, %s19
      %p26 = scmp.eq.s32.totalorder %s14, 1
      %p27 = por %p25, %p26
      %p28 = scmp.ne.s32.totalorder %s19, %s20
      %p29 = scmp.eq.s32.totalorder %s14, 0
      %p30 = por %p28, %p29
      %p31 = scmp.ne.s32.totalorder %s19, %s20
      %p32 = scmp.eq.s32.totalorder %s15, 1
      %p33 = por %p31, %p32
      %p35 = scmp.ne.s32.totalorder %s20, %s34
      %p36 = scmp.eq.s32.totalorder %s15, 0
      %p37 = por %p35, %p36
      %s39 = sadd.s32 %s38, 1
      %p42 = scmp.eq.s32.totalorder %s9, 1
      %p43 = scmp.ne.s32.totalorder %s38, %s40
      %p44 = scmp.eq.s32.totalorder %s9, 0
      %p45 = por %p43, %p44
      %p46 = scmp.ne.s32.totalorder %s38, %s40
      %p47 = scmp.eq.s32.totalorder %s14, 1
      %p48 = por %p46, %p47
      %p49 = scmp.ne.s32.totalorder %s40, %s41
      %p50 = scmp.eq.s32.totalorder %s14, 0
      %p51 = por %p49, %p50
      %p52 = scmp.ne.s32.totalorder %s40, %s41
      %p53 = scmp.eq.s32.totalorder %s15, 1
      %p54 = por %p52, %p53
      %p56 = scmp.ne.s32.totalorder %s41, %s55
      %p57 = scmp.eq.s32.totalorder %s15, 0
      %p58 = por %p56, %p57
      %p59 = scmp.le.s32.totalorder 1, %s9
      %p60 = scmp.lt.s32.totalorder %s9, 3
      %p61 = pnand %p59, %p60
      %p62 = pneg %p61
      // Predicated region
      $region9: #{tpu_custom_call.1} parent=5 // pred_check
        _
      $region10: #{tpu_custom_call.1} parent=5 // pred_check_branch
        %64 = sbr.rel (%p61) target = $region12
      $region11: #{tpu_custom_call.1} parent=5 // pred_region
        %s65 = ssub.s32 %s9, 1
        // Predicated region
        $region13: #{tpu_custom_call.1} parent=11 // pred_check
          %p66 = pneg %p30
        $region14: #{tpu_custom_call.1} parent=11 // pred_check_branch
          %68 = sbr.rel (%p66) target = $region16
        $region15: #{tpu_custom_call.1} parent=11 // pred_region
          %s70 = ssub.s32 128, 128
          %71 = vsyncadd [#allocation3], %s70
          %s73 = sshll.u32 [#allocation2], 4
          %s74 = int_to_ptr.vmem [resolvable:$true] %s73
          %76 = dma.hbm_to_vmem [thread:$0]  %s0, 128, %s74, [#allocation3]
        $region16: #{tpu_custom_call.1} parent=11 // pred_fallthru
          _
      $region12: #{tpu_custom_call.1} parent=5 // pred_fallthru
        _
      %p77 = scmp.lt.s32.totalorder %s9, 2
      // Predicated region
      $region17: #{tpu_custom_call.1} parent=5 // pred_check
        %p78 = pneg %p77
      $region18: #{tpu_custom_call.1} parent=5 // pred_check_branch
        %80 = sbr.rel (%p78) target = $region20
      $region19: #{tpu_custom_call.1} parent=5 // pred_region
        _
      $region20: #{tpu_custom_call.1} parent=5 // pred_fallthru
        _
      %p81 = scmp.le.s32.totalorder 1, %s9
      %p82 = scmp.lt.s32.totalorder %s9, 3
      %p83 = pnand %p81, %p82
      %p84 = pneg %p83
      // Predicated region
      $region21: #{tpu_custom_call.1} parent=5 // pred_check
        _
      $region22: #{tpu_custom_call.1} parent=5 // pred_check_branch
        %86 = sbr.rel (%p83) target = $region24
      $region23: #{tpu_custom_call.1} parent=5 // pred_region
        %s87 = ssub.s32 %s9, 1
        // Predicated region
        $region25: #{tpu_custom_call.1} parent=23 // pred_check
          %p88 = pneg %p30
        $region26: #{tpu_custom_call.1} parent=23 // pred_check_branch
          %90 = sbr.rel (%p88) target = $region28
        $region27: #{tpu_custom_call.1} parent=23 // pred_region
          %91 = dma.done [#allocation3], 128
        $region28: #{tpu_custom_call.1} parent=23 // pred_fallthru
          _
        %p92 = pneg %p30
        %p93 = pneg %p27
        %p94 = pneg %p51
        %p95 = pneg %p48
        %v96 = vld [vmem:[#allocation2] sm:$0xff]
        %v97 = vadd.f32 %v96, 1.0
        %98 = vst [vmem:[#allocation5] sm:$0xff] %v97
        // Predicated region
        $region29: #{tpu_custom_call.1} parent=23 // pred_check
          %p99 = pneg %p48
        $region30: #{tpu_custom_call.1} parent=23 // pred_check_branch
          %101 = sbr.rel (%p99) target = $region32
        $region31: #{tpu_custom_call.1} parent=23 // pred_region
          %s103 = ssub.s32 128, 128
          %104 = vsyncadd [#allocation4], %s103
          %s106 = sshll.u32 [#allocation5], 4
          %s107 = int_to_ptr.vmem [resolvable:$true] %s106
          %109 = dma.vmem_to_hbm [thread:$0]  %s107, 128, %s1, [#allocation4]
        $region32: #{tpu_custom_call.1} parent=23 // pred_fallthru
          _
        // Predicated region
        $region33: #{tpu_custom_call.1} parent=23 // pred_check
          %p110 = pneg %p48
        $region34: #{tpu_custom_call.1} parent=23 // pred_check_branch
          %112 = sbr.rel (%p110) target = $region36
        $region35: #{tpu_custom_call.1} parent=23 // pred_region
          %113 = dma.done [#allocation4], 128
        $region36: #{tpu_custom_call.1} parent=23 // pred_fallthru
          _
      $region24: #{tpu_custom_call.1} parent=5 // pred_fallthru
        _
      %p114 = scmp.le.s32.totalorder 2, %s9
      // Predicated region
      $region37: #{tpu_custom_call.1} parent=5 // pred_check
        %p115 = pneg %p114
      $region38: #{tpu_custom_call.1} parent=5 // pred_check_branch
        %117 = sbr.rel (%p115) target = $region40
      $region39: #{tpu_custom_call.1} parent=5 // pred_region
        %s118 = ssub.s32 %s9, 2
      $region40: #{tpu_custom_call.1} parent=5 // pred_fallthru
        _
    $region6: #{tpu_custom_call.1} parent=1 // loop_footer
      %s13 = sadd.s32 1, %s9
    $region7: #{tpu_custom_call.1} parent=1 // loop_footer_branch
      %8 = sbr.rel target = $region3
    $region8: #{tpu_custom_call.1} parent=1 // loop_exit
      _
    %119 = vsyncpa [#allocation3], 1
    %s120 = scalar_lea.sflag [#allocation3], 1
    %121 = vsyncpa %s120, 1
    %122 = vsyncpa [#allocation4], 1
    %s123 = scalar_lea.sflag [#allocation4], 1
    %124 = vsyncpa %s123, 1

// kernel: tpu_custom_call.1
$region0: #{tpu_custom_call.1}
  #allocation0 [shape = 'u32[]', space=smem, size = 0x4, offset = 0x4, fixed_abs, tag = 'smem constant byte address 0x4 - core index']
  #allocation1 [shape = 'u32[144,128]{1,0:T(1,128)}', space=vmem, size = 0x12000, scoped, tag = 'internal scratch']
  #allocation11 [shape = 's32[]', space=sflag, size = 0x4, offset = 0, fixed_abs, tag = 'sflag constant byte address 0x0 - dummy sync flag']
  %s0 = inlined_call_operand.hbm [shape: bf16[2,288,128], index: 0, kind: input, shape index: {}]
  %s1 = inlined_call_operand.hbm [shape: bf16[2,288,128], index: 1, kind: input, shape index: {}]
  %s2 = inlined_call_operand.hbm [shape: bf16[2,288,128], index: 2, kind: input, shape index: {}]
  %s3 = inlined_call_operand.hbm [shape: bf16[9,128,128], index: 3, kind: input, shape index: {}]
  %s4 = inlined_call_operand.vmem [shape: f32[1,128], index: 4, kind: input, shape index: {}]
  %s5 = inlined_call_operand.hbm [shape: bf16[2,256,128], index: 5, kind: output, shape index: {}]
  %s6 = sld [smem:[#allocation0]]
  $region69: #{tpu_custom_call.1} parent=0
    _
  %s8 = ssub.s32 1, %s6
  %s9 = scalar_select 0, %s8, %s6
  $region1: #{tpu_custom_call.1} parent=0
    #allocation2 [shape = 'u8[147456]{0}', space=vmem, size = 0x24000, scoped, tag = 'input window, operand 0, single buffered']
    #allocation3 [shape = 's32[2]{0}', space=sflag, size = 0x8, scoped, tag = 'scoped memory for tpu_custom_call.1']
    #allocation4 [shape = 's32[2]{0}', space=sflag, size = 0x8, scoped, tag = 'scoped memory for tpu_custom_call.1']
    #allocation5 [shape = 'u8[147456]{0}', space=vmem, size = 0x24000, scoped, tag = 'input window, operand 1, single buffered']
    #allocation6 [shape = 's32[1]{0}', space=sflag, size = 0x4, scoped, tag = 'scoped memory for tpu_custom_call.1']
    #allocation7 [shape = 'u8[147456]{0}', space=vmem, size = 0x24000, scoped, tag = 'input window, operand 2, single buffered']
    #allocation8 [shape = 'u8[294912]{0}', space=vmem, size = 0x48000, scoped, tag = 'input window, operand 3, single buffered']
    #allocation9 [shape = 's32[1]{0}', space=sflag, size = 0x4, scoped, tag = 'scoped memory for tpu_custom_call.1']
    #allocation10 [shape = 'u8[131072]{0}', space=vmem, size = 0x20000, scoped, tag = 'output window, operand 0']
    %10 = vsyncpa [#allocation3], 0
    %11 = vsyncpa [#allocation6], 0
    %12 = vsyncpa [#allocation9], 0
    %13 = vsyncpa [#allocation4], 0
    %s14 = scalar_lea.sflag [#allocation4], 1
    %15 = vsyncpa %s14, 0
    loop: start=0, step=1, limit=4
    $region2: #{tpu_custom_call.1} parent=1 // loop_pre_header
      _
    $region3: #{tpu_custom_call.1} parent=1 // loop_header
      %s17 = sphi 0, %s21
      %p18 = scmp.ge.s32.totalorder %s17, 4
      %s25 = sphi 0, %s25
      %s27 = sphi 0, %s25
      %s28 = sphi 0, %s27
      %s42 = sphi 0, %s28
      %s46 = sphi 0, %s46
      %s48 = sphi 0, %s46
      %s49 = sphi 0, %s48
      %s63 = sphi 0, %s49
      %s67 = sphi 0, %s67
      %s69 = sphi 0, %s67
      %s70 = sphi 0, %s69
      %s84 = sphi 0, %s70
      %s88 = sphi 0, %s88
      %s90 = sphi 0, %s88
      %s91 = sphi 0, %s90
      %s105 = sphi 0, %s91
      %s109 = sphi 0, %s109
      %s111 = sphi 0, %s109
      %s112 = sphi 0, %s111
      %s126 = sphi 0, %s112
      %s132 = sphi 0, %s134
      %s135 = sphi 0, %s132
      %s136 = sphi 0, %s135
      %s152 = sphi 0, %s136
    $region4: #{tpu_custom_call.1} parent=1 // loop_header_branch
      %20 = sbr.rel (%p18) target = $region8
    $region5: #{tpu_custom_call.1} parent=1 // loop_body
      %s22 = ssub.s32 %s17, 1
      %s23 = ssub.s32 %s17, 2
      %s24 = sadd.s32 %s17, 1
      %s26 = sadd.s32 %s25, 1
      %p29 = scmp.eq.s32.totalorder %s17, 1
      %p30 = scmp.ne.s32.totalorder %s25, %s27
      %p31 = scmp.eq.s32.totalorder %s17, 0
      %p32 = por %p30, %p31
      %p33 = scmp.ne.s32.totalorder %s25, %s27
      %p34 = scmp.eq.s32.totalorder %s22, 1
      %p35 = por %p33, %p34
      %p36 = scmp.ne.s32.totalorder %s27, %s28
      %p37 = scmp.eq.s32.totalorder %s22, 0
      %p38 = por %p36, %p37
      %p39 = scmp.ne.s32.totalorder %s27, %s28
      %p40 = scmp.eq.s32.totalorder %s23, 1
      %p41 = por %p39, %p40
      %p43 = scmp.ne.s32.totalorder %s28, %s42
      %p44 = scmp.eq.s32.totalorder %s23, 0
      %p45 = por %p43, %p44
      %s47 = sadd.s32 %s46, 1
      %p50 = scmp.eq.s32.totalorder %s17, 1
      %p51 = scmp.ne.s32.totalorder %s46, %s48
      %p52 = scmp.eq.s32.totalorder %s17, 0
      %p53 = por %p51, %p52
      %p54 = scmp.ne.s32.totalorder %s46, %s48
      %p55 = scmp.eq.s32.totalorder %s22, 1
      %p56 = por %p54, %p55
      %p57 = scmp.ne.s32.totalorder %s48, %s49
      %p58 = scmp.eq.s32.totalorder %s22, 0
      %p59 = por %p57, %p58
      %p60 = scmp.ne.s32.totalorder %s48, %s49
      %p61 = scmp.eq.s32.totalorder %s23, 1
      %p62 = por %p60, %p61
      %p64 = scmp.ne.s32.totalorder %s49, %s63
      %p65 = scmp.eq.s32.totalorder %s23, 0
      %p66 = por %p64, %p65
      %s68 = sadd.s32 %s67, 1
      %p71 = scmp.eq.s32.totalorder %s17, 1
      %p72 = scmp.ne.s32.totalorder %s67, %s69
      %p73 = scmp.eq.s32.totalorder %s17, 0
      %p74 = por %p72, %p73
      %p75 = scmp.ne.s32.totalorder %s67, %s69
      %p76 = scmp.eq.s32.totalorder %s22, 1
      %p77 = por %p75, %p76
      %p78 = scmp.ne.s32.totalorder %s69, %s70
      %p79 = scmp.eq.s32.totalorder %s22, 0
      %p80 = por %p78, %p79
      %p81 = scmp.ne.s32.totalorder %s69, %s70
      %p82 = scmp.eq.s32.totalorder %s23, 1
      %p83 = por %p81, %p82
      %p85 = scmp.ne.s32.totalorder %s70, %s84
      %p86 = scmp.eq.s32.totalorder %s23, 0
      %p87 = por %p85, %p86
      %s89 = sadd.s32 %s88, 1
      %p92 = scmp.eq.s32.totalorder %s17, 1
      %p93 = scmp.ne.s32.totalorder %s88, %s90
      %p94 = scmp.eq.s32.totalorder %s17, 0
      %p95 = por %p93, %p94
      %p96 = scmp.ne.s32.totalorder %s88, %s90
      %p97 = scmp.eq.s32.totalorder %s22, 1
      %p98 = por %p96, %p97
      %p99 = scmp.ne.s32.totalorder %s90, %s91
      %p100 = scmp.eq.s32.totalorder %s22, 0
      %p101 = por %p99, %p100
      %p102 = scmp.ne.s32.totalorder %s90, %s91
      %p103 = scmp.eq.s32.totalorder %s23, 1
      %p104 = por %p102, %p103
      %p106 = scmp.ne.s32.totalorder %s91, %s105
      %p107 = scmp.eq.s32.totalorder %s23, 0
      %p108 = por %p106, %p107
      %s110 = sadd.s32 %s109, 1
      %p113 = scmp.eq.s32.totalorder %s17, 1
      %p114 = scmp.ne.s32.totalorder %s109, %s111
      %p115 = scmp.eq.s32.totalorder %s17, 0
      %p116 = por %p114, %p115
      %p117 = scmp.ne.s32.totalorder %s109, %s111
      %p118 = scmp.eq.s32.totalorder %s22, 1
      %p119 = por %p117, %p118
      %p120 = scmp.ne.s32.totalorder %s111, %s112
      %p121 = scmp.eq.s32.totalorder %s22, 0
      %p122 = por %p120, %p121
      %p123 = scmp.ne.s32.totalorder %s111, %s112
      %p124 = scmp.eq.s32.totalorder %s23, 1
      %p125 = por %p123, %p124
      %p127 = scmp.ne.s32.totalorder %s112, %s126
      %p128 = scmp.eq.s32.totalorder %s23, 0
      %p129 = por %p127, %p128
      %s130 = ssub.s32 %s17, %s24
      %p131 = scmp.eq.s32.totalorder %s130, 0
      %s133 = sadd.s32 %s132, 1
      %s134 = scalar_select %p131, %s132, %s133
      %p137 = pneg %p131
      %p138 = scmp.eq.s32.totalorder %s17, 1
      %p139 = por %p137, %p138
      %p140 = scmp.ne.s32.totalorder %s132, %s135
      %p141 = scmp.eq.s32.totalorder %s17, 0
      %p142 = por %p140, %p141
      %p143 = scmp.ne.s32.totalorder %s132, %s135
      %p144 = scmp.eq.s32.totalorder %s22, 1
      %p145 = por %p143, %p144
      %p146 = scmp.ne.s32.totalorder %s135, %s136
      %p147 = scmp.eq.s32.totalorder %s22, 0
      %p148 = por %p146, %p147
      %p149 = scmp.ne.s32.totalorder %s135, %s136
      %p150 = scmp.eq.s32.totalorder %s23, 1
      %p151 = por %p149, %p150
      %p153 = scmp.ne.s32.totalorder %s136, %s152
      %p154 = scmp.eq.s32.totalorder %s23, 0
      %p155 = por %p153, %p154
      %p156 = scmp.le.s32.totalorder 1, %s17
      %p157 = scmp.lt.s32.totalorder %s17, 3
      %p158 = pnand %p156, %p157
      %p159 = pneg %p158
      // Predicated region
      $region9: #{tpu_custom_call.1} parent=5 // pred_check
        _
      $region10: #{tpu_custom_call.1} parent=5 // pred_check_branch
        %161 = sbr.rel (%p158) target = $region12
      $region11: #{tpu_custom_call.1} parent=5 // pred_region
        %s162 = ssub.s32 %s17, 1
        // Predicated region
        $region13: #{tpu_custom_call.1} parent=11 // pred_check
          %p163 = pneg %p38
        $region14: #{tpu_custom_call.1} parent=11 // pred_check_branch
          %165 = sbr.rel (%p163) target = $region16
        $region15: #{tpu_custom_call.1} parent=11 // pred_region
          %s167 = ssub.s32 4608, 4608
          %168 = vsyncadd [#allocation3], %s167
          %s169 = sshll.u32 [#allocation2], 4
          %s170 = int_to_ptr.vmem [resolvable:$true] %s169
          %175 = dma.hbm_to_vmem [thread:$0]  %s0, 4608, %s170, [#allocation3], 64, 64, 4
        $region16: #{tpu_custom_call.1} parent=11 // pred_fallthru
          _
        // Predicated region
        $region17: #{tpu_custom_call.1} parent=11 // pred_check
          %p176 = pneg %p59
        $region18: #{tpu_custom_call.1} parent=11 // pred_check_branch
          %178 = sbr.rel (%p176) target = $region20
        $region19: #{tpu_custom_call.1} parent=11 // pred_region
          %s180 = ssub.s32 4608, 4608
          %181 = vsyncadd [#allocation6], %s180
          %s182 = sshll.u32 [#allocation5], 4
          %s183 = int_to_ptr.vmem [resolvable:$true] %s182
          %188 = dma.hbm_to_vmem [thread:$0]  %s1, 4608, %s183, [#allocation6], 64, 64, 4
        $region20: #{tpu_custom_call.1} parent=11 // pred_fallthru
          _
        // Predicated region
        $region21: #{tpu_custom_call.1} parent=11 // pred_check
          %p189 = pneg %p80
        $region22: #{tpu_custom_call.1} parent=11 // pred_check_branch
          %191 = sbr.rel (%p189) target = $region24
        $region23: #{tpu_custom_call.1} parent=11 // pred_region
          %s193 = ssub.s32 4608, 4608
          %194 = vsyncadd [#allocation6], %s193
          %s195 = sshll.u32 [#allocation7], 4
          %s196 = int_to_ptr.vmem [resolvable:$true] %s195
          %201 = dma.hbm_to_vmem [thread:$0]  %s2, 4608, %s196, [#allocation6], 64, 64, 4
        $region24: #{tpu_custom_call.1} parent=11 // pred_fallthru
          _
        // Predicated region
        $region25: #{tpu_custom_call.1} parent=11 // pred_check
          %p202 = pneg %p101
        $region26: #{tpu_custom_call.1} parent=11 // pred_check_branch
          %204 = sbr.rel (%p202) target = $region28
        $region27: #{tpu_custom_call.1} parent=11 // pred_region
          %s206 = ssub.s32 9216, 9216
          %207 = vsyncadd [#allocation9], %s206
          %s208 = sshll.u32 [#allocation8], 4
          %s209 = int_to_ptr.vmem [resolvable:$true] %s208
          %214 = dma.hbm_to_vmem [thread:$0]  %s3, 9216, %s209, [#allocation9], 64, 64, 4
        $region28: #{tpu_custom_call.1} parent=11 // pred_fallthru
          _
        // Predicated region
        $region29: #{tpu_custom_call.1} parent=11 // pred_check
          %p215 = pneg %p122
        $region30: #{tpu_custom_call.1} parent=11 // pred_check_branch
          %217 = sbr.rel (%p215) target = $region32
        $region31: #{tpu_custom_call.1} parent=11 // pred_region
          _
        $region32: #{tpu_custom_call.1} parent=11 // pred_fallthru
          _
      $region12: #{tpu_custom_call.1} parent=5 // pred_fallthru
        _
      %p218 = scmp.lt.s32.totalorder %s17, 2
      // Predicated region
      $region33: #{tpu_custom_call.1} parent=5 // pred_check
        %p219 = pneg %p218
      $region34: #{tpu_custom_call.1} parent=5 // pred_check_branch
        %221 = sbr.rel (%p219) target = $region36
      $region35: #{tpu_custom_call.1} parent=5 // pred_region
        _
      $region36: #{tpu_custom_call.1} parent=5 // pred_fallthru
        _
      %p222 = scmp.le.s32.totalorder 1, %s17
      %p223 = scmp.lt.s32.totalorder %s17, 3
      %p224 = pnand %p222, %p223
      %p225 = pneg %p224
      // Predicated region
      $region37: #{tpu_custom_call.1} parent=5 // pred_check
        _
      $region38: #{tpu_custom_call.1} parent=5 // pred_check_branch
        %227 = sbr.rel (%p224) target = $region40
      $region39: #{tpu_custom_call.1} parent=5 // pred_region
        %s228 = ssub.s32 %s17, 1
        // Predicated region
        $region41: #{tpu_custom_call.1} parent=39 // pred_check
          %p229 = pneg %p38
        $region42: #{tpu_custom_call.1} parent=39 // pred_check_branch
          %231 = sbr.rel (%p229) target = $region44
        $region43: #{tpu_custom_call.1} parent=39 // pred_region
          %232 = dma.done [#allocation3], 4608
        $region44: #{tpu_custom_call.1} parent=39 // pred_fallthru
          _
        // Predicated region
        $region45: #{tpu_custom_call.1} parent=39 // pred_check
          %p233 = pneg %p59
        $region46: #{tpu_custom_call.1} parent=39 // pred_check_branch
          %235 = sbr.rel (%p233) target = $region48
        $region47: #{tpu_custom_call.1} parent=39 // pred_region
          %236 = dma.done [#allocation6], 4608
        $region48: #{tpu_custom_call.1} parent=39 // pred_fallthru
          _
        // Predicated region
        $region49: #{tpu_custom_call.1} parent=39 // pred_check
          %p237 = pneg %p80
        $region50: #{tpu_custom_call.1} parent=39 // pred_check_branch
          %239 = sbr.rel (%p237) target = $region52
        $region51: #{tpu_custom_call.1} parent=39 // pred_region
          %240 = dma.done [#allocation6], 4608
        $region52: #{tpu_custom_call.1} parent=39 // pred_fallthru
          _
        // Predicated region
        $region53: #{tpu_custom_call.1} parent=39 // pred_check
          %p241 = pneg %p101
        $region54: #{tpu_custom_call.1} parent=39 // pred_check_branch
          %243 = sbr.rel (%p241) target = $region56
        $region55: #{tpu_custom_call.1} parent=39 // pred_region
          %244 = dma.done [#allocation9], 9216
        $region56: #{tpu_custom_call.1} parent=39 // pred_fallthru
          _
        %p245 = pneg %p38
        %p246 = pneg %p35
        %p247 = pneg %p59
        %p248 = pneg %p56
        %p249 = pneg %p80
        %p250 = pneg %p77
        %p251 = pneg %p101
        %p252 = pneg %p98
        %p253 = pneg %p122
        %p254 = pneg %p119
        %p255 = pneg %p148
        %p256 = pneg %p145
        %s257 = sand.u32 %s135, 1
        %s258 = scalar_lea.sflag [#allocation4], %s257
        %s259 = sand.u32 %s135, 1
        %s260 = smul.addr %s259, 128
        %s261 = scalar_lea.vmem [#allocation10], %s260
        %s262 = smul.u32 16, %s22
        %s264 = smul.u32 %s22, 8
        %s265 = smul.u32 %s22, 128
        %s266 = sshra.s32 %s265, 3
        %s267 = sand.u32 %s265, 7
        %s268 = smul.addr %s266, 4
        %s269 = scalar_lea.vmem [#allocation2], %s268
        %v270 = vld [vmem:[%s269] sm:$0xf]
        %v271 = vld [vmem:[%s269 + $0x4] sm:$0xf]
        %v272 = vld [vmem:[%s269 + $0x8] sm:$0xf]
        %v273 = vld [vmem:[%s269 + $0xc] sm:$0xf]
        %v274 = vld [vmem:[%s269 + $0x10] sm:$0xf]
        %v275 = vld [vmem:[%s269 + $0x14] sm:$0xf]
        %v276 = vld [vmem:[%s269 + $0x18] sm:$0xf]
        %v277 = vld [vmem:[%s269 + $0x1c] sm:$0xf]
        %v278 = vld [vmem:[%s269 + $0x20] sm:$0xf]
        %v279 = vld [vmem:[%s269 + $0x24] sm:$0xf]
        %v280 = vld [vmem:[%s269 + $0x28] sm:$0xf]
        %v281 = vld [vmem:[%s269 + $0x2c] sm:$0xf]
        %v282 = vld [vmem:[%s269 + $0x30] sm:$0xf]
        %v283 = vld [vmem:[%s269 + $0x34] sm:$0xf]
        %v284 = vld [vmem:[%s269 + $0x38] sm:$0xf]
        %v285 = vld [vmem:[%s269 + $0x3c] sm:$0xf]
        %v286 = vld [vmem:[#allocation8] sm:$0xf]
        %v287 = vld [vmem:[#allocation8 + $0x4] sm:$0xf]
        %v288 = vld [vmem:[#allocation8 + $0x8] sm:$0xf]
        %v289 = vld [vmem:[#allocation8 + $0xc] sm:$0xf]
        %v290 = vld [vmem:[#allocation8 + $0x10] sm:$0xf]
        %v291 = vld [vmem:[#allocation8 + $0x14] sm:$0xf]
        %v292 = vld [vmem:[#allocation8 + $0x18] sm:$0xf]
        %v293 = vld [vmem:[#allocation8 + $0x1c] sm:$0xf]
        %v294 = vld [vmem:[#allocation8 + $0x20] sm:$0xf]
        %v295 = vld [vmem:[#allocation8 + $0x24] sm:$0xf]
        %v296 = vld [vmem:[#allocation8 + $0x28] sm:$0xf]
        %v297 = vld [vmem:[#allocation8 + $0x2c] sm:$0xf]
        %v298 = vld [vmem:[#allocation8 + $0x30] sm:$0xf]
        %v299 = vld [vmem:[#allocation8 + $0x34] sm:$0xf]
        %v300 = vld [vmem:[#allocation8 + $0x38] sm:$0xf]
        %v301 = vld [vmem:[#allocation8 + $0x3c] sm:$0xf]
        %s302 = smul.addr %s266, 4
        %s303 = scalar_lea.vmem [#allocation5], %s302
        %v304 = vld [vmem:[%s303] sm:$0xf]
        %v305 = vld [vmem:[%s303 + $0x4] sm:$0xf]
        %v306 = vld [vmem:[%s303 + $0x8] sm:$0xf]
        %v307 = vld [vmem:[%s303 + $0xc] sm:$0xf]
        %v308 = vld [vmem:[%s303 + $0x10] sm:$0xf]
        %v309 = vld [vmem:[%s303 + $0x14] sm:$0xf]
        %v310 = vld [vmem:[%s303 + $0x18] sm:$0xf]
        %v311 = vld [vmem:[%s303 + $0x1c] sm:$0xf]
        %v312 = vld [vmem:[%s303 + $0x20] sm:$0xf]
        %v313 = vld [vmem:[%s303 + $0x24] sm:$0xf]
        %v314 = vld [vmem:[%s303 + $0x28] sm:$0xf]
        %v315 = vld [vmem:[%s303 + $0x2c] sm:$0xf]
        %v316 = vld [vmem:[%s303 + $0x30] sm:$0xf]
        %v317 = vld [vmem:[%s303 + $0x34] sm:$0xf]
        %v318 = vld [vmem:[%s303 + $0x38] sm:$0xf]
        %v319 = vld [vmem:[%s303 + $0x3c] sm:$0xf]
        %s320 = scalar_lea.vmem [#allocation8], 64
        %v321 = vld [vmem:[%s320] sm:$0xf]
        %v322 = vld [vmem:[%s320 + $0x4] sm:$0xf]
        %v323 = vld [vmem:[%s320 + $0x8] sm:$0xf]
        %v324 = vld [vmem:[%s320 + $0xc] sm:$0xf]
        %v325 = vld [vmem:[%s320 + $0x10] sm:$0xf]
        %v326 = vld [vmem:[%s320 + $0x14] sm:$0xf]
        %v327 = vld [vmem:[%s320 + $0x18] sm:$0xf]
        %v328 = vld [vmem:[%s320 + $0x1c] sm:$0xf]
        %v329 = vld [vmem:[%s320 + $0x20] sm:$0xf]
        %v330 = vld [vmem:[%s320 + $0x24] sm:$0xf]
        %v331 = vld [vmem:[%s320 + $0x28] sm:$0xf]
        %v332 = vld [vmem:[%s320 + $0x2c] sm:$0xf]
        %v333 = vld [vmem:[%s320 + $0x30] sm:$0xf]
        %v334 = vld [vmem:[%s320 + $0x34] sm:$0xf]
        %v335 = vld [vmem:[%s320 + $0x38] sm:$0xf]
        %v336 = vld [vmem:[%s320 + $0x3c] sm:$0xf]
        %v353 = vunpack.c.l.b16 %v304
        %v354 = vunpack.c.l.b16 %v305
        %v355 = vunpack.c.l.b16 %v306
        %v356 = vunpack.c.l.b16 %v307
        %v357 = vunpack.c.l.b16 %v308
        %v358 = vunpack.c.l.b16 %v309
        %v359 = vunpack.c.l.b16 %v310
        %v360 = vunpack.c.l.b16 %v311
        %v361 = vunpack.c.l.b16 %v312
        %v362 = vunpack.c.l.b16 %v313
        %v363 = vunpack.c.l.b16 %v314
        %v364 = vunpack.c.l.b16 %v315
        %v365 = vunpack.c.l.b16 %v316
        %v366 = vunpack.c.l.b16 %v317
        %v367 = vunpack.c.l.b16 %v318
        %v368 = vunpack.c.l.b16 %v319
        %v369 = vpack.c.b16 %v354, %v353
        %v370 = vpack.c.b16 %v356, %v355
        %v371 = vpack.c.b16 %v358, %v357
        %v372 = vpack.c.b16 %v360, %v359
        %v373 = vpack.c.b16 %v362, %v361
        %v374 = vpack.c.b16 %v364, %v363
        %v375 = vpack.c.b16 %v366, %v365
        %v376 = vpack.c.b16 %v368, %v367
        %v401 = vunpack.c.l.b16 %v321
        %v402 = vunpack.c.l.b16 %v322
        %v403 = vunpack.c.l.b16 %v323
        %v404 = vunpack.c.l.b16 %v324
        %v405 = vunpack.c.l.b16 %v325
        %v406 = vunpack.c.l.b16 %v326
        %v407 = vunpack.c.l.b16 %v327
        %v408 = vunpack.c.l.b16 %v328
        %v409 = vunpack.c.l.b16 %v329
        %v410 = vunpack.c.l.b16 %v330
        %v411 = vunpack.c.l.b16 %v331
        %v412 = vunpack.c.l.b16 %v332
        %v413 = vunpack.c.l.b16 %v333
        %v414 = vunpack.c.l.b16 %v334
        %v415 = vunpack.c.l.b16 %v335
        %v416 = vunpack.c.l.b16 %v336
        %v417 = vpack.c.b16 %v402, %v401
        %v418 = vpack.c.b16 %v404, %v403
        %v419 = vpack.c.b16 %v406, %v405
        %v420 = vpack.c.b16 %v408, %v407
        %v421 = vpack.c.b16 %v410, %v409
        %v422 = vpack.c.b16 %v412, %v411
        %v423 = vpack.c.b16 %v414, %v413
        %v424 = vpack.c.b16 %v416, %v415
        %433 = vmatprep.subr.bf16.mxu0 0
        %434 = vmatpush1.bf16.msra.mxu0 %v424
        %435 = vmatprep.subr.bf16.mxu0 0
        %436 = vmatpush1.bf16.msra.mxu0 %v423
        %437 = vmatprep.subr.bf16.mxu0 0
        %438 = vmatpush1.bf16.msra.mxu0 %v422
        %439 = vmatprep.subr.bf16.mxu0 0
        %440 = vmatpush1.bf16.msra.mxu0 %v421
        %441 = vmatprep.subr.bf16.mxu0 0
        %442 = vmatpush1.bf16.msra.mxu0 %v420
        %443 = vmatprep.subr.bf16.mxu0 0
        %444 = vmatpush1.bf16.msra.mxu0 %v419
        %445 = vmatprep.subr.bf16.mxu0 0
        %446 = vmatpush1.bf16.msra.mxu0 %v418
        %447 = vmatprep.subr.bf16.mxu0 0
        %448 = vmatpush1.bf16.msra.mxu0 %v417
        %449 = vmatprep.subr.bf16.mxu0 0
        %450 = vmatpush2.bf16.msra.mxu0 0
        %451 = vmatprep.subr.bf16.mxu0 0
        %452 = vmatpush2.bf16.msra.mxu0 0
        %453 = vmatprep.subr.bf16.mxu0 0
        %454 = vmatpush2.bf16.msra.mxu0 0
        %455 = vmatprep.subr.bf16.mxu0 0
        %456 = vmatpush2.bf16.msra.mxu0 0
        %457 = vmatprep.subr.bf16.mxu0 0
        %458 = vmatpush2.bf16.msra.mxu0 0
        %459 = vmatprep.subr.bf16.mxu0 0
        %460 = vmatpush2.bf16.msra.mxu0 0
        %461 = vmatprep.subr.bf16.mxu0 0
        %462 = vmatpush2.bf16.msra.mxu0 0
        %463 = vmatprep.subr.bf16.mxu0 0
        %464 = vmatpush2.bf16.msra.mxu0 0
        %465 = vmatprep.mubr.bf16.mxu0 0
        %466 = vmatmul.mubr.bf16.gmra.mxu0 %v369
        %v467 = vpop.f32.mrf.mxu0
        %v468 = vadd.f32 0.0, %v467
        %v469 = vpop.f32.mrf.mxu0
        %v470 = vpop.f32.mrf.mxu0
        %v471 = vadd.f32 0.0, %v470
        %v472 = vpop.f32.mrf.mxu0
        %473 = vmatprep.mubr.bf16.mxu0 0
        %474 = vmatmul.mubr.bf16.gmra.mxu0 %v370
        %v475 = vpop.f32.mrf.mxu0
        %v476 = vadd.f32 0.0, %v475
        %v477 = vpop.f32.mrf.mxu0
        %v478 = vpop.f32.mrf.mxu0
        %v479 = vadd.f32 0.0, %v478
        %v480 = vpop.f32.mrf.mxu0
        %481 = vmatprep.mubr.bf16.mxu0 0
        %482 = vmatmul.mubr.bf16.gmra.mxu0 %v371
        %v483 = vpop.f32.mrf.mxu0
        %v484 = vadd.f32 0.0, %v483
        %v485 = vpop.f32.mrf.mxu0
        %v486 = vpop.f32.mrf.mxu0
        %v487 = vadd.f32 0.0, %v486
        %v488 = vpop.f32.mrf.mxu0
        %489 = vmatprep.mubr.bf16.mxu0 0
        %490 = vmatmul.mubr.bf16.gmra.mxu0 %v372
        %v491 = vpop.f32.mrf.mxu0
        %v492 = vadd.f32 0.0, %v491
        %v493 = vpop.f32.mrf.mxu0
        %v494 = vpop.f32.mrf.mxu0
        %v495 = vadd.f32 0.0, %v494
        %v496 = vpop.f32.mrf.mxu0
        %497 = vmatprep.mubr.bf16.mxu0 0
        %498 = vmatmul.mubr.bf16.gmra.mxu0 %v373
        %v499 = vpop.f32.mrf.mxu0
        %v500 = vadd.f32 0.0, %v499
        %v501 = vpop.f32.mrf.mxu0
        %v502 = vpop.f32.mrf.mxu0
        %v503 = vadd.f32 0.0, %v502
        %v504 = vpop.f32.mrf.mxu0
        %505 = vmatprep.mubr.bf16.mxu0 0
        %506 = vmatmul.mubr.bf16.gmra.mxu0 %v374
        %v507 = vpop.f32.mrf.mxu0
        %v508 = vadd.f32 0.0, %v507
        %v509 = vpop.f32.mrf.mxu0
        %v510 = vpop.f32.mrf.mxu0
        %v511 = vadd.f32 0.0, %v510
        %v512 = vpop.f32.mrf.mxu0
        %513 = vmatprep.mubr.bf16.mxu0 0
        %514 = vmatmul.mubr.bf16.gmra.mxu0 %v375
        %v515 = vpop.f32.mrf.mxu0
        %v516 = vadd.f32 0.0, %v515
        %v517 = vpop.f32.mrf.mxu0
        %v518 = vpop.f32.mrf.mxu0
        %v519 = vadd.f32 0.0, %v518
        %v520 = vpop.f32.mrf.mxu0
        %521 = vmatprep.mubr.bf16.mxu0 0
        %522 = vmatmul.mubr.bf16.gmra.mxu0 %v376
        %v523 = vpop.f32.mrf.mxu0
        %v524 = vadd.f32 0.0, %v523
        %v525 = vpop.f32.mrf.mxu0
        %v526 = vpop.f32.mrf.mxu0
        %v527 = vadd.f32 0.0, %v526
        %v528 = vpop.f32.mrf.mxu0
        %529 = vdwg.mxu0
        %v546 = vunpack.c.l.b16 %v270
        %v547 = vunpack.c.l.b16 %v271
        %v548 = vunpack.c.l.b16 %v272
        %v549 = vunpack.c.l.b16 %v273
        %v550 = vunpack.c.l.b16 %v274
        %v551 = vunpack.c.l.b16 %v275
        %v552 = vunpack.c.l.b16 %v276
        %v553 = vunpack.c.l.b16 %v277
        %v554 = vunpack.c.l.b16 %v278
        %v555 = vunpack.c.l.b16 %v279
        %v556 = vunpack.c.l.b16 %v280
        %v557 = vunpack.c.l.b16 %v281
        %v558 = vunpack.c.l.b16 %v282
        %v559 = vunpack.c.l.b16 %v283
        %v560 = vunpack.c.l.b16 %v284
        %v561 = vunpack.c.l.b16 %v285
        %v562 = vpack.c.b16 %v547, %v546
        %v563 = vpack.c.b16 %v549, %v548
        %v564 = vpack.c.b16 %v551, %v550
        %v565 = vpack.c.b16 %v553, %v552
        %v566 = vpack.c.b16 %v555, %v554
        %v567 = vpack.c.b16 %v557, %v556
        %v568 = vpack.c.b16 %v559, %v558
        %v569 = vpack.c.b16 %v561, %v560
        %v594 = vunpack.c.l.b16 %v286
        %v595 = vunpack.c.l.b16 %v287
        %v596 = vunpack.c.l.b16 %v288
        %v597 = vunpack.c.l.b16 %v289
        %v598 = vunpack.c.l.b16 %v290
        %v599 = vunpack.c.l.b16 %v291
        %v600 = vunpack.c.l.b16 %v292
        %v601 = vunpack.c.l.b16 %v293
        %v602 = vunpack.c.l.b16 %v294
        %v603 = vunpack.c.l.b16 %v295
        %v604 = vunpack.c.l.b16 %v296
        %v605 = vunpack.c.l.b16 %v297
        %v606 = vunpack.c.l.b16 %v298
        %v607 = vunpack.c.l.b16 %v299
        %v608 = vunpack.c.l.b16 %v300
        %v609 = vunpack.c.l.b16 %v301
        %v610 = vpack.c.b16 %v595, %v594
        %v611 = vpack.c.b16 %v597, %v596
        %v612 = vpack.c.b16 %v599, %v598
        %v613 = vpack.c.b16 %v601, %v600
        %v614 = vpack.c.b16 %v603, %v602
        %v615 = vpack.c.b16 %v605, %v604
        %v616 = vpack.c.b16 %v607, %v606
        %v617 = vpack.c.b16 %v609, %v608
        %626 = vmatprep.subr.bf16.mxu0 0
        %627 = vmatpush1.bf16.msra.mxu0 %v617
        %628 = vmatprep.subr.bf16.mxu0 0
        %629 = vmatpush1.bf16.msra.mxu0 %v616
        %630 = vmatprep.subr.bf16.mxu0 0
        %631 = vmatpush1.bf16.msra.mxu0 %v615
        %632 = vmatprep.subr.bf16.mxu0 0
        %633 = vmatpush1.bf16.msra.mxu0 %v614
        %634 = vmatprep.subr.bf16.mxu0 0
        %635 = vmatpush1.bf16.msra.mxu0 %v613
        %636 = vmatprep.subr.bf16.mxu0 0
        %637 = vmatpush1.bf16.msra.mxu0 %v612
        %638 = vmatprep.subr.bf16.mxu0 0
        %639 = vmatpush1.bf16.msra.mxu0 %v611
        %640 = vmatprep.subr.bf16.mxu0 0
        %641 = vmatpush1.bf16.msra.mxu0 %v610
        %642 = vmatprep.subr.bf16.mxu0 0
        %643 = vmatpush2.bf16.msra.mxu0 0
        %644 = vmatprep.subr.bf16.mxu0 0
        %645 = vmatpush2.bf16.msra.mxu0 0
        %646 = vmatprep.subr.bf16.mxu0 0
        %647 = vmatpush2.bf16.msra.mxu0 0
        %648 = vmatprep.subr.bf16.mxu0 0
        %649 = vmatpush2.bf16.msra.mxu0 0
        %650 = vmatprep.subr.bf16.mxu0 0
        %651 = vmatpush2.bf16.msra.mxu0 0
        %652 = vmatprep.subr.bf16.mxu0 0
        %653 = vmatpush2.bf16.msra.mxu0 0
        %654 = vmatprep.subr.bf16.mxu0 0
        %655 = vmatpush2.bf16.msra.mxu0 0
        %656 = vmatprep.subr.bf16.mxu0 0
        %657 = vmatpush2.bf16.msra.mxu0 0
        %658 = vmatprep.mubr.bf16.mxu0 0
        %659 = vmatmul.mubr.bf16.gmra.mxu0 %v562
        %v660 = vpop.f32.mrf.mxu0
        %v661 = vadd.f32 %v468, %v660
        %v662 = vpop.f32.mrf.mxu0
        %v663 = vpop.f32.mrf.mxu0
        %v664 = vadd.f32 %v471, %v663
        %v665 = vpop.f32.mrf.mxu0
        %666 = vmatprep.mubr.bf16.mxu0 0
        %667 = vmatmul.mubr.bf16.gmra.mxu0 %v563
        %v668 = vpop.f32.mrf.mxu0
        %v669 = vadd.f32 %v476, %v668
        %v670 = vpop.f32.mrf.mxu0
        %v671 = vpop.f32.mrf.mxu0
        %v672 = vadd.f32 %v479, %v671
        %v673 = vpop.f32.mrf.mxu0
        %674 = vmatprep.mubr.bf16.mxu0 0
        %675 = vmatmul.mubr.bf16.gmra.mxu0 %v564
        %v676 = vpop.f32.mrf.mxu0
        %v677 = vadd.f32 %v484, %v676
        %v678 = vpop.f32.mrf.mxu0
        %v679 = vpop.f32.mrf.mxu0
        %v680 = vadd.f32 %v487, %v679
        %v681 = vpop.f32.mrf.mxu0
        %682 = vmatprep.mubr.bf16.mxu0 0
        %683 = vmatmul.mubr.bf16.gmra.mxu0 %v565
        %v684 = vpop.f32.mrf.mxu0
        %v685 = vadd.f32 %v492, %v684
        %v686 = vpop.f32.mrf.mxu0
        %v687 = vpop.f32.mrf.mxu0
        %v688 = vadd.f32 %v495, %v687
        %v689 = vpop.f32.mrf.mxu0
        %690 = vmatprep.mubr.bf16.mxu0 0
        %691 = vmatmul.mubr.bf16.gmra.mxu0 %v566
        %v692 = vpop.f32.mrf.mxu0
        %v693 = vadd.f32 %v500, %v692
        %v694 = vpop.f32.mrf.mxu0
        %v695 = vpop.f32.mrf.mxu0
        %v696 = vadd.f32 %v503, %v695
        %v697 = vpop.f32.mrf.mxu0
        %698 = vmatprep.mubr.bf16.mxu0 0
        %699 = vmatmul.mubr.bf16.gmra.mxu0 %v567
        %v700 = vpop.f32.mrf.mxu0
        %v701 = vadd.f32 %v508, %v700
        %v702 = vpop.f32.mrf.mxu0
        %v703 = vpop.f32.mrf.mxu0
        %v704 = vadd.f32 %v511, %v703
        %v705 = vpop.f32.mrf.mxu0
        %706 = vmatprep.mubr.bf16.mxu0 0
        %707 = vmatmul.mubr.bf16.gmra.mxu0 %v568
        %v708 = vpop.f32.mrf.mxu0
        %v709 = vadd.f32 %v516, %v708
        %v710 = vpop.f32.mrf.mxu0
        %v711 = vpop.f32.mrf.mxu0
        %v712 = vadd.f32 %v519, %v711
        %v713 = vpop.f32.mrf.mxu0
        %714 = vmatprep.mubr.bf16.mxu0 0
        %715 = vmatmul.mubr.bf16.gmra.mxu0 %v569
        %v716 = vpop.f32.mrf.mxu0
        %v717 = vadd.f32 %v524, %v716
        %v718 = vpop.f32.mrf.mxu0
        %v719 = vpop.f32.mrf.mxu0
        %v720 = vadd.f32 %v527, %v719
        %v721 = vpop.f32.mrf.mxu0
        %722 = vdwg.mxu0
        %s723 = smul.addr %s266, 4
        %s724 = scalar_lea.vmem [#allocation7], %s723
        %v725 = vld [vmem:[%s724] sm:$0xf]
        %v726 = vld [vmem:[%s724 + $0x4] sm:$0xf]
        %v727 = vld [vmem:[%s724 + $0x8] sm:$0xf]
        %v728 = vld [vmem:[%s724 + $0xc] sm:$0xf]
        %v729 = vld [vmem:[%s724 + $0x10] sm:$0xf]
        %v730 = vld [vmem:[%s724 + $0x14] sm:$0xf]
        %v731 = vld [vmem:[%s724 + $0x18] sm:$0xf]
        %v732 = vld [vmem:[%s724 + $0x1c] sm:$0xf]
        %v733 = vld [vmem:[%s724 + $0x20] sm:$0xf]
        %v734 = vld [vmem:[%s724 + $0x24] sm:$0xf]
        %v735 = vld [vmem:[%s724 + $0x28] sm:$0xf]
        %v736 = vld [vmem:[%s724 + $0x2c] sm:$0xf]
        %v737 = vld [vmem:[%s724 + $0x30] sm:$0xf]
        %v738 = vld [vmem:[%s724 + $0x34] sm:$0xf]
        %v739 = vld [vmem:[%s724 + $0x38] sm:$0xf]
        %v740 = vld [vmem:[%s724 + $0x3c] sm:$0xf]
        %s741 = scalar_lea.vmem [#allocation8], 128
        %v742 = vld [vmem:[%s741] sm:$0xf]
        %v743 = vld [vmem:[%s741 + $0x4] sm:$0xf]
        %v744 = vld [vmem:[%s741 + $0x8] sm:$0xf]
        %v745 = vld [vmem:[%s741 + $0xc] sm:$0xf]
        %v746 = vld [vmem:[%s741 + $0x10] sm:$0xf]
        %v747 = vld [vmem:[%s741 + $0x14] sm:$0xf]
        %v748 = vld [vmem:[%s741 + $0x18] sm:$0xf]
        %v749 = vld [vmem:[%s741 + $0x1c] sm:$0xf]
        %v750 = vld [vmem:[%s741 + $0x20] sm:$0xf]
        %v751 = vld [vmem:[%s741 + $0x24] sm:$0xf]
        %v752 = vld [vmem:[%s741 + $0x28] sm:$0xf]
        %v753 = vld [vmem:[%s741 + $0x2c] sm:$0xf]
        %v754 = vld [vmem:[%s741 + $0x30] sm:$0xf]
        %v755 = vld [vmem:[%s741 + $0x34] sm:$0xf]
        %v756 = vld [vmem:[%s741 + $0x38] sm:$0xf]
        %v757 = vld [vmem:[%s741 + $0x3c] sm:$0xf]
        %v774 = vunpack.c.l.b16 %v725
        %v775 = vunpack.c.l.b16 %v726
        %v776 = vunpack.c.l.b16 %v727
        %v777 = vunpack.c.l.b16 %v728
        %v778 = vunpack.c.l.b16 %v729
        %v779 = vunpack.c.l.b16 %v730
        %v780 = vunpack.c.l.b16 %v731
        %v781 = vunpack.c.l.b16 %v732
        %v782 = vunpack.c.l.b16 %v733
        %v783 = vunpack.c.l.b16 %v734
        %v784 = vunpack.c.l.b16 %v735
        %v785 = vunpack.c.l.b16 %v736
        %v786 = vunpack.c.l.b16 %v737
        %v787 = vunpack.c.l.b16 %v738
        %v788 = vunpack.c.l.b16 %v739
        %v789 = vunpack.c.l.b16 %v740
        %v790 = vpack.c.b16 %v775, %v774
        %v791 = vpack.c.b16 %v777, %v776
        %v792 = vpack.c.b16 %v779, %v778
        %v793 = vpack.c.b16 %v781, %v780
        %v794 = vpack.c.b16 %v783, %v782
        %v795 = vpack.c.b16 %v785, %v784
        %v796 = vpack.c.b16 %v787, %v786
        %v797 = vpack.c.b16 %v789, %v788
        %v822 = vunpack.c.l.b16 %v742
        %v823 = vunpack.c.l.b16 %v743
        %v824 = vunpack.c.l.b16 %v744
        %v825 = vunpack.c.l.b16 %v745
        %v826 = vunpack.c.l.b16 %v746
        %v827 = vunpack.c.l.b16 %v747
        %v828 = vunpack.c.l.b16 %v748
        %v829 = vunpack.c.l.b16 %v749
        %v830 = vunpack.c.l.b16 %v750
        %v831 = vunpack.c.l.b16 %v751
        %v832 = vunpack.c.l.b16 %v752
        %v833 = vunpack.c.l.b16 %v753
        %v834 = vunpack.c.l.b16 %v754
        %v835 = vunpack.c.l.b16 %v755
        %v836 = vunpack.c.l.b16 %v756
        %v837 = vunpack.c.l.b16 %v757
        %v838 = vpack.c.b16 %v823, %v822
        %v839 = vpack.c.b16 %v825, %v824
        %v840 = vpack.c.b16 %v827, %v826
        %v841 = vpack.c.b16 %v829, %v828
        %v842 = vpack.c.b16 %v831, %v830
        %v843 = vpack.c.b16 %v833, %v832
        %v844 = vpack.c.b16 %v835, %v834
        %v845 = vpack.c.b16 %v837, %v836
        %854 = vmatprep.subr.bf16.mxu0 0
        %855 = vmatpush1.bf16.msra.mxu0 %v845
        %856 = vmatprep.subr.bf16.mxu0 0
        %857 = vmatpush1.bf16.msra.mxu0 %v844
        %858 = vmatprep.subr.bf16.mxu0 0
        %859 = vmatpush1.bf16.msra.mxu0 %v843
        %860 = vmatprep.subr.bf16.mxu0 0
        %861 = vmatpush1.bf16.msra.mxu0 %v842
        %862 = vmatprep.subr.bf16.mxu0 0
        %863 = vmatpush1.bf16.msra.mxu0 %v841
        %864 = vmatprep.subr.bf16.mxu0 0
        %865 = vmatpush1.bf16.msra.mxu0 %v840
        %866 = vmatprep.subr.bf16.mxu0 0
        %867 = vmatpush1.bf16.msra.mxu0 %v839
        %868 = vmatprep.subr.bf16.mxu0 0
        %869 = vmatpush1.bf16.msra.mxu0 %v838
        %870 = vmatprep.subr.bf16.mxu0 0
        %871 = vmatpush2.bf16.msra.mxu0 0
        %872 = vmatprep.subr.bf16.mxu0 0
        %873 = vmatpush2.bf16.msra.mxu0 0
        %874 = vmatprep.subr.bf16.mxu0 0
        %875 = vmatpush2.bf16.msra.mxu0 0
        %876 = vmatprep.subr.bf16.mxu0 0
        %877 = vmatpush2.bf16.msra.mxu0 0
        %878 = vmatprep.subr.bf16.mxu0 0
        %879 = vmatpush2.bf16.msra.mxu0 0
        %880 = vmatprep.subr.bf16.mxu0 0
        %881 = vmatpush2.bf16.msra.mxu0 0
        %882 = vmatprep.subr.bf16.mxu0 0
        %883 = vmatpush2.bf16.msra.mxu0 0
        %884 = vmatprep.subr.bf16.mxu0 0
        %885 = vmatpush2.bf16.msra.mxu0 0
        %886 = vmatprep.mubr.bf16.mxu0 0
        %887 = vmatmul.mubr.bf16.gmra.mxu0 %v790
        %v888 = vpop.f32.mrf.mxu0
        %v889 = vadd.f32 0.0, %v888
        %v890 = vpop.f32.mrf.mxu0
        %v891 = vpop.f32.mrf.mxu0
        %v892 = vadd.f32 0.0, %v891
        %v893 = vpop.f32.mrf.mxu0
        %894 = vmatprep.mubr.bf16.mxu0 0
        %895 = vmatmul.mubr.bf16.gmra.mxu0 %v791
        %v896 = vpop.f32.mrf.mxu0
        %v897 = vadd.f32 0.0, %v896
        %v898 = vpop.f32.mrf.mxu0
        %v899 = vpop.f32.mrf.mxu0
        %v900 = vadd.f32 0.0, %v899
        %v901 = vpop.f32.mrf.mxu0
        %902 = vmatprep.mubr.bf16.mxu0 0
        %903 = vmatmul.mubr.bf16.gmra.mxu0 %v792
        %v904 = vpop.f32.mrf.mxu0
        %v905 = vadd.f32 0.0, %v904
        %v906 = vpop.f32.mrf.mxu0
        %v907 = vpop.f32.mrf.mxu0
        %v908 = vadd.f32 0.0, %v907
        %v909 = vpop.f32.mrf.mxu0
        %910 = vmatprep.mubr.bf16.mxu0 0
        %911 = vmatmul.mubr.bf16.gmra.mxu0 %v793
        %v912 = vpop.f32.mrf.mxu0
        %v913 = vadd.f32 0.0, %v912
        %v914 = vpop.f32.mrf.mxu0
        %v915 = vpop.f32.mrf.mxu0
        %v916 = vadd.f32 0.0, %v915
        %v917 = vpop.f32.mrf.mxu0
        %918 = vmatprep.mubr.bf16.mxu0 0
        %919 = vmatmul.mubr.bf16.gmra.mxu0 %v794
        %v920 = vpop.f32.mrf.mxu0
        %v921 = vadd.f32 0.0, %v920
        %v922 = vpop.f32.mrf.mxu0
        %v923 = vpop.f32.mrf.mxu0
        %v924 = vadd.f32 0.0, %v923
        %v925 = vpop.f32.mrf.mxu0
        %926 = vmatprep.mubr.bf16.mxu0 0
        %927 = vmatmul.mubr.bf16.gmra.mxu0 %v795
        %v928 = vpop.f32.mrf.mxu0
        %v929 = vadd.f32 0.0, %v928
        %v930 = vpop.f32.mrf.mxu0
        %v931 = vpop.f32.mrf.mxu0
        %v932 = vadd.f32 0.0, %v931
        %v933 = vpop.f32.mrf.mxu0
        %934 = vmatprep.mubr.bf16.mxu0 0
        %935 = vmatmul.mubr.bf16.gmra.mxu0 %v796
        %v936 = vpop.f32.mrf.mxu0
        %v937 = vadd.f32 0.0, %v936
        %v938 = vpop.f32.mrf.mxu0
        %v939 = vpop.f32.mrf.mxu0
        %v940 = vadd.f32 0.0, %v939
        %v941 = vpop.f32.mrf.mxu0
        %942 = vmatprep.mubr.bf16.mxu0 0
        %943 = vmatmul.mubr.bf16.gmra.mxu0 %v797
        %v944 = vpop.f32.mrf.mxu0
        %v945 = vadd.f32 0.0, %v944
        %v946 = vpop.f32.mrf.mxu0
        %v947 = vpop.f32.mrf.mxu0
        %v948 = vadd.f32 0.0, %v947
        %v949 = vpop.f32.mrf.mxu0
        %950 = vdwg.mxu0
        %v951 = vadd.f32 %v661, %v889
        %v952 = vadd.f32 %v664, %v892
        %v953 = vadd.f32 %v669, %v897
        %v954 = vadd.f32 %v672, %v900
        %v955 = vadd.f32 %v677, %v905
        %v956 = vadd.f32 %v680, %v908
        %v957 = vadd.f32 %v685, %v913
        %v958 = vadd.f32 %v688, %v916
        %v959 = vadd.f32 %v693, %v921
        %v960 = vadd.f32 %v696, %v924
        %v961 = vadd.f32 %v701, %v929
        %v962 = vadd.f32 %v704, %v932
        %v963 = vadd.f32 %v709, %v937
        %v964 = vadd.f32 %v712, %v940
        %v965 = vadd.f32 %v717, %v945
        %v966 = vadd.f32 %v720, %v948
        %s967 = sadd.s32 %s264, 1
        %s968 = smul.u32 %s967, 16
        %s969 = sshra.s32 %s968, 3
        %s970 = sand.u32 %s968, 7
        %s971 = smul.addr %s969, 4
        %s972 = scalar_lea.vmem [#allocation2], %s971
        %v973 = vld [vmem:[%s972] sm:$0xf]
        %v974 = vld [vmem:[%s972 + $0x4] sm:$0xf]
        %v975 = vld [vmem:[%s972 + $0x8] sm:$0xf]
        %v976 = vld [vmem:[%s972 + $0xc] sm:$0xf]
        %v977 = vld [vmem:[%s972 + $0x10] sm:$0xf]
        %v978 = vld [vmem:[%s972 + $0x14] sm:$0xf]
        %v979 = vld [vmem:[%s972 + $0x18] sm:$0xf]
        %v980 = vld [vmem:[%s972 + $0x1c] sm:$0xf]
        %v981 = vld [vmem:[%s972 + $0x20] sm:$0xf]
        %v982 = vld [vmem:[%s972 + $0x24] sm:$0xf]
        %v983 = vld [vmem:[%s972 + $0x28] sm:$0xf]
        %v984 = vld [vmem:[%s972 + $0x2c] sm:$0xf]
        %v985 = vld [vmem:[%s972 + $0x30] sm:$0xf]
        %v986 = vld [vmem:[%s972 + $0x34] sm:$0xf]
        %v987 = vld [vmem:[%s972 + $0x38] sm:$0xf]
        %v988 = vld [vmem:[%s972 + $0x3c] sm:$0xf]
        %s989 = scalar_lea.vmem [#allocation8], 192
        %v990 = vld [vmem:[%s989] sm:$0xf]
        %v991 = vld [vmem:[%s989 + $0x4] sm:$0xf]
        %v992 = vld [vmem:[%s989 + $0x8] sm:$0xf]
        %v993 = vld [vmem:[%s989 + $0xc] sm:$0xf]
        %v994 = vld [vmem:[%s989 + $0x10] sm:$0xf]
        %v995 = vld [vmem:[%s989 + $0x14] sm:$0xf]
        %v996 = vld [vmem:[%s989 + $0x18] sm:$0xf]
        %v997 = vld [vmem:[%s989 + $0x1c] sm:$0xf]
        %v998 = vld [vmem:[%s989 + $0x20] sm:$0xf]
        %v999 = vld [vmem:[%s989 + $0x24] sm:$0xf]
        %v1000 = vld [vmem:[%s989 + $0x28] sm:$0xf]
        %v1001 = vld [vmem:[%s989 + $0x2c] sm:$0xf]
        %v1002 = vld [vmem:[%s989 + $0x30] sm:$0xf]
        %v1003 = vld [vmem:[%s989 + $0x34] sm:$0xf]
        %v1004 = vld [vmem:[%s989 + $0x38] sm:$0xf]
        %v1005 = vld [vmem:[%s989 + $0x3c] sm:$0xf]
        %v1022 = vunpack.c.l.b16 %v973
        %v1023 = vunpack.c.l.b16 %v974
        %v1024 = vunpack.c.l.b16 %v975
        %v1025 = vunpack.c.l.b16 %v976
        %v1026 = vunpack.c.l.b16 %v977
        %v1027 = vunpack.c.l.b16 %v978
        %v1028 = vunpack.c.l.b16 %v979
        %v1029 = vunpack.c.l.b16 %v980
        %v1030 = vunpack.c.l.b16 %v981
        %v1031 = vunpack.c.l.b16 %v982
        %v1032 = vunpack.c.l.b16 %v983
        %v1033 = vunpack.c.l.b16 %v984
        %v1034 = vunpack.c.l.b16 %v985
        %v1035 = vunpack.c.l.b16 %v986
        %v1036 = vunpack.c.l.b16 %v987
        %v1037 = vunpack.c.l.b16 %v988
        %v1038 = vpack.c.b16 %v1023, %v1022
        %v1039 = vpack.c.b16 %v1025, %v1024
        %v1040 = vpack.c.b16 %v1027, %v1026
        %v1041 = vpack.c.b16 %v1029, %v1028
        %v1042 = vpack.c.b16 %v1031, %v1030
        %v1043 = vpack.c.b16 %v1033, %v1032
        %v1044 = vpack.c.b16 %v1035, %v1034
        %v1045 = vpack.c.b16 %v1037, %v1036
        %v1070 = vunpack.c.l.b16 %v990
        %v1071 = vunpack.c.l.b16 %v991
        %v1072 = vunpack.c.l.b16 %v992
        %v1073 = vunpack.c.l.b16 %v993
        %v1074 = vunpack.c.l.b16 %v994
        %v1075 = vunpack.c.l.b16 %v995
        %v1076 = vunpack.c.l.b16 %v996
        %v1077 = vunpack.c.l.b16 %v997
        %v1078 = vunpack.c.l.b16 %v998
        %v1079 = vunpack.c.l.b16 %v999
        %v1080 = vunpack.c.l.b16 %v1000
        %v1081 = vunpack.c.l.b16 %v1001
        %v1082 = vunpack.c.l.b16 %v1002
        %v1083 = vunpack.c.l.b16 %v1003
        %v1084 = vunpack.c.l.b16 %v1004
        %v1085 = vunpack.c.l.b16 %v1005
        %v1086 = vpack.c.b16 %v1071, %v1070
        %v1087 = vpack.c.b16 %v1073, %v1072
        %v1088 = vpack.c.b16 %v1075, %v1074
        %v1089 = vpack.c.b16 %v1077, %v1076
        %v1090 = vpack.c.b16 %v1079, %v1078
        %v1091 = vpack.c.b16 %v1081, %v1080
        %v1092 = vpack.c.b16 %v1083, %v1082
        %v1093 = vpack.c.b16 %v1085, %v1084
        %1102 = vmatprep.subr.bf16.mxu0 0
        %1103 = vmatpush1.bf16.msra.mxu0 %v1093
        %1104 = vmatprep.subr.bf16.mxu0 0
        %1105 = vmatpush1.bf16.msra.mxu0 %v1092
        %1106 = vmatprep.subr.bf16.mxu0 0
        %1107 = vmatpush1.bf16.msra.mxu0 %v1091
        %1108 = vmatprep.subr.bf16.mxu0 0
        %1109 = vmatpush1.bf16.msra.mxu0 %v1090
        %1110 = vmatprep.subr.bf16.mxu0 0
        %1111 = vmatpush1.bf16.msra.mxu0 %v1089
        %1112 = vmatprep.subr.bf16.mxu0 0
        %1113 = vmatpush1.bf16.msra.mxu0 %v1088
        %1114 = vmatprep.subr.bf16.mxu0 0
        %1115 = vmatpush1.bf16.msra.mxu0 %v1087
        %1116 = vmatprep.subr.bf16.mxu0 0
        %1117 = vmatpush1.bf16.msra.mxu0 %v1086
        %1118 = vmatprep.subr.bf16.mxu0 0
        %1119 = vmatpush2.bf16.msra.mxu0 0
        %1120 = vmatprep.subr.bf16.mxu0 0
        %1121 = vmatpush2.bf16.msra.mxu0 0
        %1122 = vmatprep.subr.bf16.mxu0 0
        %1123 = vmatpush2.bf16.msra.mxu0 0
        %1124 = vmatprep.subr.bf16.mxu0 0
        %1125 = vmatpush2.bf16.msra.mxu0 0
        %1126 = vmatprep.subr.bf16.mxu0 0
        %1127 = vmatpush2.bf16.msra.mxu0 0
        %1128 = vmatprep.subr.bf16.mxu0 0
        %1129 = vmatpush2.bf16.msra.mxu0 0
        %1130 = vmatprep.subr.bf16.mxu0 0
        %1131 = vmatpush2.bf16.msra.mxu0 0
        %1132 = vmatprep.subr.bf16.mxu0 0
        %1133 = vmatpush2.bf16.msra.mxu0 0
        %1134 = vmatprep.mubr.bf16.mxu0 0
        %1135 = vmatmul.mubr.bf16.gmra.mxu0 %v1038
        %v1136 = vpop.f32.mrf.mxu0
        %v1137 = vadd.f32 0.0, %v1136
        %v1138 = vpop.f32.mrf.mxu0
        %v1139 = vpop.f32.mrf.mxu0
        %v1140 = vadd.f32 0.0, %v1139
        %v1141 = vpop.f32.mrf.mxu0
        %1142 = vmatprep.mubr.bf16.mxu0 0
        %1143 = vmatmul.mubr.bf16.gmra.mxu0 %v1039
        %v1144 = vpop.f32.mrf.mxu0
        %v1145 = vadd.f32 0.0, %v1144
        %v1146 = vpop.f32.mrf.mxu0
        %v1147 = vpop.f32.mrf.mxu0
        %v1148 = vadd.f32 0.0, %v1147
        %v1149 = vpop.f32.mrf.mxu0
        %1150 = vmatprep.mubr.bf16.mxu0 0
        %1151 = vmatmul.mubr.bf16.gmra.mxu0 %v1040
        %v1152 = vpop.f32.mrf.mxu0
        %v1153 = vadd.f32 0.0, %v1152
        %v1154 = vpop.f32.mrf.mxu0
        %v1155 = vpop.f32.mrf.mxu0
        %v1156 = vadd.f32 0.0, %v1155
        %v1157 = vpop.f32.mrf.mxu0
        %1158 = vmatprep.mubr.bf16.mxu0 0
        %1159 = vmatmul.mubr.bf16.gmra.mxu0 %v1041
        %v1160 = vpop.f32.mrf.mxu0
        %v1161 = vadd.f32 0.0, %v1160
        %v1162 = vpop.f32.mrf.mxu0
        %v1163 = vpop.f32.mrf.mxu0
        %v1164 = vadd.f32 0.0, %v1163
        %v1165 = vpop.f32.mrf.mxu0
        %1166 = vmatprep.mubr.bf16.mxu0 0
        %1167 = vmatmul.mubr.bf16.gmra.mxu0 %v1042
        %v1168 = vpop.f32.mrf.mxu0
        %v1169 = vadd.f32 0.0, %v1168
        %v1170 = vpop.f32.mrf.mxu0
        %v1171 = vpop.f32.mrf.mxu0
        %v1172 = vadd.f32 0.0, %v1171
        %v1173 = vpop.f32.mrf.mxu0
        %1174 = vmatprep.mubr.bf16.mxu0 0
        %1175 = vmatmul.mubr.bf16.gmra.mxu0 %v1043
        %v1176 = vpop.f32.mrf.mxu0
        %v1177 = vadd.f32 0.0, %v1176
        %v1178 = vpop.f32.mrf.mxu0
        %v1179 = vpop.f32.mrf.mxu0
        %v1180 = vadd.f32 0.0, %v1179
        %v1181 = vpop.f32.mrf.mxu0
        %1182 = vmatprep.mubr.bf16.mxu0 0
        %1183 = vmatmul.mubr.bf16.gmra.mxu0 %v1044
        %v1184 = vpop.f32.mrf.mxu0
        %v1185 = vadd.f32 0.0, %v1184
        %v1186 = vpop.f32.mrf.mxu0
        %v1187 = vpop.f32.mrf.mxu0
        %v1188 = vadd.f32 0.0, %v1187
        %v1189 = vpop.f32.mrf.mxu0
        %1190 = vmatprep.mubr.bf16.mxu0 0
        %1191 = vmatmul.mubr.bf16.gmra.mxu0 %v1045
        %v1192 = vpop.f32.mrf.mxu0
        %v1193 = vadd.f32 0.0, %v1192
        %v1194 = vpop.f32.mrf.mxu0
        %v1195 = vpop.f32.mrf.mxu0
        %v1196 = vadd.f32 0.0, %v1195
        %v1197 = vpop.f32.mrf.mxu0
        %1198 = vdwg.mxu0
        %v1199 = vadd.f32 %v951, %v1137
        %v1200 = vadd.f32 %v952, %v1140
        %v1201 = vadd.f32 %v953, %v1145
        %v1202 = vadd.f32 %v954, %v1148
        %v1203 = vadd.f32 %v955, %v1153
        %v1204 = vadd.f32 %v956, %v1156
        %v1205 = vadd.f32 %v957, %v1161
        %v1206 = vadd.f32 %v958, %v1164
        %v1207 = vadd.f32 %v959, %v1169
        %v1208 = vadd.f32 %v960, %v1172
        %v1209 = vadd.f32 %v961, %v1177
        %v1210 = vadd.f32 %v962, %v1180
        %v1211 = vadd.f32 %v963, %v1185
        %v1212 = vadd.f32 %v964, %v1188
        %v1213 = vadd.f32 %v965, %v1193
        %v1214 = vadd.f32 %v966, %v1196
        %s1215 = smul.addr %s969, 4
        %s1216 = scalar_lea.vmem [#allocation5], %s1215
        %v1217 = vld [vmem:[%s1216] sm:$0xf]
        %v1218 = vld [vmem:[%s1216 + $0x4] sm:$0xf]
        %v1219 = vld [vmem:[%s1216 + $0x8] sm:$0xf]
        %v1220 = vld [vmem:[%s1216 + $0xc] sm:$0xf]
        %v1221 = vld [vmem:[%s1216 + $0x10] sm:$0xf]
        %v1222 = vld [vmem:[%s1216 + $0x14] sm:$0xf]
        %v1223 = vld [vmem:[%s1216 + $0x18] sm:$0xf]
        %v1224 = vld [vmem:[%s1216 + $0x1c] sm:$0xf]
        %v1225 = vld [vmem:[%s1216 + $0x20] sm:$0xf]
        %v1226 = vld [vmem:[%s1216 + $0x24] sm:$0xf]
        %v1227 = vld [vmem:[%s1216 + $0x28] sm:$0xf]
        %v1228 = vld [vmem:[%s1216 + $0x2c] sm:$0xf]
        %v1229 = vld [vmem:[%s1216 + $0x30] sm:$0xf]
        %v1230 = vld [vmem:[%s1216 + $0x34] sm:$0xf]
        %v1231 = vld [vmem:[%s1216 + $0x38] sm:$0xf]
        %v1232 = vld [vmem:[%s1216 + $0x3c] sm:$0xf]
        %s1233 = scalar_lea.vmem [#allocation8], 256
        %v1234 = vld [vmem:[%s1233] sm:$0xf]
        %v1235 = vld [vmem:[%s1233 + $0x4] sm:$0xf]
        %v1236 = vld [vmem:[%s1233 + $0x8] sm:$0xf]
        %v1237 = vld [vmem:[%s1233 + $0xc] sm:$0xf]
        %v1238 = vld [vmem:[%s1233 + $0x10] sm:$0xf]
        %v1239 = vld [vmem:[%s1233 + $0x14] sm:$0xf]
        %v1240 = vld [vmem:[%s1233 + $0x18] sm:$0xf]
        %v1241 = vld [vmem:[%s1233 + $0x1c] sm:$0xf]
        %v1242 = vld [vmem:[%s1233 + $0x20] sm:$0xf]
        %v1243 = vld [vmem:[%s1233 + $0x24] sm:$0xf]
        %v1244 = vld [vmem:[%s1233 + $0x28] sm:$0xf]
        %v1245 = vld [vmem:[%s1233 + $0x2c] sm:$0xf]
        %v1246 = vld [vmem:[%s1233 + $0x30] sm:$0xf]
        %v1247 = vld [vmem:[%s1233 + $0x34] sm:$0xf]
        %v1248 = vld [vmem:[%s1233 + $0x38] sm:$0xf]
        %v1249 = vld [vmem:[%s1233 + $0x3c] sm:$0xf]
        %v1266 = vunpack.c.l.b16 %v1217
        %v1267 = vunpack.c.l.b16 %v1218
        %v1268 = vunpack.c.l.b16 %v1219
        %v1269 = vunpack.c.l.b16 %v1220
        %v1270 = vunpack.c.l.b16 %v1221
        %v1271 = vunpack.c.l.b16 %v1222
        %v1272 = vunpack.c.l.b16 %v1223
        %v1273 = vunpack.c.l.b16 %v1224
        %v1274 = vunpack.c.l.b16 %v1225
        %v1275 = vunpack.c.l.b16 %v1226
        %v1276 = vunpack.c.l.b16 %v1227
        %v1277 = vunpack.c.l.b16 %v1228
        %v1278 = vunpack.c.l.b16 %v1229
        %v1279 = vunpack.c.l.b16 %v1230
        %v1280 = vunpack.c.l.b16 %v1231
        %v1281 = vunpack.c.l.b16 %v1232
        %v1282 = vpack.c.b16 %v1267, %v1266
        %v1283 = vpack.c.b16 %v1269, %v1268
        %v1284 = vpack.c.b16 %v1271, %v1270
        %v1285 = vpack.c.b16 %v1273, %v1272
        %v1286 = vpack.c.b16 %v1275, %v1274
        %v1287 = vpack.c.b16 %v1277, %v1276
        %v1288 = vpack.c.b16 %v1279, %v1278
        %v1289 = vpack.c.b16 %v1281, %v1280
        %v1314 = vunpack.c.l.b16 %v1234
        %v1315 = vunpack.c.l.b16 %v1235
        %v1316 = vunpack.c.l.b16 %v1236
        %v1317 = vunpack.c.l.b16 %v1237
        %v1318 = vunpack.c.l.b16 %v1238
        %v1319 = vunpack.c.l.b16 %v1239
        %v1320 = vunpack.c.l.b16 %v1240
        %v1321 = vunpack.c.l.b16 %v1241
        %v1322 = vunpack.c.l.b16 %v1242
        %v1323 = vunpack.c.l.b16 %v1243
        %v1324 = vunpack.c.l.b16 %v1244
        %v1325 = vunpack.c.l.b16 %v1245
        %v1326 = vunpack.c.l.b16 %v1246
        %v1327 = vunpack.c.l.b16 %v1247
        %v1328 = vunpack.c.l.b16 %v1248
        %v1329 = vunpack.c.l.b16 %v1249
        %v1330 = vpack.c.b16 %v1315, %v1314
        %v1331 = vpack.c.b16 %v1317, %v1316
        %v1332 = vpack.c.b16 %v1319, %v1318
        %v1333 = vpack.c.b16 %v1321, %v1320
        %v1334 = vpack.c.b16 %v1323, %v1322
        %v1335 = vpack.c.b16 %v1325, %v1324
        %v1336 = vpack.c.b16 %v1327, %v1326
        %v1337 = vpack.c.b16 %v1329, %v1328
        %1346 = vmatprep.subr.bf16.mxu0 0
        %1347 = vmatpush1.bf16.msra.mxu0 %v1337
        %1348 = vmatprep.subr.bf16.mxu0 0
        %1349 = vmatpush1.bf16.msra.mxu0 %v1336
        %1350 = vmatprep.subr.bf16.mxu0 0
        %1351 = vmatpush1.bf16.msra.mxu0 %v1335
        %1352 = vmatprep.subr.bf16.mxu0 0
        %1353 = vmatpush1.bf16.msra.mxu0 %v1334
        %1354 = vmatprep.subr.bf16.mxu0 0
        %1355 = vmatpush1.bf16.msra.mxu0 %v1333
        %1356 = vmatprep.subr.bf16.mxu0 0
        %1357 = vmatpush1.bf16.msra.mxu0 %v1332
        %1358 = vmatprep.subr.bf16.mxu0 0
        %1359 = vmatpush1.bf16.msra.mxu0 %v1331
        %1360 = vmatprep.subr.bf16.mxu0 0
        %1361 = vmatpush1.bf16.msra.mxu0 %v1330
        %1362 = vmatprep.subr.bf16.mxu0 0
        %1363 = vmatpush2.bf16.msra.mxu0 0
        %1364 = vmatprep.subr.bf16.mxu0 0
        %1365 = vmatpush2.bf16.msra.mxu0 0
        %1366 = vmatprep.subr.bf16.mxu0 0
        %1367 = vmatpush2.bf16.msra.mxu0 0
        %1368 = vmatprep.subr.bf16.mxu0 0
        %1369 = vmatpush2.bf16.msra.mxu0 0
        %1370 = vmatprep.subr.bf16.mxu0 0
        %1371 = vmatpush2.bf16.msra.mxu0 0
        %1372 = vmatprep.subr.bf16.mxu0 0
        %1373 = vmatpush2.bf16.msra.mxu0 0
        %1374 = vmatprep.subr.bf16.mxu0 0
        %1375 = vmatpush2.bf16.msra.mxu0 0
        %1376 = vmatprep.subr.bf16.mxu0 0
        %1377 = vmatpush2.bf16.msra.mxu0 0
        %1378 = vmatprep.mubr.bf16.mxu0 0
        %1379 = vmatmul.mubr.bf16.gmra.mxu0 %v1282
        %v1380 = vpop.f32.mrf.mxu0
        %v1381 = vadd.f32 0.0, %v1380
        %v1382 = vpop.f32.mrf.mxu0
        %v1383 = vpop.f32.mrf.mxu0
        %v1384 = vadd.f32 0.0, %v1383
        %v1385 = vpop.f32.mrf.mxu0
        %1386 = vmatprep.mubr.bf16.mxu0 0
        %1387 = vmatmul.mubr.bf16.gmra.mxu0 %v1283
        %v1388 = vpop.f32.mrf.mxu0
        %v1389 = vadd.f32 0.0, %v1388
        %v1390 = vpop.f32.mrf.mxu0
        %v1391 = vpop.f32.mrf.mxu0
        %v1392 = vadd.f32 0.0, %v1391
        %v1393 = vpop.f32.mrf.mxu0
        %1394 = vmatprep.mubr.bf16.mxu0 0
        %1395 = vmatmul.mubr.bf16.gmra.mxu0 %v1284
        %v1396 = vpop.f32.mrf.mxu0
        %v1397 = vadd.f32 0.0, %v1396
        %v1398 = vpop.f32.mrf.mxu0
        %v1399 = vpop.f32.mrf.mxu0
        %v1400 = vadd.f32 0.0, %v1399
        %v1401 = vpop.f32.mrf.mxu0
        %1402 = vmatprep.mubr.bf16.mxu0 0
        %1403 = vmatmul.mubr.bf16.gmra.mxu0 %v1285
        %v1404 = vpop.f32.mrf.mxu0
        %v1405 = vadd.f32 0.0, %v1404
        %v1406 = vpop.f32.mrf.mxu0
        %v1407 = vpop.f32.mrf.mxu0
        %v1408 = vadd.f32 0.0, %v1407
        %v1409 = vpop.f32.mrf.mxu0
        %1410 = vmatprep.mubr.bf16.mxu0 0
        %1411 = vmatmul.mubr.bf16.gmra.mxu0 %v1286
        %v1412 = vpop.f32.mrf.mxu0
        %v1413 = vadd.f32 0.0, %v1412
        %v1414 = vpop.f32.mrf.mxu0
        %v1415 = vpop.f32.mrf.mxu0
        %v1416 = vadd.f32 0.0, %v1415
        %v1417 = vpop.f32.mrf.mxu0
        %1418 = vmatprep.mubr.bf16.mxu0 0
        %1419 = vmatmul.mubr.bf16.gmra.mxu0 %v1287
        %v1420 = vpop.f32.mrf.mxu0
        %v1421 = vadd.f32 0.0, %v1420
        %v1422 = vpop.f32.mrf.mxu0
        %v1423 = vpop.f32.mrf.mxu0
        %v1424 = vadd.f32 0.0, %v1423
        %v1425 = vpop.f32.mrf.mxu0
        %1426 = vmatprep.mubr.bf16.mxu0 0
        %1427 = vmatmul.mubr.bf16.gmra.mxu0 %v1288
        %v1428 = vpop.f32.mrf.mxu0
        %v1429 = vadd.f32 0.0, %v1428
        %v1430 = vpop.f32.mrf.mxu0
        %v1431 = vpop.f32.mrf.mxu0
        %v1432 = vadd.f32 0.0, %v1431
        %v1433 = vpop.f32.mrf.mxu0
        %1434 = vmatprep.mubr.bf16.mxu0 0
        %1435 = vmatmul.mubr.bf16.gmra.mxu0 %v1289
        %v1436 = vpop.f32.mrf.mxu0
        %v1437 = vadd.f32 0.0, %v1436
        %v1438 = vpop.f32.mrf.mxu0
        %v1439 = vpop.f32.mrf.mxu0
        %v1440 = vadd.f32 0.0, %v1439
        %v1441 = vpop.f32.mrf.mxu0
        %1442 = vdwg.mxu0
        %v1443 = vadd.f32 %v1199, %v1381
        %v1444 = vadd.f32 %v1200, %v1384
        %v1445 = vadd.f32 %v1201, %v1389
        %v1446 = vadd.f32 %v1202, %v1392
        %v1447 = vadd.f32 %v1203, %v1397
        %v1448 = vadd.f32 %v1204, %v1400
        %v1449 = vadd.f32 %v1205, %v1405
        %v1450 = vadd.f32 %v1206, %v1408
        %v1451 = vadd.f32 %v1207, %v1413
        %v1452 = vadd.f32 %v1208, %v1416
        %v1453 = vadd.f32 %v1209, %v1421
        %v1454 = vadd.f32 %v1210, %v1424
        %v1455 = vadd.f32 %v1211, %v1429
        %v1456 = vadd.f32 %v1212, %v1432
        %v1457 = vadd.f32 %v1213, %v1437
        %v1458 = vadd.f32 %v1214, %v1440
        %s1459 = smul.addr %s969, 4
        %s1460 = scalar_lea.vmem [#allocation7], %s1459
        %v1461 = vld [vmem:[%s1460] sm:$0xf]
        %v1462 = vld [vmem:[%s1460 + $0x4] sm:$0xf]
        %v1463 = vld [vmem:[%s1460 + $0x8] sm:$0xf]
        %v1464 = vld [vmem:[%s1460 + $0xc] sm:$0xf]
        %v1465 = vld [vmem:[%s1460 + $0x10] sm:$0xf]
        %v1466 = vld [vmem:[%s1460 + $0x14] sm:$0xf]
        %v1467 = vld [vmem:[%s1460 + $0x18] sm:$0xf]
        %v1468 = vld [vmem:[%s1460 + $0x1c] sm:$0xf]
        %v1469 = vld [vmem:[%s1460 + $0x20] sm:$0xf]
        %v1470 = vld [vmem:[%s1460 + $0x24] sm:$0xf]
        %v1471 = vld [vmem:[%s1460 + $0x28] sm:$0xf]
        %v1472 = vld [vmem:[%s1460 + $0x2c] sm:$0xf]
        %v1473 = vld [vmem:[%s1460 + $0x30] sm:$0xf]
        %v1474 = vld [vmem:[%s1460 + $0x34] sm:$0xf]
        %v1475 = vld [vmem:[%s1460 + $0x38] sm:$0xf]
        %v1476 = vld [vmem:[%s1460 + $0x3c] sm:$0xf]
        %s1477 = scalar_lea.vmem [#allocation8], 320
        %v1478 = vld [vmem:[%s1477] sm:$0xf]
        %v1479 = vld [vmem:[%s1477 + $0x4] sm:$0xf]
        %v1480 = vld [vmem:[%s1477 + $0x8] sm:$0xf]
        %v1481 = vld [vmem:[%s1477 + $0xc] sm:$0xf]
        %v1482 = vld [vmem:[%s1477 + $0x10] sm:$0xf]
        %v1483 = vld [vmem:[%s1477 + $0x14] sm:$0xf]
        %v1484 = vld [vmem:[%s1477 + $0x18] sm:$0xf]
        %v1485 = vld [vmem:[%s1477 + $0x1c] sm:$0xf]
        %v1486 = vld [vmem:[%s1477 + $0x20] sm:$0xf]
        %v1487 = vld [vmem:[%s1477 + $0x24] sm:$0xf]
        %v1488 = vld [vmem:[%s1477 + $0x28] sm:$0xf]
        %v1489 = vld [vmem:[%s1477 + $0x2c] sm:$0xf]
        %v1490 = vld [vmem:[%s1477 + $0x30] sm:$0xf]
        %v1491 = vld [vmem:[%s1477 + $0x34] sm:$0xf]
        %v1492 = vld [vmem:[%s1477 + $0x38] sm:$0xf]
        %v1493 = vld [vmem:[%s1477 + $0x3c] sm:$0xf]
        %v1510 = vunpack.c.l.b16 %v1461
        %v1511 = vunpack.c.l.b16 %v1462
        %v1512 = vunpack.c.l.b16 %v1463
        %v1513 = vunpack.c.l.b16 %v1464
        %v1514 = vunpack.c.l.b16 %v1465
        %v1515 = vunpack.c.l.b16 %v1466
        %v1516 = vunpack.c.l.b16 %v1467
        %v1517 = vunpack.c.l.b16 %v1468
        %v1518 = vunpack.c.l.b16 %v1469
        %v1519 = vunpack.c.l.b16 %v1470
        %v1520 = vunpack.c.l.b16 %v1471
        %v1521 = vunpack.c.l.b16 %v1472
        %v1522 = vunpack.c.l.b16 %v1473
        %v1523 = vunpack.c.l.b16 %v1474
        %v1524 = vunpack.c.l.b16 %v1475
        %v1525 = vunpack.c.l.b16 %v1476
        %v1526 = vpack.c.b16 %v1511, %v1510
        %v1527 = vpack.c.b16 %v1513, %v1512
        %v1528 = vpack.c.b16 %v1515, %v1514
        %v1529 = vpack.c.b16 %v1517, %v1516
        %v1530 = vpack.c.b16 %v1519, %v1518
        %v1531 = vpack.c.b16 %v1521, %v1520
        %v1532 = vpack.c.b16 %v1523, %v1522
        %v1533 = vpack.c.b16 %v1525, %v1524
        %v1558 = vunpack.c.l.b16 %v1478
        %v1559 = vunpack.c.l.b16 %v1479
        %v1560 = vunpack.c.l.b16 %v1480
        %v1561 = vunpack.c.l.b16 %v1481
        %v1562 = vunpack.c.l.b16 %v1482
        %v1563 = vunpack.c.l.b16 %v1483
        %v1564 = vunpack.c.l.b16 %v1484
        %v1565 = vunpack.c.l.b16 %v1485
        %v1566 = vunpack.c.l.b16 %v1486
        %v1567 = vunpack.c.l.b16 %v1487
        %v1568 = vunpack.c.l.b16 %v1488
        %v1569 = vunpack.c.l.b16 %v1489
        %v1570 = vunpack.c.l.b16 %v1490
        %v1571 = vunpack.c.l.b16 %v1491
        %v1572 = vunpack.c.l.b16 %v1492
        %v1573 = vunpack.c.l.b16 %v1493
        %v1574 = vpack.c.b16 %v1559, %v1558
        %v1575 = vpack.c.b16 %v1561, %v1560
        %v1576 = vpack.c.b16 %v1563, %v1562
        %v1577 = vpack.c.b16 %v1565, %v1564
        %v1578 = vpack.c.b16 %v1567, %v1566
        %v1579 = vpack.c.b16 %v1569, %v1568
        %v1580 = vpack.c.b16 %v1571, %v1570
        %v1581 = vpack.c.b16 %v1573, %v1572
        %1590 = vmatprep.subr.bf16.mxu0 0
        %1591 = vmatpush1.bf16.msra.mxu0 %v1581
        %1592 = vmatprep.subr.bf16.mxu0 0
        %1593 = vmatpush1.bf16.msra.mxu0 %v1580
        %1594 = vmatprep.subr.bf16.mxu0 0
        %1595 = vmatpush1.bf16.msra.mxu0 %v1579
        %1596 = vmatprep.subr.bf16.mxu0 0
        %1597 = vmatpush1.bf16.msra.mxu0 %v1578
        %1598 = vmatprep.subr.bf16.mxu0 0
        %1599 = vmatpush1.bf16.msra.mxu0 %v1577
        %1600 = vmatprep.subr.bf16.mxu0 0
        %1601 = vmatpush1.bf16.msra.mxu0 %v1576
        %1602 = vmatprep.subr.bf16.mxu0 0
        %1603 = vmatpush1.bf16.msra.mxu0 %v1575
        %1604 = vmatprep.subr.bf16.mxu0 0
        %1605 = vmatpush1.bf16.msra.mxu0 %v1574
        %1606 = vmatprep.subr.bf16.mxu0 0
        %1607 = vmatpush2.bf16.msra.mxu0 0
        %1608 = vmatprep.subr.bf16.mxu0 0
        %1609 = vmatpush2.bf16.msra.mxu0 0
        %1610 = vmatprep.subr.bf16.mxu0 0
        %1611 = vmatpush2.bf16.msra.mxu0 0
        %1612 = vmatprep.subr.bf16.mxu0 0
        %1613 = vmatpush2.bf16.msra.mxu0 0
        %1614 = vmatprep.subr.bf16.mxu0 0
        %1615 = vmatpush2.bf16.msra.mxu0 0
        %1616 = vmatprep.subr.bf16.mxu0 0
        %1617 = vmatpush2.bf16.msra.mxu0 0
        %1618 = vmatprep.subr.bf16.mxu0 0
        %1619 = vmatpush2.bf16.msra.mxu0 0
        %1620 = vmatprep.subr.bf16.mxu0 0
        %1621 = vmatpush2.bf16.msra.mxu0 0
        %1622 = vmatprep.mubr.bf16.mxu0 0
        %1623 = vmatmul.mubr.bf16.gmra.mxu0 %v1526
        %v1624 = vpop.f32.mrf.mxu0
        %v1625 = vadd.f32 0.0, %v1624
        %v1626 = vpop.f32.mrf.mxu0
        %v1627 = vpop.f32.mrf.mxu0
        %v1628 = vadd.f32 0.0, %v1627
        %v1629 = vpop.f32.mrf.mxu0
        %1630 = vmatprep.mubr.bf16.mxu0 0
        %1631 = vmatmul.mubr.bf16.gmra.mxu0 %v1527
        %v1632 = vpop.f32.mrf.mxu0
        %v1633 = vadd.f32 0.0, %v1632
        %v1634 = vpop.f32.mrf.mxu0
        %v1635 = vpop.f32.mrf.mxu0
        %v1636 = vadd.f32 0.0, %v1635
        %v1637 = vpop.f32.mrf.mxu0
        %1638 = vmatprep.mubr.bf16.mxu0 0
        %1639 = vmatmul.mubr.bf16.gmra.mxu0 %v1528
        %v1640 = vpop.f32.mrf.mxu0
        %v1641 = vadd.f32 0.0, %v1640
        %v1642 = vpop.f32.mrf.mxu0
        %v1643 = vpop.f32.mrf.mxu0
        %v1644 = vadd.f32 0.0, %v1643
        %v1645 = vpop.f32.mrf.mxu0
        %1646 = vmatprep.mubr.bf16.mxu0 0
        %1647 = vmatmul.mubr.bf16.gmra.mxu0 %v1529
        %v1648 = vpop.f32.mrf.mxu0
        %v1649 = vadd.f32 0.0, %v1648
        %v1650 = vpop.f32.mrf.mxu0
        %v1651 = vpop.f32.mrf.mxu0
        %v1652 = vadd.f32 0.0, %v1651
        %v1653 = vpop.f32.mrf.mxu0
        %1654 = vmatprep.mubr.bf16.mxu0 0
        %1655 = vmatmul.mubr.bf16.gmra.mxu0 %v1530
        %v1656 = vpop.f32.mrf.mxu0
        %v1657 = vadd.f32 0.0, %v1656
        %v1658 = vpop.f32.mrf.mxu0
        %v1659 = vpop.f32.mrf.mxu0
        %v1660 = vadd.f32 0.0, %v1659
        %v1661 = vpop.f32.mrf.mxu0
        %1662 = vmatprep.mubr.bf16.mxu0 0
        %1663 = vmatmul.mubr.bf16.gmra.mxu0 %v1531
        %v1664 = vpop.f32.mrf.mxu0
        %v1665 = vadd.f32 0.0, %v1664
        %v1666 = vpop.f32.mrf.mxu0
        %v1667 = vpop.f32.mrf.mxu0
        %v1668 = vadd.f32 0.0, %v1667
        %v1669 = vpop.f32.mrf.mxu0
        %1670 = vmatprep.mubr.bf16.mxu0 0
        %1671 = vmatmul.mubr.bf16.gmra.mxu0 %v1532
        %v1672 = vpop.f32.mrf.mxu0
        %v1673 = vadd.f32 0.0, %v1672
        %v1674 = vpop.f32.mrf.mxu0
        %v1675 = vpop.f32.mrf.mxu0
        %v1676 = vadd.f32 0.0, %v1675
        %v1677 = vpop.f32.mrf.mxu0
        %1678 = vmatprep.mubr.bf16.mxu0 0
        %1679 = vmatmul.mubr.bf16.gmra.mxu0 %v1533
        %v1680 = vpop.f32.mrf.mxu0
        %v1681 = vadd.f32 0.0, %v1680
        %v1682 = vpop.f32.mrf.mxu0
        %v1683 = vpop.f32.mrf.mxu0
        %v1684 = vadd.f32 0.0, %v1683
        %v1685 = vpop.f32.mrf.mxu0
        %1686 = vdwg.mxu0
        %v1687 = vadd.f32 %v1443, %v1625
        %v1688 = vadd.f32 %v1444, %v1628
        %v1689 = vadd.f32 %v1445, %v1633
        %v1690 = vadd.f32 %v1446, %v1636
        %v1691 = vadd.f32 %v1447, %v1641
        %v1692 = vadd.f32 %v1448, %v1644
        %v1693 = vadd.f32 %v1449, %v1649
        %v1694 = vadd.f32 %v1450, %v1652
        %v1695 = vadd.f32 %v1451, %v1657
        %v1696 = vadd.f32 %v1452, %v1660
        %v1697 = vadd.f32 %v1453, %v1665
        %v1698 = vadd.f32 %v1454, %v1668
        %v1699 = vadd.f32 %v1455, %v1673
        %v1700 = vadd.f32 %v1456, %v1676
        %v1701 = vadd.f32 %v1457, %v1681
        %v1702 = vadd.f32 %v1458, %v1684
        %s1703 = sadd.s32 %s264, 2
        %s1704 = smul.u32 %s1703, 16
        %s1705 = sshra.s32 %s1704, 3
        %s1706 = sand.u32 %s1704, 7
        %s1707 = smul.addr %s1705, 4
        %s1708 = scalar_lea.vmem [#allocation2], %s1707
        %v1709 = vld [vmem:[%s1708] sm:$0xf]
        %v1710 = vld [vmem:[%s1708 + $0x4] sm:$0xf]
        %v1711 = vld [vmem:[%s1708 + $0x8] sm:$0xf]
        %v1712 = vld [vmem:[%s1708 + $0xc] sm:$0xf]
        %v1713 = vld [vmem:[%s1708 + $0x10] sm:$0xf]
        %v1714 = vld [vmem:[%s1708 + $0x14] sm:$0xf]
        %v1715 = vld [vmem:[%s1708 + $0x18] sm:$0xf]
        %v1716 = vld [vmem:[%s1708 + $0x1c] sm:$0xf]
        %v1717 = vld [vmem:[%s1708 + $0x20] sm:$0xf]
        %v1718 = vld [vmem:[%s1708 + $0x24] sm:$0xf]
        %v1719 = vld [vmem:[%s1708 + $0x28] sm:$0xf]
        %v1720 = vld [vmem:[%s1708 + $0x2c] sm:$0xf]
        %v1721 = vld [vmem:[%s1708 + $0x30] sm:$0xf]
        %v1722 = vld [vmem:[%s1708 + $0x34] sm:$0xf]
        %v1723 = vld [vmem:[%s1708 + $0x38] sm:$0xf]
        %v1724 = vld [vmem:[%s1708 + $0x3c] sm:$0xf]
        %s1725 = scalar_lea.vmem [#allocation8], 384
        %v1726 = vld [vmem:[%s1725] sm:$0xf]
        %v1727 = vld [vmem:[%s1725 + $0x4] sm:$0xf]
        %v1728 = vld [vmem:[%s1725 + $0x8] sm:$0xf]
        %v1729 = vld [vmem:[%s1725 + $0xc] sm:$0xf]
        %v1730 = vld [vmem:[%s1725 + $0x10] sm:$0xf]
        %v1731 = vld [vmem:[%s1725 + $0x14] sm:$0xf]
        %v1732 = vld [vmem:[%s1725 + $0x18] sm:$0xf]
        %v1733 = vld [vmem:[%s1725 + $0x1c] sm:$0xf]
        %v1734 = vld [vmem:[%s1725 + $0x20] sm:$0xf]
        %v1735 = vld [vmem:[%s1725 + $0x24] sm:$0xf]
        %v1736 = vld [vmem:[%s1725 + $0x28] sm:$0xf]
        %v1737 = vld [vmem:[%s1725 + $0x2c] sm:$0xf]
        %v1738 = vld [vmem:[%s1725 + $0x30] sm:$0xf]
        %v1739 = vld [vmem:[%s1725 + $0x34] sm:$0xf]
        %v1740 = vld [vmem:[%s1725 + $0x38] sm:$0xf]
        %v1741 = vld [vmem:[%s1725 + $0x3c] sm:$0xf]
        %v1758 = vunpack.c.l.b16 %v1709
        %v1759 = vunpack.c.l.b16 %v1710
        %v1760 = vunpack.c.l.b16 %v1711
        %v1761 = vunpack.c.l.b16 %v1712
        %v1762 = vunpack.c.l.b16 %v1713
        %v1763 = vunpack.c.l.b16 %v1714
        %v1764 = vunpack.c.l.b16 %v1715
        %v1765 = vunpack.c.l.b16 %v1716
        %v1766 = vunpack.c.l.b16 %v1717
        %v1767 = vunpack.c.l.b16 %v1718
        %v1768 = vunpack.c.l.b16 %v1719
        %v1769 = vunpack.c.l.b16 %v1720
        %v1770 = vunpack.c.l.b16 %v1721
        %v1771 = vunpack.c.l.b16 %v1722
        %v1772 = vunpack.c.l.b16 %v1723
        %v1773 = vunpack.c.l.b16 %v1724
        %v1774 = vpack.c.b16 %v1759, %v1758
        %v1775 = vpack.c.b16 %v1761, %v1760
        %v1776 = vpack.c.b16 %v1763, %v1762
        %v1777 = vpack.c.b16 %v1765, %v1764
        %v1778 = vpack.c.b16 %v1767, %v1766
        %v1779 = vpack.c.b16 %v1769, %v1768
        %v1780 = vpack.c.b16 %v1771, %v1770
        %v1781 = vpack.c.b16 %v1773, %v1772
        %v1806 = vunpack.c.l.b16 %v1726
        %v1807 = vunpack.c.l.b16 %v1727
        %v1808 = vunpack.c.l.b16 %v1728
        %v1809 = vunpack.c.l.b16 %v1729
        %v1810 = vunpack.c.l.b16 %v1730
        %v1811 = vunpack.c.l.b16 %v1731
        %v1812 = vunpack.c.l.b16 %v1732
        %v1813 = vunpack.c.l.b16 %v1733
        %v1814 = vunpack.c.l.b16 %v1734
        %v1815 = vunpack.c.l.b16 %v1735
        %v1816 = vunpack.c.l.b16 %v1736
        %v1817 = vunpack.c.l.b16 %v1737
        %v1818 = vunpack.c.l.b16 %v1738
        %v1819 = vunpack.c.l.b16 %v1739
        %v1820 = vunpack.c.l.b16 %v1740
        %v1821 = vunpack.c.l.b16 %v1741
        %v1822 = vpack.c.b16 %v1807, %v1806
        %v1823 = vpack.c.b16 %v1809, %v1808
        %v1824 = vpack.c.b16 %v1811, %v1810
        %v1825 = vpack.c.b16 %v1813, %v1812
        %v1826 = vpack.c.b16 %v1815, %v1814
        %v1827 = vpack.c.b16 %v1817, %v1816
        %v1828 = vpack.c.b16 %v1819, %v1818
        %v1829 = vpack.c.b16 %v1821, %v1820
        %1838 = vmatprep.subr.bf16.mxu0 0
        %1839 = vmatpush1.bf16.msra.mxu0 %v1829
        %1840 = vmatprep.subr.bf16.mxu0 0
        %1841 = vmatpush1.bf16.msra.mxu0 %v1828
        %1842 = vmatprep.subr.bf16.mxu0 0
        %1843 = vmatpush1.bf16.msra.mxu0 %v1827
        %1844 = vmatprep.subr.bf16.mxu0 0
        %1845 = vmatpush1.bf16.msra.mxu0 %v1826
        %1846 = vmatprep.subr.bf16.mxu0 0
        %1847 = vmatpush1.bf16.msra.mxu0 %v1825
        %1848 = vmatprep.subr.bf16.mxu0 0
        %1849 = vmatpush1.bf16.msra.mxu0 %v1824
        %1850 = vmatprep.subr.bf16.mxu0 0
        %1851 = vmatpush1.bf16.msra.mxu0 %v1823
        %1852 = vmatprep.subr.bf16.mxu0 0
        %1853 = vmatpush1.bf16.msra.mxu0 %v1822
        %1854 = vmatprep.subr.bf16.mxu0 0
        %1855 = vmatpush2.bf16.msra.mxu0 0
        %1856 = vmatprep.subr.bf16.mxu0 0
        %1857 = vmatpush2.bf16.msra.mxu0 0
        %1858 = vmatprep.subr.bf16.mxu0 0
        %1859 = vmatpush2.bf16.msra.mxu0 0
        %1860 = vmatprep.subr.bf16.mxu0 0
        %1861 = vmatpush2.bf16.msra.mxu0 0
        %1862 = vmatprep.subr.bf16.mxu0 0
        %1863 = vmatpush2.bf16.msra.mxu0 0
        %1864 = vmatprep.subr.bf16.mxu0 0
        %1865 = vmatpush2.bf16.msra.mxu0 0
        %1866 = vmatprep.subr.bf16.mxu0 0
        %1867 = vmatpush2.bf16.msra.mxu0 0
        %1868 = vmatprep.subr.bf16.mxu0 0
        %1869 = vmatpush2.bf16.msra.mxu0 0
        %1870 = vmatprep.mubr.bf16.mxu0 0
        %1871 = vmatmul.mubr.bf16.gmra.mxu0 %v1774
        %v1872 = vpop.f32.mrf.mxu0
        %v1873 = vadd.f32 0.0, %v1872
        %v1874 = vpop.f32.mrf.mxu0
        %v1875 = vpop.f32.mrf.mxu0
        %v1876 = vadd.f32 0.0, %v1875
        %v1877 = vpop.f32.mrf.mxu0
        %1878 = vmatprep.mubr.bf16.mxu0 0
        %1879 = vmatmul.mubr.bf16.gmra.mxu0 %v1775
        %v1880 = vpop.f32.mrf.mxu0
        %v1881 = vadd.f32 0.0, %v1880
        %v1882 = vpop.f32.mrf.mxu0
        %v1883 = vpop.f32.mrf.mxu0
        %v1884 = vadd.f32 0.0, %v1883
        %v1885 = vpop.f32.mrf.mxu0
        %1886 = vmatprep.mubr.bf16.mxu0 0
        %1887 = vmatmul.mubr.bf16.gmra.mxu0 %v1776
        %v1888 = vpop.f32.mrf.mxu0
        %v1889 = vadd.f32 0.0, %v1888
        %v1890 = vpop.f32.mrf.mxu0
        %v1891 = vpop.f32.mrf.mxu0
        %v1892 = vadd.f32 0.0, %v1891
        %v1893 = vpop.f32.mrf.mxu0
        %1894 = vmatprep.mubr.bf16.mxu0 0
        %1895 = vmatmul.mubr.bf16.gmra.mxu0 %v1777
        %v1896 = vpop.f32.mrf.mxu0
        %v1897 = vadd.f32 0.0, %v1896
        %v1898 = vpop.f32.mrf.mxu0
        %v1899 = vpop.f32.mrf.mxu0
        %v1900 = vadd.f32 0.0, %v1899
        %v1901 = vpop.f32.mrf.mxu0
        %1902 = vmatprep.mubr.bf16.mxu0 0
        %1903 = vmatmul.mubr.bf16.gmra.mxu0 %v1778
        %v1904 = vpop.f32.mrf.mxu0
        %v1905 = vadd.f32 0.0, %v1904
        %v1906 = vpop.f32.mrf.mxu0
        %v1907 = vpop.f32.mrf.mxu0
        %v1908 = vadd.f32 0.0, %v1907
        %v1909 = vpop.f32.mrf.mxu0
        %1910 = vmatprep.mubr.bf16.mxu0 0
        %1911 = vmatmul.mubr.bf16.gmra.mxu0 %v1779
        %v1912 = vpop.f32.mrf.mxu0
        %v1913 = vadd.f32 0.0, %v1912
        %v1914 = vpop.f32.mrf.mxu0
        %v1915 = vpop.f32.mrf.mxu0
        %v1916 = vadd.f32 0.0, %v1915
        %v1917 = vpop.f32.mrf.mxu0
        %1918 = vmatprep.mubr.bf16.mxu0 0
        %1919 = vmatmul.mubr.bf16.gmra.mxu0 %v1780
        %v1920 = vpop.f32.mrf.mxu0
        %v1921 = vadd.f32 0.0, %v1920
        %v1922 = vpop.f32.mrf.mxu0
        %v1923 = vpop.f32.mrf.mxu0
        %v1924 = vadd.f32 0.0, %v1923
        %v1925 = vpop.f32.mrf.mxu0
        %1926 = vmatprep.mubr.bf16.mxu0 0
        %1927 = vmatmul.mubr.bf16.gmra.mxu0 %v1781
        %v1928 = vpop.f32.mrf.mxu0
        %v1929 = vadd.f32 0.0, %v1928
        %v1930 = vpop.f32.mrf.mxu0
        %v1931 = vpop.f32.mrf.mxu0
        %v1932 = vadd.f32 0.0, %v1931
        %v1933 = vpop.f32.mrf.mxu0
        %1934 = vdwg.mxu0
        %v1935 = vadd.f32 %v1687, %v1873
        %v1936 = vadd.f32 %v1688, %v1876
        %v1937 = vadd.f32 %v1689, %v1881
        %v1938 = vadd.f32 %v1690, %v1884
        %v1939 = vadd.f32 %v1691, %v1889
        %v1940 = vadd.f32 %v1692, %v1892
        %v1941 = vadd.f32 %v1693, %v1897
        %v1942 = vadd.f32 %v1694, %v1900
        %v1943 = vadd.f32 %v1695, %v1905
        %v1944 = vadd.f32 %v1696, %v1908
        %v1945 = vadd.f32 %v1697, %v1913
        %v1946 = vadd.f32 %v1698, %v1916
        %v1947 = vadd.f32 %v1699, %v1921
        %v1948 = vadd.f32 %v1700, %v1924
        %v1949 = vadd.f32 %v1701, %v1929
        %v1950 = vadd.f32 %v1702, %v1932
        %s1951 = smul.addr %s1705, 4
        %s1952 = scalar_lea.vmem [#allocation5], %s1951
        %v1953 = vld [vmem:[%s1952] sm:$0xf]
        %v1954 = vld [vmem:[%s1952 + $0x4] sm:$0xf]
        %v1955 = vld [vmem:[%s1952 + $0x8] sm:$0xf]
        %v1956 = vld [vmem:[%s1952 + $0xc] sm:$0xf]
        %v1957 = vld [vmem:[%s1952 + $0x10] sm:$0xf]
        %v1958 = vld [vmem:[%s1952 + $0x14] sm:$0xf]
        %v1959 = vld [vmem:[%s1952 + $0x18] sm:$0xf]
        %v1960 = vld [vmem:[%s1952 + $0x1c] sm:$0xf]
        %v1961 = vld [vmem:[%s1952 + $0x20] sm:$0xf]
        %v1962 = vld [vmem:[%s1952 + $0x24] sm:$0xf]
        %v1963 = vld [vmem:[%s1952 + $0x28] sm:$0xf]
        %v1964 = vld [vmem:[%s1952 + $0x2c] sm:$0xf]
        %v1965 = vld [vmem:[%s1952 + $0x30] sm:$0xf]
        %v1966 = vld [vmem:[%s1952 + $0x34] sm:$0xf]
        %v1967 = vld [vmem:[%s1952 + $0x38] sm:$0xf]
        %v1968 = vld [vmem:[%s1952 + $0x3c] sm:$0xf]
        %s1969 = scalar_lea.vmem [#allocation8], 448
        %v1970 = vld [vmem:[%s1969] sm:$0xf]
        %v1971 = vld [vmem:[%s1969 + $0x4] sm:$0xf]
        %v1972 = vld [vmem:[%s1969 + $0x8] sm:$0xf]
        %v1973 = vld [vmem:[%s1969 + $0xc] sm:$0xf]
        %v1974 = vld [vmem:[%s1969 + $0x10] sm:$0xf]
        %v1975 = vld [vmem:[%s1969 + $0x14] sm:$0xf]
        %v1976 = vld [vmem:[%s1969 + $0x18] sm:$0xf]
        %v1977 = vld [vmem:[%s1969 + $0x1c] sm:$0xf]
        %v1978 = vld [vmem:[%s1969 + $0x20] sm:$0xf]
        %v1979 = vld [vmem:[%s1969 + $0x24] sm:$0xf]
        %v1980 = vld [vmem:[%s1969 + $0x28] sm:$0xf]
        %v1981 = vld [vmem:[%s1969 + $0x2c] sm:$0xf]
        %v1982 = vld [vmem:[%s1969 + $0x30] sm:$0xf]
        %v1983 = vld [vmem:[%s1969 + $0x34] sm:$0xf]
        %v1984 = vld [vmem:[%s1969 + $0x38] sm:$0xf]
        %v1985 = vld [vmem:[%s1969 + $0x3c] sm:$0xf]
        %v2002 = vunpack.c.l.b16 %v1953
        %v2003 = vunpack.c.l.b16 %v1954
        %v2004 = vunpack.c.l.b16 %v1955
        %v2005 = vunpack.c.l.b16 %v1956
        %v2006 = vunpack.c.l.b16 %v1957
        %v2007 = vunpack.c.l.b16 %v1958
        %v2008 = vunpack.c.l.b16 %v1959
        %v2009 = vunpack.c.l.b16 %v1960
        %v2010 = vunpack.c.l.b16 %v1961
        %v2011 = vunpack.c.l.b16 %v1962
        %v2012 = vunpack.c.l.b16 %v1963
        %v2013 = vunpack.c.l.b16 %v1964
        %v2014 = vunpack.c.l.b16 %v1965
        %v2015 = vunpack.c.l.b16 %v1966
        %v2016 = vunpack.c.l.b16 %v1967
        %v2017 = vunpack.c.l.b16 %v1968
        %v2018 = vpack.c.b16 %v2003, %v2002
        %v2019 = vpack.c.b16 %v2005, %v2004
        %v2020 = vpack.c.b16 %v2007, %v2006
        %v2021 = vpack.c.b16 %v2009, %v2008
        %v2022 = vpack.c.b16 %v2011, %v2010
        %v2023 = vpack.c.b16 %v2013, %v2012
        %v2024 = vpack.c.b16 %v2015, %v2014
        %v2025 = vpack.c.b16 %v2017, %v2016
        %v2050 = vunpack.c.l.b16 %v1970
        %v2051 = vunpack.c.l.b16 %v1971
        %v2052 = vunpack.c.l.b16 %v1972
        %v2053 = vunpack.c.l.b16 %v1973
        %v2054 = vunpack.c.l.b16 %v1974
        %v2055 = vunpack.c.l.b16 %v1975
        %v2056 = vunpack.c.l.b16 %v1976
        %v2057 = vunpack.c.l.b16 %v1977
        %v2058 = vunpack.c.l.b16 %v1978
        %v2059 = vunpack.c.l.b16 %v1979
        %v2060 = vunpack.c.l.b16 %v1980
        %v2061 = vunpack.c.l.b16 %v1981
        %v2062 = vunpack.c.l.b16 %v1982
        %v2063 = vunpack.c.l.b16 %v1983
        %v2064 = vunpack.c.l.b16 %v1984
        %v2065 = vunpack.c.l.b16 %v1985
        %v2066 = vpack.c.b16 %v2051, %v2050
        %v2067 = vpack.c.b16 %v2053, %v2052
        %v2068 = vpack.c.b16 %v2055, %v2054
        %v2069 = vpack.c.b16 %v2057, %v2056
        %v2070 = vpack.c.b16 %v2059, %v2058
        %v2071 = vpack.c.b16 %v2061, %v2060
        %v2072 = vpack.c.b16 %v2063, %v2062
        %v2073 = vpack.c.b16 %v2065, %v2064
        %2082 = vmatprep.subr.bf16.mxu0 0
        %2083 = vmatpush1.bf16.msra.mxu0 %v2073
        %2084 = vmatprep.subr.bf16.mxu0 0
        %2085 = vmatpush1.bf16.msra.mxu0 %v2072
        %2086 = vmatprep.subr.bf16.mxu0 0
        %2087 = vmatpush1.bf16.msra.mxu0 %v2071
        %2088 = vmatprep.subr.bf16.mxu0 0
        %2089 = vmatpush1.bf16.msra.mxu0 %v2070
        %2090 = vmatprep.subr.bf16.mxu0 0
        %2091 = vmatpush1.bf16.msra.mxu0 %v2069
        %2092 = vmatprep.subr.bf16.mxu0 0
        %2093 = vmatpush1.bf16.msra.mxu0 %v2068
        %2094 = vmatprep.subr.bf16.mxu0 0
        %2095 = vmatpush1.bf16.msra.mxu0 %v2067
        %2096 = vmatprep.subr.bf16.mxu0 0
        %2097 = vmatpush1.bf16.msra.mxu0 %v2066
        %2098 = vmatprep.subr.bf16.mxu0 0
        %2099 = vmatpush2.bf16.msra.mxu0 0
        %2100 = vmatprep.subr.bf16.mxu0 0
        %2101 = vmatpush2.bf16.msra.mxu0 0
        %2102 = vmatprep.subr.bf16.mxu0 0
        %2103 = vmatpush2.bf16.msra.mxu0 0
        %2104 = vmatprep.subr.bf16.mxu0 0
        %2105 = vmatpush2.bf16.msra.mxu0 0
        %2106 = vmatprep.subr.bf16.mxu0 0
        %2107 = vmatpush2.bf16.msra.mxu0 0
        %2108 = vmatprep.subr.bf16.mxu0 0
        %2109 = vmatpush2.bf16.msra.mxu0 0
        %2110 = vmatprep.subr.bf16.mxu0 0
        %2111 = vmatpush2.bf16.msra.mxu0 0
        %2112 = vmatprep.subr.bf16.mxu0 0
        %2113 = vmatpush2.bf16.msra.mxu0 0
        %2114 = vmatprep.mubr.bf16.mxu0 0
        %2115 = vmatmul.mubr.bf16.gmra.mxu0 %v2018
        %v2116 = vpop.f32.mrf.mxu0
        %v2117 = vadd.f32 0.0, %v2116
        %v2118 = vpop.f32.mrf.mxu0
        %v2119 = vpop.f32.mrf.mxu0
        %v2120 = vadd.f32 0.0, %v2119
        %v2121 = vpop.f32.mrf.mxu0
        %2122 = vmatprep.mubr.bf16.mxu0 0
        %2123 = vmatmul.mubr.bf16.gmra.mxu0 %v2019
        %v2124 = vpop.f32.mrf.mxu0
        %v2125 = vadd.f32 0.0, %v2124
        %v2126 = vpop.f32.mrf.mxu0
        %v2127 = vpop.f32.mrf.mxu0
        %v2128 = vadd.f32 0.0, %v2127
        %v2129 = vpop.f32.mrf.mxu0
        %2130 = vmatprep.mubr.bf16.mxu0 0
        %2131 = vmatmul.mubr.bf16.gmra.mxu0 %v2020
        %v2132 = vpop.f32.mrf.mxu0
        %v2133 = vadd.f32 0.0, %v2132
        %v2134 = vpop.f32.mrf.mxu0
        %v2135 = vpop.f32.mrf.mxu0
        %v2136 = vadd.f32 0.0, %v2135
        %v2137 = vpop.f32.mrf.mxu0
        %2138 = vmatprep.mubr.bf16.mxu0 0
        %2139 = vmatmul.mubr.bf16.gmra.mxu0 %v2021
        %v2140 = vpop.f32.mrf.mxu0
        %v2141 = vadd.f32 0.0, %v2140
        %v2142 = vpop.f32.mrf.mxu0
        %v2143 = vpop.f32.mrf.mxu0
        %v2144 = vadd.f32 0.0, %v2143
        %v2145 = vpop.f32.mrf.mxu0
        %2146 = vmatprep.mubr.bf16.mxu0 0
        %2147 = vmatmul.mubr.bf16.gmra.mxu0 %v2022
        %v2148 = vpop.f32.mrf.mxu0
        %v2149 = vadd.f32 0.0, %v2148
        %v2150 = vpop.f32.mrf.mxu0
        %v2151 = vpop.f32.mrf.mxu0
        %v2152 = vadd.f32 0.0, %v2151
        %v2153 = vpop.f32.mrf.mxu0
        %2154 = vmatprep.mubr.bf16.mxu0 0
        %2155 = vmatmul.mubr.bf16.gmra.mxu0 %v2023
        %v2156 = vpop.f32.mrf.mxu0
        %v2157 = vadd.f32 0.0, %v2156
        %v2158 = vpop.f32.mrf.mxu0
        %v2159 = vpop.f32.mrf.mxu0
        %v2160 = vadd.f32 0.0, %v2159
        %v2161 = vpop.f32.mrf.mxu0
        %2162 = vmatprep.mubr.bf16.mxu0 0
        %2163 = vmatmul.mubr.bf16.gmra.mxu0 %v2024
        %v2164 = vpop.f32.mrf.mxu0
        %v2165 = vadd.f32 0.0, %v2164
        %v2166 = vpop.f32.mrf.mxu0
        %v2167 = vpop.f32.mrf.mxu0
        %v2168 = vadd.f32 0.0, %v2167
        %v2169 = vpop.f32.mrf.mxu0
        %2170 = vmatprep.mubr.bf16.mxu0 0
        %2171 = vmatmul.mubr.bf16.gmra.mxu0 %v2025
        %v2172 = vpop.f32.mrf.mxu0
        %v2173 = vadd.f32 0.0, %v2172
        %v2174 = vpop.f32.mrf.mxu0
        %v2175 = vpop.f32.mrf.mxu0
        %v2176 = vadd.f32 0.0, %v2175
        %v2177 = vpop.f32.mrf.mxu0
        %2178 = vdwg.mxu0
        %v2179 = vadd.f32 %v1935, %v2117
        %v2180 = vadd.f32 %v1936, %v2120
        %v2181 = vadd.f32 %v1937, %v2125
        %v2182 = vadd.f32 %v1938, %v2128
        %v2183 = vadd.f32 %v1939, %v2133
        %v2184 = vadd.f32 %v1940, %v2136
        %v2185 = vadd.f32 %v1941, %v2141
        %v2186 = vadd.f32 %v1942, %v2144
        %v2187 = vadd.f32 %v1943, %v2149
        %v2188 = vadd.f32 %v1944, %v2152
        %v2189 = vadd.f32 %v1945, %v2157
        %v2190 = vadd.f32 %v1946, %v2160
        %v2191 = vadd.f32 %v1947, %v2165
        %v2192 = vadd.f32 %v1948, %v2168
        %v2193 = vadd.f32 %v1949, %v2173
        %v2194 = vadd.f32 %v1950, %v2176
        %s2195 = smul.addr %s1705, 4
        %s2196 = scalar_lea.vmem [#allocation7], %s2195
        %v2197 = vld [vmem:[%s2196] sm:$0xf]
        %v2198 = vld [vmem:[%s2196 + $0x4] sm:$0xf]
        %v2199 = vld [vmem:[%s2196 + $0x8] sm:$0xf]
        %v2200 = vld [vmem:[%s2196 + $0xc] sm:$0xf]
        %v2201 = vld [vmem:[%s2196 + $0x10] sm:$0xf]
        %v2202 = vld [vmem:[%s2196 + $0x14] sm:$0xf]
        %v2203 = vld [vmem:[%s2196 + $0x18] sm:$0xf]
        %v2204 = vld [vmem:[%s2196 + $0x1c] sm:$0xf]
        %v2205 = vld [vmem:[%s2196 + $0x20] sm:$0xf]
        %v2206 = vld [vmem:[%s2196 + $0x24] sm:$0xf]
        %v2207 = vld [vmem:[%s2196 + $0x28] sm:$0xf]
        %v2208 = vld [vmem:[%s2196 + $0x2c] sm:$0xf]
        %v2209 = vld [vmem:[%s2196 + $0x30] sm:$0xf]
        %v2210 = vld [vmem:[%s2196 + $0x34] sm:$0xf]
        %v2211 = vld [vmem:[%s2196 + $0x38] sm:$0xf]
        %v2212 = vld [vmem:[%s2196 + $0x3c] sm:$0xf]
        %s2213 = scalar_lea.vmem [#allocation8], 512
        %v2214 = vld [vmem:[%s2213] sm:$0xf]
        %v2215 = vld [vmem:[%s2213 + $0x4] sm:$0xf]
        %v2216 = vld [vmem:[%s2213 + $0x8] sm:$0xf]
        %v2217 = vld [vmem:[%s2213 + $0xc] sm:$0xf]
        %v2218 = vld [vmem:[%s2213 + $0x10] sm:$0xf]
        %v2219 = vld [vmem:[%s2213 + $0x14] sm:$0xf]
        %v2220 = vld [vmem:[%s2213 + $0x18] sm:$0xf]
        %v2221 = vld [vmem:[%s2213 + $0x1c] sm:$0xf]
        %v2222 = vld [vmem:[%s2213 + $0x20] sm:$0xf]
        %v2223 = vld [vmem:[%s2213 + $0x24] sm:$0xf]
        %v2224 = vld [vmem:[%s2213 + $0x28] sm:$0xf]
        %v2225 = vld [vmem:[%s2213 + $0x2c] sm:$0xf]
        %v2226 = vld [vmem:[%s2213 + $0x30] sm:$0xf]
        %v2227 = vld [vmem:[%s2213 + $0x34] sm:$0xf]
        %v2228 = vld [vmem:[%s2213 + $0x38] sm:$0xf]
        %v2229 = vld [vmem:[%s2213 + $0x3c] sm:$0xf]
        %v2246 = vunpack.c.l.b16 %v2197
        %v2247 = vunpack.c.l.b16 %v2198
        %v2248 = vunpack.c.l.b16 %v2199
        %v2249 = vunpack.c.l.b16 %v2200
        %v2250 = vunpack.c.l.b16 %v2201
        %v2251 = vunpack.c.l.b16 %v2202
        %v2252 = vunpack.c.l.b16 %v2203
        %v2253 = vunpack.c.l.b16 %v2204
        %v2254 = vunpack.c.l.b16 %v2205
        %v2255 = vunpack.c.l.b16 %v2206
        %v2256 = vunpack.c.l.b16 %v2207
        %v2257 = vunpack.c.l.b16 %v2208
        %v2258 = vunpack.c.l.b16 %v2209
        %v2259 = vunpack.c.l.b16 %v2210
        %v2260 = vunpack.c.l.b16 %v2211
        %v2261 = vunpack.c.l.b16 %v2212
        %v2262 = vpack.c.b16 %v2247, %v2246
        %v2263 = vpack.c.b16 %v2249, %v2248
        %v2264 = vpack.c.b16 %v2251, %v2250
        %v2265 = vpack.c.b16 %v2253, %v2252
        %v2266 = vpack.c.b16 %v2255, %v2254
        %v2267 = vpack.c.b16 %v2257, %v2256
        %v2268 = vpack.c.b16 %v2259, %v2258
        %v2269 = vpack.c.b16 %v2261, %v2260
        %v2294 = vunpack.c.l.b16 %v2214
        %v2295 = vunpack.c.l.b16 %v2215
        %v2296 = vunpack.c.l.b16 %v2216
        %v2297 = vunpack.c.l.b16 %v2217
        %v2298 = vunpack.c.l.b16 %v2218
        %v2299 = vunpack.c.l.b16 %v2219
        %v2300 = vunpack.c.l.b16 %v2220
        %v2301 = vunpack.c.l.b16 %v2221
        %v2302 = vunpack.c.l.b16 %v2222
        %v2303 = vunpack.c.l.b16 %v2223
        %v2304 = vunpack.c.l.b16 %v2224
        %v2305 = vunpack.c.l.b16 %v2225
        %v2306 = vunpack.c.l.b16 %v2226
        %v2307 = vunpack.c.l.b16 %v2227
        %v2308 = vunpack.c.l.b16 %v2228
        %v2309 = vunpack.c.l.b16 %v2229
        %v2310 = vpack.c.b16 %v2295, %v2294
        %v2311 = vpack.c.b16 %v2297, %v2296
        %v2312 = vpack.c.b16 %v2299, %v2298
        %v2313 = vpack.c.b16 %v2301, %v2300
        %v2314 = vpack.c.b16 %v2303, %v2302
        %v2315 = vpack.c.b16 %v2305, %v2304
        %v2316 = vpack.c.b16 %v2307, %v2306
        %v2317 = vpack.c.b16 %v2309, %v2308
        %2326 = vmatprep.subr.bf16.mxu0 0
        %2327 = vmatpush1.bf16.msra.mxu0 %v2317
        %2328 = vmatprep.subr.bf16.mxu0 0
        %2329 = vmatpush1.bf16.msra.mxu0 %v2316
        %2330 = vmatprep.subr.bf16.mxu0 0
        %2331 = vmatpush1.bf16.msra.mxu0 %v2315
        %2332 = vmatprep.subr.bf16.mxu0 0
        %2333 = vmatpush1.bf16.msra.mxu0 %v2314
        %2334 = vmatprep.subr.bf16.mxu0 0
        %2335 = vmatpush1.bf16.msra.mxu0 %v2313
        %2336 = vmatprep.subr.bf16.mxu0 0
        %2337 = vmatpush1.bf16.msra.mxu0 %v2312
        %2338 = vmatprep.subr.bf16.mxu0 0
        %2339 = vmatpush1.bf16.msra.mxu0 %v2311
        %2340 = vmatprep.subr.bf16.mxu0 0
        %2341 = vmatpush1.bf16.msra.mxu0 %v2310
        %2342 = vmatprep.subr.bf16.mxu0 0
        %2343 = vmatpush2.bf16.msra.mxu0 0
        %2344 = vmatprep.subr.bf16.mxu0 0
        %2345 = vmatpush2.bf16.msra.mxu0 0
        %2346 = vmatprep.subr.bf16.mxu0 0
        %2347 = vmatpush2.bf16.msra.mxu0 0
        %2348 = vmatprep.subr.bf16.mxu0 0
        %2349 = vmatpush2.bf16.msra.mxu0 0
        %2350 = vmatprep.subr.bf16.mxu0 0
        %2351 = vmatpush2.bf16.msra.mxu0 0
        %2352 = vmatprep.subr.bf16.mxu0 0
        %2353 = vmatpush2.bf16.msra.mxu0 0
        %2354 = vmatprep.subr.bf16.mxu0 0
        %2355 = vmatpush2.bf16.msra.mxu0 0
        %2356 = vmatprep.subr.bf16.mxu0 0
        %2357 = vmatpush2.bf16.msra.mxu0 0
        %2358 = vmatprep.mubr.bf16.mxu0 0
        %2359 = vmatmul.mubr.bf16.gmra.mxu0 %v2262
        %v2360 = vpop.f32.mrf.mxu0
        %v2361 = vadd.f32 0.0, %v2360
        %v2362 = vpop.f32.mrf.mxu0
        %v2363 = vpop.f32.mrf.mxu0
        %v2364 = vadd.f32 0.0, %v2363
        %v2365 = vpop.f32.mrf.mxu0
        %2366 = vmatprep.mubr.bf16.mxu0 0
        %2367 = vmatmul.mubr.bf16.gmra.mxu0 %v2263
        %v2368 = vpop.f32.mrf.mxu0
        %v2369 = vadd.f32 0.0, %v2368
        %v2370 = vpop.f32.mrf.mxu0
        %v2371 = vpop.f32.mrf.mxu0
        %v2372 = vadd.f32 0.0, %v2371
        %v2373 = vpop.f32.mrf.mxu0
        %2374 = vmatprep.mubr.bf16.mxu0 0
        %2375 = vmatmul.mubr.bf16.gmra.mxu0 %v2264
        %v2376 = vpop.f32.mrf.mxu0
        %v2377 = vadd.f32 0.0, %v2376
        %v2378 = vpop.f32.mrf.mxu0
        %v2379 = vpop.f32.mrf.mxu0
        %v2380 = vadd.f32 0.0, %v2379
        %v2381 = vpop.f32.mrf.mxu0
        %2382 = vmatprep.mubr.bf16.mxu0 0
        %2383 = vmatmul.mubr.bf16.gmra.mxu0 %v2265
        %v2384 = vpop.f32.mrf.mxu0
        %v2385 = vadd.f32 0.0, %v2384
        %v2386 = vpop.f32.mrf.mxu0
        %v2387 = vpop.f32.mrf.mxu0
        %v2388 = vadd.f32 0.0, %v2387
        %v2389 = vpop.f32.mrf.mxu0
        %2390 = vmatprep.mubr.bf16.mxu0 0
        %2391 = vmatmul.mubr.bf16.gmra.mxu0 %v2266
        %v2392 = vpop.f32.mrf.mxu0
        %v2393 = vadd.f32 0.0, %v2392
        %v2394 = vpop.f32.mrf.mxu0
        %v2395 = vpop.f32.mrf.mxu0
        %v2396 = vadd.f32 0.0, %v2395
        %v2397 = vpop.f32.mrf.mxu0
        %2398 = vmatprep.mubr.bf16.mxu0 0
        %2399 = vmatmul.mubr.bf16.gmra.mxu0 %v2267
        %v2400 = vpop.f32.mrf.mxu0
        %v2401 = vadd.f32 0.0, %v2400
        %v2402 = vpop.f32.mrf.mxu0
        %v2403 = vpop.f32.mrf.mxu0
        %v2404 = vadd.f32 0.0, %v2403
        %v2405 = vpop.f32.mrf.mxu0
        %2406 = vmatprep.mubr.bf16.mxu0 0
        %2407 = vmatmul.mubr.bf16.gmra.mxu0 %v2268
        %v2408 = vpop.f32.mrf.mxu0
        %v2409 = vadd.f32 0.0, %v2408
        %v2410 = vpop.f32.mrf.mxu0
        %v2411 = vpop.f32.mrf.mxu0
        %v2412 = vadd.f32 0.0, %v2411
        %v2413 = vpop.f32.mrf.mxu0
        %2414 = vmatprep.mubr.bf16.mxu0 0
        %2415 = vmatmul.mubr.bf16.gmra.mxu0 %v2269
        %v2416 = vpop.f32.mrf.mxu0
        %v2417 = vadd.f32 0.0, %v2416
        %v2418 = vpop.f32.mrf.mxu0
        %v2419 = vpop.f32.mrf.mxu0
        %v2420 = vadd.f32 0.0, %v2419
        %v2421 = vpop.f32.mrf.mxu0
        %2422 = vdwg.mxu0
        %v2423 = vadd.f32 %v2179, %v2361
        %v2424 = vadd.f32 %v2180, %v2364
        %v2425 = vadd.f32 %v2181, %v2369
        %v2426 = vadd.f32 %v2182, %v2372
        %v2427 = vadd.f32 %v2183, %v2377
        %v2428 = vadd.f32 %v2184, %v2380
        %v2429 = vadd.f32 %v2185, %v2385
        %v2430 = vadd.f32 %v2186, %v2388
        %v2431 = vadd.f32 %v2187, %v2393
        %v2432 = vadd.f32 %v2188, %v2396
        %v2433 = vadd.f32 %v2189, %v2401
        %v2434 = vadd.f32 %v2190, %v2404
        %v2435 = vadd.f32 %v2191, %v2409
        %v2436 = vadd.f32 %v2192, %v2412
        %v2437 = vadd.f32 %v2193, %v2417
        %v2438 = vadd.f32 %v2194, %v2420
        %v2439 = vld [vmem:[%s4] sm:$0x1]
        %v2441 = vlaneseq
        %v2442 = vshrl.u32 %v2441, 7
        %v2443 = vsub.s32 0, %v2442
        %v2444 = vrot.slane %v2439, %v2443
        %v2446 = vadd.f32 %v2423, %v2444
        %v2447 = vadd.f32 %v2424, %v2444
        %v2448 = vadd.f32 %v2425, %v2444
        %v2449 = vadd.f32 %v2426, %v2444
        %v2450 = vadd.f32 %v2427, %v2444
        %v2451 = vadd.f32 %v2428, %v2444
        %v2452 = vadd.f32 %v2429, %v2444
        %v2453 = vadd.f32 %v2430, %v2444
        %v2454 = vadd.f32 %v2431, %v2444
        %v2455 = vadd.f32 %v2432, %v2444
        %v2456 = vadd.f32 %v2433, %v2444
        %v2457 = vadd.f32 %v2434, %v2444
        %v2458 = vadd.f32 %v2435, %v2444
        %v2459 = vadd.f32 %v2436, %v2444
        %v2460 = vadd.f32 %v2437, %v2444
        %v2461 = vadd.f32 %v2438, %v2444
        %v2462 = vpack.c.bf16 %v2447, %v2446
        %v2463 = vpack.c.bf16 %v2449, %v2448
        %v2464 = vpack.c.bf16 %v2451, %v2450
        %v2465 = vpack.c.bf16 %v2453, %v2452
        %v2466 = vpack.c.bf16 %v2455, %v2454
        %v2467 = vpack.c.bf16 %v2457, %v2456
        %v2468 = vpack.c.bf16 %v2459, %v2458
        %v2469 = vpack.c.bf16 %v2461, %v2460
        %v2478 = vunpack.c.l.b16 %v2462
        %v2479 = vunpack.c.h.b16 %v2462
        %v2480 = vunpack.c.l.b16 %v2463
        %v2481 = vunpack.c.h.b16 %v2463
        %v2482 = vunpack.c.l.b16 %v2464
        %v2483 = vunpack.c.h.b16 %v2464
        %v2484 = vunpack.c.l.b16 %v2465
        %v2485 = vunpack.c.h.b16 %v2465
        %v2486 = vunpack.c.l.b16 %v2466
        %v2487 = vunpack.c.h.b16 %v2466
        %v2488 = vunpack.c.l.b16 %v2467
        %v2489 = vunpack.c.h.b16 %v2467
        %v2490 = vunpack.c.l.b16 %v2468
        %v2491 = vunpack.c.h.b16 %v2468
        %v2492 = vunpack.c.l.b16 %v2469
        %v2493 = vunpack.c.h.b16 %v2469
        %v2494 = vpack.c.b16 %v2478, %v2478
        %v2495 = vpack.c.b16 %v2479, %v2479
        %v2496 = vpack.c.b16 %v2480, %v2480
        %v2497 = vpack.c.b16 %v2481, %v2481
        %v2498 = vpack.c.b16 %v2482, %v2482
        %v2499 = vpack.c.b16 %v2483, %v2483
        %v2500 = vpack.c.b16 %v2484, %v2484
        %v2501 = vpack.c.b16 %v2485, %v2485
        %v2502 = vpack.c.b16 %v2486, %v2486
        %v2503 = vpack.c.b16 %v2487, %v2487
        %v2504 = vpack.c.b16 %v2488, %v2488
        %v2505 = vpack.c.b16 %v2489, %v2489
        %v2506 = vpack.c.b16 %v2490, %v2490
        %v2507 = vpack.c.b16 %v2491, %v2491
        %v2508 = vpack.c.b16 %v2492, %v2492
        %v2509 = vpack.c.b16 %v2493, %v2493
        %2526 = vst [vmem:[%s261] sm:$0xf] %v2494
        %2527 = vst [vmem:[%s261 + $0x4] sm:$0xf] %v2495
        %2528 = vst [vmem:[%s261 + $0x8] sm:$0xf] %v2496
        %2529 = vst [vmem:[%s261 + $0xc] sm:$0xf] %v2497
        %2530 = vst [vmem:[%s261 + $0x10] sm:$0xf] %v2498
        %2531 = vst [vmem:[%s261 + $0x14] sm:$0xf] %v2499
        %2532 = vst [vmem:[%s261 + $0x18] sm:$0xf] %v2500
        %2533 = vst [vmem:[%s261 + $0x1c] sm:$0xf] %v2501
        %2534 = vst [vmem:[%s261 + $0x20] sm:$0xf] %v2502
        %2535 = vst [vmem:[%s261 + $0x24] sm:$0xf] %v2503
        %2536 = vst [vmem:[%s261 + $0x28] sm:$0xf] %v2504
        %2537 = vst [vmem:[%s261 + $0x2c] sm:$0xf] %v2505
        %2538 = vst [vmem:[%s261 + $0x30] sm:$0xf] %v2506
        %2539 = vst [vmem:[%s261 + $0x34] sm:$0xf] %v2507
        %2540 = vst [vmem:[%s261 + $0x38] sm:$0xf] %v2508
        %2541 = vst [vmem:[%s261 + $0x3c] sm:$0xf] %v2509
        %s2542 = sadd.s32 %s266, 36
        %s2543 = smul.addr %s2542, 4
        %s2544 = scalar_lea.vmem [#allocation2], %s2543
        %v2545 = vld [vmem:[%s2544] sm:$0xf]
        %v2546 = vld [vmem:[%s2544 + $0x4] sm:$0xf]
        %v2547 = vld [vmem:[%s2544 + $0x8] sm:$0xf]
        %v2548 = vld [vmem:[%s2544 + $0xc] sm:$0xf]
        %v2549 = vld [vmem:[%s2544 + $0x10] sm:$0xf]
        %v2550 = vld [vmem:[%s2544 + $0x14] sm:$0xf]
        %v2551 = vld [vmem:[%s2544 + $0x18] sm:$0xf]
        %v2552 = vld [vmem:[%s2544 + $0x1c] sm:$0xf]
        %v2553 = vld [vmem:[%s2544 + $0x20] sm:$0xf]
        %v2554 = vld [vmem:[%s2544 + $0x24] sm:$0xf]
        %v2555 = vld [vmem:[%s2544 + $0x28] sm:$0xf]
        %v2556 = vld [vmem:[%s2544 + $0x2c] sm:$0xf]
        %v2557 = vld [vmem:[%s2544 + $0x30] sm:$0xf]
        %v2558 = vld [vmem:[%s2544 + $0x34] sm:$0xf]
        %v2559 = vld [vmem:[%s2544 + $0x38] sm:$0xf]
        %v2560 = vld [vmem:[%s2544 + $0x3c] sm:$0xf]
        %v2561 = vld [vmem:[#allocation8] sm:$0xf]
        %v2562 = vld [vmem:[#allocation8 + $0x4] sm:$0xf]
        %v2563 = vld [vmem:[#allocation8 + $0x8] sm:$0xf]
        %v2564 = vld [vmem:[#allocation8 + $0xc] sm:$0xf]
        %v2565 = vld [vmem:[#allocation8 + $0x10] sm:$0xf]
        %v2566 = vld [vmem:[#allocation8 + $0x14] sm:$0xf]
        %v2567 = vld [vmem:[#allocation8 + $0x18] sm:$0xf]
        %v2568 = vld [vmem:[#allocation8 + $0x1c] sm:$0xf]
        %v2569 = vld [vmem:[#allocation8 + $0x20] sm:$0xf]
        %v2570 = vld [vmem:[#allocation8 + $0x24] sm:$0xf]
        %v2571 = vld [vmem:[#allocation8 + $0x28] sm:$0xf]
        %v2572 = vld [vmem:[#allocation8 + $0x2c] sm:$0xf]
        %v2573 = vld [vmem:[#allocation8 + $0x30] sm:$0xf]
        %v2574 = vld [vmem:[#allocation8 + $0x34] sm:$0xf]
        %v2575 = vld [vmem:[#allocation8 + $0x38] sm:$0xf]
        %v2576 = vld [vmem:[#allocation8 + $0x3c] sm:$0xf]
        %s2577 = smul.addr %s2542, 4
        %s2578 = scalar_lea.vmem [#allocation5], %s2577
        %v2579 = vld [vmem:[%s2578] sm:$0xf]
        %v2580 = vld [vmem:[%s2578 + $0x4] sm:$0xf]
        %v2581 = vld [vmem:[%s2578 + $0x8] sm:$0xf]
        %v2582 = vld [vmem:[%s2578 + $0xc] sm:$0xf]
        %v2583 = vld [vmem:[%s2578 + $0x10] sm:$0xf]
        %v2584 = vld [vmem:[%s2578 + $0x14] sm:$0xf]
        %v2585 = vld [vmem:[%s2578 + $0x18] sm:$0xf]
        %v2586 = vld [vmem:[%s2578 + $0x1c] sm:$0xf]
        %v2587 = vld [vmem:[%s2578 + $0x20] sm:$0xf]
        %v2588 = vld [vmem:[%s2578 + $0x24] sm:$0xf]
        %v2589 = vld [vmem:[%s2578 + $0x28] sm:$0xf]
        %v2590 = vld [vmem:[%s2578 + $0x2c] sm:$0xf]
        %v2591 = vld [vmem:[%s2578 + $0x30] sm:$0xf]
        %v2592 = vld [vmem:[%s2578 + $0x34] sm:$0xf]
        %v2593 = vld [vmem:[%s2578 + $0x38] sm:$0xf]
        %v2594 = vld [vmem:[%s2578 + $0x3c] sm:$0xf]
        %v2595 = vld [vmem:[%s320] sm:$0xf]
        %v2596 = vld [vmem:[%s320 + $0x4] sm:$0xf]
        %v2597 = vld [vmem:[%s320 + $0x8] sm:$0xf]
        %v2598 = vld [vmem:[%s320 + $0xc] sm:$0xf]
        %v2599 = vld [vmem:[%s320 + $0x10] sm:$0xf]
        %v2600 = vld [vmem:[%s320 + $0x14] sm:$0xf]
        %v2601 = vld [vmem:[%s320 + $0x18] sm:$0xf]
        %v2602 = vld [vmem:[%s320 + $0x1c] sm:$0xf]
        %v2603 = vld [vmem:[%s320 + $0x20] sm:$0xf]
        %v2604 = vld [vmem:[%s320 + $0x24] sm:$0xf]
        %v2605 = vld [vmem:[%s320 + $0x28] sm:$0xf]
        %v2606 = vld [vmem:[%s320 + $0x2c] sm:$0xf]
        %v2607 = vld [vmem:[%s320 + $0x30] sm:$0xf]
        %v2608 = vld [vmem:[%s320 + $0x34] sm:$0xf]
        %v2609 = vld [vmem:[%s320 + $0x38] sm:$0xf]
        %v2610 = vld [vmem:[%s320 + $0x3c] sm:$0xf]
        %v2627 = vunpack.c.l.b16 %v2579
        %v2628 = vunpack.c.l.b16 %v2580
        %v2629 = vunpack.c.l.b16 %v2581
        %v2630 = vunpack.c.l.b16 %v2582
        %v2631 = vunpack.c.l.b16 %v2583
        %v2632 = vunpack.c.l.b16 %v2584
        %v2633 = vunpack.c.l.b16 %v2585
        %v2634 = vunpack.c.l.b16 %v2586
        %v2635 = vunpack.c.l.b16 %v2587
        %v2636 = vunpack.c.l.b16 %v2588
        %v2637 = vunpack.c.l.b16 %v2589
        %v2638 = vunpack.c.l.b16 %v2590
        %v2639 = vunpack.c.l.b16 %v2591
        %v2640 = vunpack.c.l.b16 %v2592
        %v2641 = vunpack.c.l.b16 %v2593
        %v2642 = vunpack.c.l.b16 %v2594
        %v2643 = vpack.c.b16 %v2628, %v2627
        %v2644 = vpack.c.b16 %v2630, %v2629
        %v2645 = vpack.c.b16 %v2632, %v2631
        %v2646 = vpack.c.b16 %v2634, %v2633
        %v2647 = vpack.c.b16 %v2636, %v2635
        %v2648 = vpack.c.b16 %v2638, %v2637
        %v2649 = vpack.c.b16 %v2640, %v2639
        %v2650 = vpack.c.b16 %v2642, %v2641
        %v2675 = vunpack.c.l.b16 %v2595
        %v2676 = vunpack.c.l.b16 %v2596
        %v2677 = vunpack.c.l.b16 %v2597
        %v2678 = vunpack.c.l.b16 %v2598
        %v2679 = vunpack.c.l.b16 %v2599
        %v2680 = vunpack.c.l.b16 %v2600
        %v2681 = vunpack.c.l.b16 %v2601
        %v2682 = vunpack.c.l.b16 %v2602
        %v2683 = vunpack.c.l.b16 %v2603
        %v2684 = vunpack.c.l.b16 %v2604
        %v2685 = vunpack.c.l.b16 %v2605
        %v2686 = vunpack.c.l.b16 %v2606
        %v2687 = vunpack.c.l.b16 %v2607
        %v2688 = vunpack.c.l.b16 %v2608
        %v2689 = vunpack.c.l.b16 %v2609
        %v2690 = vunpack.c.l.b16 %v2610
        %v2691 = vpack.c.b16 %v2676, %v2675
        %v2692 = vpack.c.b16 %v2678, %v2677
        %v2693 = vpack.c.b16 %v2680, %v2679
        %v2694 = vpack.c.b16 %v2682, %v2681
        %v2695 = vpack.c.b16 %v2684, %v2683
        %v2696 = vpack.c.b16 %v2686, %v2685
        %v2697 = vpack.c.b16 %v2688, %v2687
        %v2698 = vpack.c.b16 %v2690, %v2689
        %2707 = vmatprep.subr.bf16.mxu0 0
        %2708 = vmatpush1.bf16.msra.mxu0 %v2698
        %2709 = vmatprep.subr.bf16.mxu0 0
        %2710 = vmatpush1.bf16.msra.mxu0 %v2697
        %2711 = vmatprep.subr.bf16.mxu0 0
        %2712 = vmatpush1.bf16.msra.mxu0 %v2696
        %2713 = vmatprep.subr.bf16.mxu0 0
        %2714 = vmatpush1.bf16.msra.mxu0 %v2695
        %2715 = vmatprep.subr.bf16.mxu0 0
        %2716 = vmatpush1.bf16.msra.mxu0 %v2694
        %2717 = vmatprep.subr.bf16.mxu0 0
        %2718 = vmatpush1.bf16.msra.mxu0 %v2693
        %2719 = vmatprep.subr.bf16.mxu0 0
        %2720 = vmatpush1.bf16.msra.mxu0 %v2692
        %2721 = vmatprep.subr.bf16.mxu0 0
        %2722 = vmatpush1.bf16.msra.mxu0 %v2691
        %2723 = vmatprep.subr.bf16.mxu0 0
        %2724 = vmatpush2.bf16.msra.mxu0 0
        %2725 = vmatprep.subr.bf16.mxu0 0
        %2726 = vmatpush2.bf16.msra.mxu0 0
        %2727 = vmatprep.subr.bf16.mxu0 0
        %2728 = vmatpush2.bf16.msra.mxu0 0
        %2729 = vmatprep.subr.bf16.mxu0 0
        %2730 = vmatpush2.bf16.msra.mxu0 0
        %2731 = vmatprep.subr.bf16.mxu0 0
        %2732 = vmatpush2.bf16.msra.mxu0 0
        %2733 = vmatprep.subr.bf16.mxu0 0
        %2734 = vmatpush2.bf16.msra.mxu0 0
        %2735 = vmatprep.subr.bf16.mxu0 0
        %2736 = vmatpush2.bf16.msra.mxu0 0
        %2737 = vmatprep.subr.bf16.mxu0 0
        %2738 = vmatpush2.bf16.msra.mxu0 0
        %2739 = vmatprep.mubr.bf16.mxu0 0
        %2740 = vmatmul.mubr.bf16.gmra.mxu0 %v2643
        %v2741 = vpop.f32.mrf.mxu0
        %v2742 = vadd.f32 0.0, %v2741
        %v2743 = vpop.f32.mrf.mxu0
        %v2744 = vpop.f32.mrf.mxu0
        %v2745 = vadd.f32 0.0, %v2744
        %v2746 = vpop.f32.mrf.mxu0
        %2747 = vmatprep.mubr.bf16.mxu0 0
        %2748 = vmatmul.mubr.bf16.gmra.mxu0 %v2644
        %v2749 = vpop.f32.mrf.mxu0
        %v2750 = vadd.f32 0.0, %v2749
        %v2751 = vpop.f32.mrf.mxu0
        %v2752 = vpop.f32.mrf.mxu0
        %v2753 = vadd.f32 0.0, %v2752
        %v2754 = vpop.f32.mrf.mxu0
        %2755 = vmatprep.mubr.bf16.mxu0 0
        %2756 = vmatmul.mubr.bf16.gmra.mxu0 %v2645
        %v2757 = vpop.f32.mrf.mxu0
        %v2758 = vadd.f32 0.0, %v2757
        %v2759 = vpop.f32.mrf.mxu0
        %v2760 = vpop.f32.mrf.mxu0
        %v2761 = vadd.f32 0.0, %v2760
        %v2762 = vpop.f32.mrf.mxu0
        %2763 = vmatprep.mubr.bf16.mxu0 0
        %2764 = vmatmul.mubr.bf16.gmra.mxu0 %v2646
        %v2765 = vpop.f32.mrf.mxu0
        %v2766 = vadd.f32 0.0, %v2765
        %v2767 = vpop.f32.mrf.mxu0
        %v2768 = vpop.f32.mrf.mxu0
        %v2769 = vadd.f32 0.0, %v2768
        %v2770 = vpop.f32.mrf.mxu0
        %2771 = vmatprep.mubr.bf16.mxu0 0
        %2772 = vmatmul.mubr.bf16.gmra.mxu0 %v2647
        %v2773 = vpop.f32.mrf.mxu0
        %v2774 = vadd.f32 0.0, %v2773
        %v2775 = vpop.f32.mrf.mxu0
        %v2776 = vpop.f32.mrf.mxu0
        %v2777 = vadd.f32 0.0, %v2776
        %v2778 = vpop.f32.mrf.mxu0
        %2779 = vmatprep.mubr.bf16.mxu0 0
        %2780 = vmatmul.mubr.bf16.gmra.mxu0 %v2648
        %v2781 = vpop.f32.mrf.mxu0
        %v2782 = vadd.f32 0.0, %v2781
        %v2783 = vpop.f32.mrf.mxu0
        %v2784 = vpop.f32.mrf.mxu0
        %v2785 = vadd.f32 0.0, %v2784
        %v2786 = vpop.f32.mrf.mxu0
        %2787 = vmatprep.mubr.bf16.mxu0 0
        %2788 = vmatmul.mubr.bf16.gmra.mxu0 %v2649
        %v2789 = vpop.f32.mrf.mxu0
        %v2790 = vadd.f32 0.0, %v2789
        %v2791 = vpop.f32.mrf.mxu0
        %v2792 = vpop.f32.mrf.mxu0
        %v2793 = vadd.f32 0.0, %v2792
        %v2794 = vpop.f32.mrf.mxu0
        %2795 = vmatprep.mubr.bf16.mxu0 0
        %2796 = vmatmul.mubr.bf16.gmra.mxu0 %v2650
        %v2797 = vpop.f32.mrf.mxu0
        %v2798 = vadd.f32 0.0, %v2797
        %v2799 = vpop.f32.mrf.mxu0
        %v2800 = vpop.f32.mrf.mxu0
        %v2801 = vadd.f32 0.0, %v2800
        %v2802 = vpop.f32.mrf.mxu0
        %2803 = vdwg.mxu0
        %v2820 = vunpack.c.l.b16 %v2545
        %v2821 = vunpack.c.l.b16 %v2546
        %v2822 = vunpack.c.l.b16 %v2547
        %v2823 = vunpack.c.l.b16 %v2548
        %v2824 = vunpack.c.l.b16 %v2549
        %v2825 = vunpack.c.l.b16 %v2550
        %v2826 = vunpack.c.l.b16 %v2551
        %v2827 = vunpack.c.l.b16 %v2552
        %v2828 = vunpack.c.l.b16 %v2553
        %v2829 = vunpack.c.l.b16 %v2554
        %v2830 = vunpack.c.l.b16 %v2555
        %v2831 = vunpack.c.l.b16 %v2556
        %v2832 = vunpack.c.l.b16 %v2557
        %v2833 = vunpack.c.l.b16 %v2558
        %v2834 = vunpack.c.l.b16 %v2559
        %v2835 = vunpack.c.l.b16 %v2560
        %v2836 = vpack.c.b16 %v2821, %v2820
        %v2837 = vpack.c.b16 %v2823, %v2822
        %v2838 = vpack.c.b16 %v2825, %v2824
        %v2839 = vpack.c.b16 %v2827, %v2826
        %v2840 = vpack.c.b16 %v2829, %v2828
        %v2841 = vpack.c.b16 %v2831, %v2830
        %v2842 = vpack.c.b16 %v2833, %v2832
        %v2843 = vpack.c.b16 %v2835, %v2834
        %v2868 = vunpack.c.l.b16 %v2561
        %v2869 = vunpack.c.l.b16 %v2562
        %v2870 = vunpack.c.l.b16 %v2563
        %v2871 = vunpack.c.l.b16 %v2564
        %v2872 = vunpack.c.l.b16 %v2565
        %v2873 = vunpack.c.l.b16 %v2566
        %v2874 = vunpack.c.l.b16 %v2567
        %v2875 = vunpack.c.l.b16 %v2568
        %v2876 = vunpack.c.l.b16 %v2569
        %v2877 = vunpack.c.l.b16 %v2570
        %v2878 = vunpack.c.l.b16 %v2571
        %v2879 = vunpack.c.l.b16 %v2572
        %v2880 = vunpack.c.l.b16 %v2573
        %v2881 = vunpack.c.l.b16 %v2574
        %v2882 = vunpack.c.l.b16 %v2575
        %v2883 = vunpack.c.l.b16 %v2576
        %v2884 = vpack.c.b16 %v2869, %v2868
        %v2885 = vpack.c.b16 %v2871, %v2870
        %v2886 = vpack.c.b16 %v2873, %v2872
        %v2887 = vpack.c.b16 %v2875, %v2874
        %v2888 = vpack.c.b16 %v2877, %v2876
        %v2889 = vpack.c.b16 %v2879, %v2878
        %v2890 = vpack.c.b16 %v2881, %v2880
        %v2891 = vpack.c.b16 %v2883, %v2882
        %2900 = vmatprep.subr.bf16.mxu0 0
        %2901 = vmatpush1.bf16.msra.mxu0 %v2891
        %2902 = vmatprep.subr.bf16.mxu0 0
        %2903 = vmatpush1.bf16.msra.mxu0 %v2890
        %2904 = vmatprep.subr.bf16.mxu0 0
        %2905 = vmatpush1.bf16.msra.mxu0 %v2889
        %2906 = vmatprep.subr.bf16.mxu0 0
        %2907 = vmatpush1.bf16.msra.mxu0 %v2888
        %2908 = vmatprep.subr.bf16.mxu0 0
        %2909 = vmatpush1.bf16.msra.mxu0 %v2887
        %2910 = vmatprep.subr.bf16.mxu0 0
        %2911 = vmatpush1.bf16.msra.mxu0 %v2886
        %2912 = vmatprep.subr.bf16.mxu0 0
        %2913 = vmatpush1.bf16.msra.mxu0 %v2885
        %2914 = vmatprep.subr.bf16.mxu0 0
        %2915 = vmatpush1.bf16.msra.mxu0 %v2884
        %2916 = vmatprep.subr.bf16.mxu0 0
        %2917 = vmatpush2.bf16.msra.mxu0 0
        %2918 = vmatprep.subr.bf16.mxu0 0
        %2919 = vmatpush2.bf16.msra.mxu0 0
        %2920 = vmatprep.subr.bf16.mxu0 0
        %2921 = vmatpush2.bf16.msra.mxu0 0
        %2922 = vmatprep.subr.bf16.mxu0 0
        %2923 = vmatpush2.bf16.msra.mxu0 0
        %2924 = vmatprep.subr.bf16.mxu0 0
        %2925 = vmatpush2.bf16.msra.mxu0 0
        %2926 = vmatprep.subr.bf16.mxu0 0
        %2927 = vmatpush2.bf16.msra.mxu0 0
        %2928 = vmatprep.subr.bf16.mxu0 0
        %2929 = vmatpush2.bf16.msra.mxu0 0
        %2930 = vmatprep.subr.bf16.mxu0 0
        %2931 = vmatpush2.bf16.msra.mxu0 0
        %2932 = vmatprep.mubr.bf16.mxu0 0
        %2933 = vmatmul.mubr.bf16.gmra.mxu0 %v2836
        %v2934 = vpop.f32.mrf.mxu0
        %v2935 = vadd.f32 %v2742, %v2934
        %v2936 = vpop.f32.mrf.mxu0
        %v2937 = vpop.f32.mrf.mxu0
        %v2938 = vadd.f32 %v2745, %v2937
        %v2939 = vpop.f32.mrf.mxu0
        %2940 = vmatprep.mubr.bf16.mxu0 0
        %2941 = vmatmul.mubr.bf16.gmra.mxu0 %v2837
        %v2942 = vpop.f32.mrf.mxu0
        %v2943 = vadd.f32 %v2750, %v2942
        %v2944 = vpop.f32.mrf.mxu0
        %v2945 = vpop.f32.mrf.mxu0
        %v2946 = vadd.f32 %v2753, %v2945
        %v2947 = vpop.f32.mrf.mxu0
        %2948 = vmatprep.mubr.bf16.mxu0 0
        %2949 = vmatmul.mubr.bf16.gmra.mxu0 %v2838
        %v2950 = vpop.f32.mrf.mxu0
        %v2951 = vadd.f32 %v2758, %v2950
        %v2952 = vpop.f32.mrf.mxu0
        %v2953 = vpop.f32.mrf.mxu0
        %v2954 = vadd.f32 %v2761, %v2953
        %v2955 = vpop.f32.mrf.mxu0
        %2956 = vmatprep.mubr.bf16.mxu0 0
        %2957 = vmatmul.mubr.bf16.gmra.mxu0 %v2839
        %v2958 = vpop.f32.mrf.mxu0
        %v2959 = vadd.f32 %v2766, %v2958
        %v2960 = vpop.f32.mrf.mxu0
        %v2961 = vpop.f32.mrf.mxu0
        %v2962 = vadd.f32 %v2769, %v2961
        %v2963 = vpop.f32.mrf.mxu0
        %2964 = vmatprep.mubr.bf16.mxu0 0
        %2965 = vmatmul.mubr.bf16.gmra.mxu0 %v2840
        %v2966 = vpop.f32.mrf.mxu0
        %v2967 = vadd.f32 %v2774, %v2966
        %v2968 = vpop.f32.mrf.mxu0
        %v2969 = vpop.f32.mrf.mxu0
        %v2970 = vadd.f32 %v2777, %v2969
        %v2971 = vpop.f32.mrf.mxu0
        %2972 = vmatprep.mubr.bf16.mxu0 0
        %2973 = vmatmul.mubr.bf16.gmra.mxu0 %v2841
        %v2974 = vpop.f32.mrf.mxu0
        %v2975 = vadd.f32 %v2782, %v2974
        %v2976 = vpop.f32.mrf.mxu0
        %v2977 = vpop.f32.mrf.mxu0
        %v2978 = vadd.f32 %v2785, %v2977
        %v2979 = vpop.f32.mrf.mxu0
        %2980 = vmatprep.mubr.bf16.mxu0 0
        %2981 = vmatmul.mubr.bf16.gmra.mxu0 %v2842
        %v2982 = vpop.f32.mrf.mxu0
        %v2983 = vadd.f32 %v2790, %v2982
        %v2984 = vpop.f32.mrf.mxu0
        %v2985 = vpop.f32.mrf.mxu0
        %v2986 = vadd.f32 %v2793, %v2985
        %v2987 = vpop.f32.mrf.mxu0
        %2988 = vmatprep.mubr.bf16.mxu0 0
        %2989 = vmatmul.mubr.bf16.gmra.mxu0 %v2843
        %v2990 = vpop.f32.mrf.mxu0
        %v2991 = vadd.f32 %v2798, %v2990
        %v2992 = vpop.f32.mrf.mxu0
        %v2993 = vpop.f32.mrf.mxu0
        %v2994 = vadd.f32 %v2801, %v2993
        %v2995 = vpop.f32.mrf.mxu0
        %2996 = vdwg.mxu0
        %s2997 = smul.addr %s2542, 4
        %s2998 = scalar_lea.vmem [#allocation7], %s2997
        %v2999 = vld [vmem:[%s2998] sm:$0xf]
        %v3000 = vld [vmem:[%s2998 + $0x4] sm:$0xf]
        %v3001 = vld [vmem:[%s2998 + $0x8] sm:$0xf]
        %v3002 = vld [vmem:[%s2998 + $0xc] sm:$0xf]
        %v3003 = vld [vmem:[%s2998 + $0x10] sm:$0xf]
        %v3004 = vld [vmem:[%s2998 + $0x14] sm:$0xf]
        %v3005 = vld [vmem:[%s2998 + $0x18] sm:$0xf]
        %v3006 = vld [vmem:[%s2998 + $0x1c] sm:$0xf]
        %v3007 = vld [vmem:[%s2998 + $0x20] sm:$0xf]
        %v3008 = vld [vmem:[%s2998 + $0x24] sm:$0xf]
        %v3009 = vld [vmem:[%s2998 + $0x28] sm:$0xf]
        %v3010 = vld [vmem:[%s2998 + $0x2c] sm:$0xf]
        %v3011 = vld [vmem:[%s2998 + $0x30] sm:$0xf]
        %v3012 = vld [vmem:[%s2998 + $0x34] sm:$0xf]
        %v3013 = vld [vmem:[%s2998 + $0x38] sm:$0xf]
        %v3014 = vld [vmem:[%s2998 + $0x3c] sm:$0xf]
        %v3015 = vld [vmem:[%s741] sm:$0xf]
        %v3016 = vld [vmem:[%s741 + $0x4] sm:$0xf]
        %v3017 = vld [vmem:[%s741 + $0x8] sm:$0xf]
        %v3018 = vld [vmem:[%s741 + $0xc] sm:$0xf]
        %v3019 = vld [vmem:[%s741 + $0x10] sm:$0xf]
        %v3020 = vld [vmem:[%s741 + $0x14] sm:$0xf]
        %v3021 = vld [vmem:[%s741 + $0x18] sm:$0xf]
        %v3022 = vld [vmem:[%s741 + $0x1c] sm:$0xf]
        %v3023 = vld [vmem:[%s741 + $0x20] sm:$0xf]
        %v3024 = vld [vmem:[%s741 + $0x24] sm:$0xf]
        %v3025 = vld [vmem:[%s741 + $0x28] sm:$0xf]
        %v3026 = vld [vmem:[%s741 + $0x2c] sm:$0xf]
        %v3027 = vld [vmem:[%s741 + $0x30] sm:$0xf]
        %v3028 = vld [vmem:[%s741 + $0x34] sm:$0xf]
        %v3029 = vld [vmem:[%s741 + $0x38] sm:$0xf]
        %v3030 = vld [vmem:[%s741 + $0x3c] sm:$0xf]
        %v3047 = vunpack.c.l.b16 %v2999
        %v3048 = vunpack.c.l.b16 %v3000
        %v3049 = vunpack.c.l.b16 %v3001
        %v3050 = vunpack.c.l.b16 %v3002
        %v3051 = vunpack.c.l.b16 %v3003
        %v3052 = vunpack.c.l.b16 %v3004
        %v3053 = vunpack.c.l.b16 %v3005
        %v3054 = vunpack.c.l.b16 %v3006
        %v3055 = vunpack.c.l.b16 %v3007
        %v3056 = vunpack.c.l.b16 %v3008
        %v3057 = vunpack.c.l.b16 %v3009
        %v3058 = vunpack.c.l.b16 %v3010
        %v3059 = vunpack.c.l.b16 %v3011
        %v3060 = vunpack.c.l.b16 %v3012
        %v3061 = vunpack.c.l.b16 %v3013
        %v3062 = vunpack.c.l.b16 %v3014
        %v3063 = vpack.c.b16 %v3048, %v3047
        %v3064 = vpack.c.b16 %v3050, %v3049
        %v3065 = vpack.c.b16 %v3052, %v3051
        %v3066 = vpack.c.b16 %v3054, %v3053
        %v3067 = vpack.c.b16 %v3056, %v3055
        %v3068 = vpack.c.b16 %v3058, %v3057
        %v3069 = vpack.c.b16 %v3060, %v3059
        %v3070 = vpack.c.b16 %v3062, %v3061
        %v3095 = vunpack.c.l.b16 %v3015
        %v3096 = vunpack.c.l.b16 %v3016
        %v3097 = vunpack.c.l.b16 %v3017
        %v3098 = vunpack.c.l.b16 %v3018
        %v3099 = vunpack.c.l.b16 %v3019
        %v3100 = vunpack.c.l.b16 %v3020
        %v3101 = vunpack.c.l.b16 %v3021
        %v3102 = vunpack.c.l.b16 %v3022
        %v3103 = vunpack.c.l.b16 %v3023
        %v3104 = vunpack.c.l.b16 %v3024
        %v3105 = vunpack.c.l.b16 %v3025
        %v3106 = vunpack.c.l.b16 %v3026
        %v3107 = vunpack.c.l.b16 %v3027
        %v3108 = vunpack.c.l.b16 %v3028
        %v3109 = vunpack.c.l.b16 %v3029
        %v3110 = vunpack.c.l.b16 %v3030
        %v3111 = vpack.c.b16 %v3096, %v3095
        %v3112 = vpack.c.b16 %v3098, %v3097
        %v3113 = vpack.c.b16 %v3100, %v3099
        %v3114 = vpack.c.b16 %v3102, %v3101
        %v3115 = vpack.c.b16 %v3104, %v3103
        %v3116 = vpack.c.b16 %v3106, %v3105
        %v3117 = vpack.c.b16 %v3108, %v3107
        %v3118 = vpack.c.b16 %v3110, %v3109
        %3127 = vmatprep.subr.bf16.mxu0 0
        %3128 = vmatpush1.bf16.msra.mxu0 %v3118
        %3129 = vmatprep.subr.bf16.mxu0 0
        %3130 = vmatpush1.bf16.msra.mxu0 %v3117
        %3131 = vmatprep.subr.bf16.mxu0 0
        %3132 = vmatpush1.bf16.msra.mxu0 %v3116
        %3133 = vmatprep.subr.bf16.mxu0 0
        %3134 = vmatpush1.bf16.msra.mxu0 %v3115
        %3135 = vmatprep.subr.bf16.mxu0 0
        %3136 = vmatpush1.bf16.msra.mxu0 %v3114
        %3137 = vmatprep.subr.bf16.mxu0 0
        %3138 = vmatpush1.bf16.msra.mxu0 %v3113
        %3139 = vmatprep.subr.bf16.mxu0 0
        %3140 = vmatpush1.bf16.msra.mxu0 %v3112
        %3141 = vmatprep.subr.bf16.mxu0 0
        %3142 = vmatpush1.bf16.msra.mxu0 %v3111
        %3143 = vmatprep.subr.bf16.mxu0 0
        %3144 = vmatpush2.bf16.msra.mxu0 0
        %3145 = vmatprep.subr.bf16.mxu0 0
        %3146 = vmatpush2.bf16.msra.mxu0 0
        %3147 = vmatprep.subr.bf16.mxu0 0
        %3148 = vmatpush2.bf16.msra.mxu0 0
        %3149 = vmatprep.subr.bf16.mxu0 0
        %3150 = vmatpush2.bf16.msra.mxu0 0
        %3151 = vmatprep.subr.bf16.mxu0 0
        %3152 = vmatpush2.bf16.msra.mxu0 0
        %3153 = vmatprep.subr.bf16.mxu0 0
        %3154 = vmatpush2.bf16.msra.mxu0 0
        %3155 = vmatprep.subr.bf16.mxu0 0
        %3156 = vmatpush2.bf16.msra.mxu0 0
        %3157 = vmatprep.subr.bf16.mxu0 0
        %3158 = vmatpush2.bf16.msra.mxu0 0
        %3159 = vmatprep.mubr.bf16.mxu0 0
        %3160 = vmatmul.mubr.bf16.gmra.mxu0 %v3063
        %v3161 = vpop.f32.mrf.mxu0
        %v3162 = vadd.f32 0.0, %v3161
        %v3163 = vpop.f32.mrf.mxu0
        %v3164 = vpop.f32.mrf.mxu0
        %v3165 = vadd.f32 0.0, %v3164
        %v3166 = vpop.f32.mrf.mxu0
        %3167 = vmatprep.mubr.bf16.mxu0 0
        %3168 = vmatmul.mubr.bf16.gmra.mxu0 %v3064
        %v3169 = vpop.f32.mrf.mxu0
        %v3170 = vadd.f32 0.0, %v3169
        %v3171 = vpop.f32.mrf.mxu0
        %v3172 = vpop.f32.mrf.mxu0
        %v3173 = vadd.f32 0.0, %v3172
        %v3174 = vpop.f32.mrf.mxu0
        %3175 = vmatprep.mubr.bf16.mxu0 0
        %3176 = vmatmul.mubr.bf16.gmra.mxu0 %v3065
        %v3177 = vpop.f32.mrf.mxu0
        %v3178 = vadd.f32 0.0, %v3177
        %v3179 = vpop.f32.mrf.mxu0
        %v3180 = vpop.f32.mrf.mxu0
        %v3181 = vadd.f32 0.0, %v3180
        %v3182 = vpop.f32.mrf.mxu0
        %3183 = vmatprep.mubr.bf16.mxu0 0
        %3184 = vmatmul.mubr.bf16.gmra.mxu0 %v3066
        %v3185 = vpop.f32.mrf.mxu0
        %v3186 = vadd.f32 0.0, %v3185
        %v3187 = vpop.f32.mrf.mxu0
        %v3188 = vpop.f32.mrf.mxu0
        %v3189 = vadd.f32 0.0, %v3188
        %v3190 = vpop.f32.mrf.mxu0
        %3191 = vmatprep.mubr.bf16.mxu0 0
        %3192 = vmatmul.mubr.bf16.gmra.mxu0 %v3067
        %v3193 = vpop.f32.mrf.mxu0
        %v3194 = vadd.f32 0.0, %v3193
        %v3195 = vpop.f32.mrf.mxu0
        %v3196 = vpop.f32.mrf.mxu0
        %v3197 = vadd.f32 0.0, %v3196
        %v3198 = vpop.f32.mrf.mxu0
        %3199 = vmatprep.mubr.bf16.mxu0 0
        %3200 = vmatmul.mubr.bf16.gmra.mxu0 %v3068
        %v3201 = vpop.f32.mrf.mxu0
        %v3202 = vadd.f32 0.0, %v3201
        %v3203 = vpop.f32.mrf.mxu0
        %v3204 = vpop.f32.mrf.mxu0
        %v3205 = vadd.f32 0.0, %v3204
        %v3206 = vpop.f32.mrf.mxu0
        %3207 = vmatprep.mubr.bf16.mxu0 0
        %3208 = vmatmul.mubr.bf16.gmra.mxu0 %v3069
        %v3209 = vpop.f32.mrf.mxu0
        %v3210 = vadd.f32 0.0, %v3209
        %v3211 = vpop.f32.mrf.mxu0
        %v3212 = vpop.f32.mrf.mxu0
        %v3213 = vadd.f32 0.0, %v3212
        %v3214 = vpop.f32.mrf.mxu0
        %3215 = vmatprep.mubr.bf16.mxu0 0
        %3216 = vmatmul.mubr.bf16.gmra.mxu0 %v3070
        %v3217 = vpop.f32.mrf.mxu0
        %v3218 = vadd.f32 0.0, %v3217
        %v3219 = vpop.f32.mrf.mxu0
        %v3220 = vpop.f32.mrf.mxu0
        %v3221 = vadd.f32 0.0, %v3220
        %v3222 = vpop.f32.mrf.mxu0
        %3223 = vdwg.mxu0
        %v3224 = vadd.f32 %v2935, %v3162
        %v3225 = vadd.f32 %v2938, %v3165
        %v3226 = vadd.f32 %v2943, %v3170
        %v3227 = vadd.f32 %v2946, %v3173
        %v3228 = vadd.f32 %v2951, %v3178
        %v3229 = vadd.f32 %v2954, %v3181
        %v3230 = vadd.f32 %v2959, %v3186
        %v3231 = vadd.f32 %v2962, %v3189
        %v3232 = vadd.f32 %v2967, %v3194
        %v3233 = vadd.f32 %v2970, %v3197
        %v3234 = vadd.f32 %v2975, %v3202
        %v3235 = vadd.f32 %v2978, %v3205
        %v3236 = vadd.f32 %v2983, %v3210
        %v3237 = vadd.f32 %v2986, %v3213
        %v3238 = vadd.f32 %v2991, %v3218
        %v3239 = vadd.f32 %v2994, %v3221
        %s3240 = sadd.s32 %s969, 36
        %s3241 = smul.addr %s3240, 4
        %s3242 = scalar_lea.vmem [#allocation2], %s3241
        %v3243 = vld [vmem:[%s3242] sm:$0xf]
        %v3244 = vld [vmem:[%s3242 + $0x4] sm:$0xf]
        %v3245 = vld [vmem:[%s3242 + $0x8] sm:$0xf]
        %v3246 = vld [vmem:[%s3242 + $0xc] sm:$0xf]
        %v3247 = vld [vmem:[%s3242 + $0x10] sm:$0xf]
        %v3248 = vld [vmem:[%s3242 + $0x14] sm:$0xf]
        %v3249 = vld [vmem:[%s3242 + $0x18] sm:$0xf]
        %v3250 = vld [vmem:[%s3242 + $0x1c] sm:$0xf]
        %v3251 = vld [vmem:[%s3242 + $0x20] sm:$0xf]
        %v3252 = vld [vmem:[%s3242 + $0x24] sm:$0xf]
        %v3253 = vld [vmem:[%s3242 + $0x28] sm:$0xf]
        %v3254 = vld [vmem:[%s3242 + $0x2c] sm:$0xf]
        %v3255 = vld [vmem:[%s3242 + $0x30] sm:$0xf]
        %v3256 = vld [vmem:[%s3242 + $0x34] sm:$0xf]
        %v3257 = vld [vmem:[%s3242 + $0x38] sm:$0xf]
        %v3258 = vld [vmem:[%s3242 + $0x3c] sm:$0xf]
        %v3259 = vld [vmem:[%s989] sm:$0xf]
        %v3260 = vld [vmem:[%s989 + $0x4] sm:$0xf]
        %v3261 = vld [vmem:[%s989 + $0x8] sm:$0xf]
        %v3262 = vld [vmem:[%s989 + $0xc] sm:$0xf]
        %v3263 = vld [vmem:[%s989 + $0x10] sm:$0xf]
        %v3264 = vld [vmem:[%s989 + $0x14] sm:$0xf]
        %v3265 = vld [vmem:[%s989 + $0x18] sm:$0xf]
        %v3266 = vld [vmem:[%s989 + $0x1c] sm:$0xf]
        %v3267 = vld [vmem:[%s989 + $0x20] sm:$0xf]
        %v3268 = vld [vmem:[%s989 + $0x24] sm:$0xf]
        %v3269 = vld [vmem:[%s989 + $0x28] sm:$0xf]
        %v3270 = vld [vmem:[%s989 + $0x2c] sm:$0xf]
        %v3271 = vld [vmem:[%s989 + $0x30] sm:$0xf]
        %v3272 = vld [vmem:[%s989 + $0x34] sm:$0xf]
        %v3273 = vld [vmem:[%s989 + $0x38] sm:$0xf]
        %v3274 = vld [vmem:[%s989 + $0x3c] sm:$0xf]
        %v3291 = vunpack.c.l.b16 %v3243
        %v3292 = vunpack.c.l.b16 %v3244
        %v3293 = vunpack.c.l.b16 %v3245
        %v3294 = vunpack.c.l.b16 %v3246
        %v3295 = vunpack.c.l.b16 %v3247
        %v3296 = vunpack.c.l.b16 %v3248
        %v3297 = vunpack.c.l.b16 %v3249
        %v3298 = vunpack.c.l.b16 %v3250
        %v3299 = vunpack.c.l.b16 %v3251
        %v3300 = vunpack.c.l.b16 %v3252
        %v3301 = vunpack.c.l.b16 %v3253
        %v3302 = vunpack.c.l.b16 %v3254
        %v3303 = vunpack.c.l.b16 %v3255
        %v3304 = vunpack.c.l.b16 %v3256
        %v3305 = vunpack.c.l.b16 %v3257
        %v3306 = vunpack.c.l.b16 %v3258
        %v3307 = vpack.c.b16 %v3292, %v3291
        %v3308 = vpack.c.b16 %v3294, %v3293
        %v3309 = vpack.c.b16 %v3296, %v3295
        %v3310 = vpack.c.b16 %v3298, %v3297
        %v3311 = vpack.c.b16 %v3300, %v3299
        %v3312 = vpack.c.b16 %v3302, %v3301
        %v3313 = vpack.c.b16 %v3304, %v3303
        %v3314 = vpack.c.b16 %v3306, %v3305
        %v3339 = vunpack.c.l.b16 %v3259
        %v3340 = vunpack.c.l.b16 %v3260
        %v3341 = vunpack.c.l.b16 %v3261
        %v3342 = vunpack.c.l.b16 %v3262
        %v3343 = vunpack.c.l.b16 %v3263
        %v3344 = vunpack.c.l.b16 %v3264
        %v3345 = vunpack.c.l.b16 %v3265
        %v3346 = vunpack.c.l.b16 %v3266
        %v3347 = vunpack.c.l.b16 %v3267
        %v3348 = vunpack.c.l.b16 %v3268
        %v3349 = vunpack.c.l.b16 %v3269
        %v3350 = vunpack.c.l.b16 %v3270
        %v3351 = vunpack.c.l.b16 %v3271
        %v3352 = vunpack.c.l.b16 %v3272
        %v3353 = vunpack.c.l.b16 %v3273
        %v3354 = vunpack.c.l.b16 %v3274
        %v3355 = vpack.c.b16 %v3340, %v3339
        %v3356 = vpack.c.b16 %v3342, %v3341
        %v3357 = vpack.c.b16 %v3344, %v3343
        %v3358 = vpack.c.b16 %v3346, %v3345
        %v3359 = vpack.c.b16 %v3348, %v3347
        %v3360 = vpack.c.b16 %v3350, %v3349
        %v3361 = vpack.c.b16 %v3352, %v3351
        %v3362 = vpack.c.b16 %v3354, %v3353
        %3371 = vmatprep.subr.bf16.mxu0 0
        %3372 = vmatpush1.bf16.msra.mxu0 %v3362
        %3373 = vmatprep.subr.bf16.mxu0 0
        %3374 = vmatpush1.bf16.msra.mxu0 %v3361
        %3375 = vmatprep.subr.bf16.mxu0 0
        %3376 = vmatpush1.bf16.msra.mxu0 %v3360
        %3377 = vmatprep.subr.bf16.mxu0 0
        %3378 = vmatpush1.bf16.msra.mxu0 %v3359
        %3379 = vmatprep.subr.bf16.mxu0 0
        %3380 = vmatpush1.bf16.msra.mxu0 %v3358
        %3381 = vmatprep.subr.bf16.mxu0 0
        %3382 = vmatpush1.bf16.msra.mxu0 %v3357
        %3383 = vmatprep.subr.bf16.mxu0 0
        %3384 = vmatpush1.bf16.msra.mxu0 %v3356
        %3385 = vmatprep.subr.bf16.mxu0 0
        %3386 = vmatpush1.bf16.msra.mxu0 %v3355
        %3387 = vmatprep.subr.bf16.mxu0 0
        %3388 = vmatpush2.bf16.msra.mxu0 0
        %3389 = vmatprep.subr.bf16.mxu0 0
        %3390 = vmatpush2.bf16.msra.mxu0 0
        %3391 = vmatprep.subr.bf16.mxu0 0
        %3392 = vmatpush2.bf16.msra.mxu0 0
        %3393 = vmatprep.subr.bf16.mxu0 0
        %3394 = vmatpush2.bf16.msra.mxu0 0
        %3395 = vmatprep.subr.bf16.mxu0 0
        %3396 = vmatpush2.bf16.msra.mxu0 0
        %3397 = vmatprep.subr.bf16.mxu0 0
        %3398 = vmatpush2.bf16.msra.mxu0 0
        %3399 = vmatprep.subr.bf16.mxu0 0
        %3400 = vmatpush2.bf16.msra.mxu0 0
        %3401 = vmatprep.subr.bf16.mxu0 0
        %3402 = vmatpush2.bf16.msra.mxu0 0
        %3403 = vmatprep.mubr.bf16.mxu0 0
        %3404 = vmatmul.mubr.bf16.gmra.mxu0 %v3307
        %v3405 = vpop.f32.mrf.mxu0
        %v3406 = vadd.f32 0.0, %v3405
        %v3407 = vpop.f32.mrf.mxu0
        %v3408 = vpop.f32.mrf.mxu0
        %v3409 = vadd.f32 0.0, %v3408
        %v3410 = vpop.f32.mrf.mxu0
        %3411 = vmatprep.mubr.bf16.mxu0 0
        %3412 = vmatmul.mubr.bf16.gmra.mxu0 %v3308
        %v3413 = vpop.f32.mrf.mxu0
        %v3414 = vadd.f32 0.0, %v3413
        %v3415 = vpop.f32.mrf.mxu0
        %v3416 = vpop.f32.mrf.mxu0
        %v3417 = vadd.f32 0.0, %v3416
        %v3418 = vpop.f32.mrf.mxu0
        %3419 = vmatprep.mubr.bf16.mxu0 0
        %3420 = vmatmul.mubr.bf16.gmra.mxu0 %v3309
        %v3421 = vpop.f32.mrf.mxu0
        %v3422 = vadd.f32 0.0, %v3421
        %v3423 = vpop.f32.mrf.mxu0
        %v3424 = vpop.f32.mrf.mxu0
        %v3425 = vadd.f32 0.0, %v3424
        %v3426 = vpop.f32.mrf.mxu0
        %3427 = vmatprep.mubr.bf16.mxu0 0
        %3428 = vmatmul.mubr.bf16.gmra.mxu0 %v3310
        %v3429 = vpop.f32.mrf.mxu0
        %v3430 = vadd.f32 0.0, %v3429
        %v3431 = vpop.f32.mrf.mxu0
        %v3432 = vpop.f32.mrf.mxu0
        %v3433 = vadd.f32 0.0, %v3432
        %v3434 = vpop.f32.mrf.mxu0
        %3435 = vmatprep.mubr.bf16.mxu0 0
        %3436 = vmatmul.mubr.bf16.gmra.mxu0 %v3311
        %v3437 = vpop.f32.mrf.mxu0
        %v3438 = vadd.f32 0.0, %v3437
        %v3439 = vpop.f32.mrf.mxu0
        %v3440 = vpop.f32.mrf.mxu0
        %v3441 = vadd.f32 0.0, %v3440
        %v3442 = vpop.f32.mrf.mxu0
        %3443 = vmatprep.mubr.bf16.mxu0 0
        %3444 = vmatmul.mubr.bf16.gmra.mxu0 %v3312
        %v3445 = vpop.f32.mrf.mxu0
        %v3446 = vadd.f32 0.0, %v3445
        %v3447 = vpop.f32.mrf.mxu0
        %v3448 = vpop.f32.mrf.mxu0
        %v3449 = vadd.f32 0.0, %v3448
        %v3450 = vpop.f32.mrf.mxu0
        %3451 = vmatprep.mubr.bf16.mxu0 0
        %3452 = vmatmul.mubr.bf16.gmra.mxu0 %v3313
        %v3453 = vpop.f32.mrf.mxu0
        %v3454 = vadd.f32 0.0, %v3453
        %v3455 = vpop.f32.mrf.mxu0
        %v3456 = vpop.f32.mrf.mxu0
        %v3457 = vadd.f32 0.0, %v3456
        %v3458 = vpop.f32.mrf.mxu0
        %3459 = vmatprep.mubr.bf16.mxu0 0
        %3460 = vmatmul.mubr.bf16.gmra.mxu0 %v3314
        %v3461 = vpop.f32.mrf.mxu0
        %v3462 = vadd.f32 0.0, %v3461
        %v3463 = vpop.f32.mrf.mxu0
        %v3464 = vpop.f32.mrf.mxu0
        %v3465 = vadd.f32 0.0, %v3464
        %v3466 = vpop.f32.mrf.mxu0
        %3467 = vdwg.mxu0
        %v3468 = vadd.f32 %v3224, %v3406
        %v3469 = vadd.f32 %v3225, %v3409
        %v3470 = vadd.f32 %v3226, %v3414
        %v3471 = vadd.f32 %v3227, %v3417
        %v3472 = vadd.f32 %v3228, %v3422
        %v3473 = vadd.f32 %v3229, %v3425
        %v3474 = vadd.f32 %v3230, %v3430
        %v3475 = vadd.f32 %v3231, %v3433
        %v3476 = vadd.f32 %v3232, %v3438
        %v3477 = vadd.f32 %v3233, %v3441
        %v3478 = vadd.f32 %v3234, %v3446
        %v3479 = vadd.f32 %v3235, %v3449
        %v3480 = vadd.f32 %v3236, %v3454
        %v3481 = vadd.f32 %v3237, %v3457
        %v3482 = vadd.f32 %v3238, %v3462
        %v3483 = vadd.f32 %v3239, %v3465
        %s3484 = smul.addr %s3240, 4
        %s3485 = scalar_lea.vmem [#allocation5], %s3484
        %v3486 = vld [vmem:[%s3485] sm:$0xf]
        %v3487 = vld [vmem:[%s3485 + $0x4] sm:$0xf]
        %v3488 = vld [vmem:[%s3485 + $0x8] sm:$0xf]
        %v3489 = vld [vmem:[%s3485 + $0xc] sm:$0xf]
        %v3490 = vld [vmem:[%s3485 + $0x10] sm:$0xf]
        %v3491 = vld [vmem:[%s3485 + $0x14] sm:$0xf]
        %v3492 = vld [vmem:[%s3485 + $0x18] sm:$0xf]
        %v3493 = vld [vmem:[%s3485 + $0x1c] sm:$0xf]
        %v3494 = vld [vmem:[%s3485 + $0x20] sm:$0xf]
        %v3495 = vld [vmem:[%s3485 + $0x24] sm:$0xf]
        %v3496 = vld [vmem:[%s3485 + $0x28] sm:$0xf]
        %v3497 = vld [vmem:[%s3485 + $0x2c] sm:$0xf]
        %v3498 = vld [vmem:[%s3485 + $0x30] sm:$0xf]
        %v3499 = vld [vmem:[%s3485 + $0x34] sm:$0xf]
        %v3500 = vld [vmem:[%s3485 + $0x38] sm:$0xf]
        %v3501 = vld [vmem:[%s3485 + $0x3c] sm:$0xf]
        %v3502 = vld [vmem:[%s1233] sm:$0xf]
        %v3503 = vld [vmem:[%s1233 + $0x4] sm:$0xf]
        %v3504 = vld [vmem:[%s1233 + $0x8] sm:$0xf]
        %v3505 = vld [vmem:[%s1233 + $0xc] sm:$0xf]
        %v3506 = vld [vmem:[%s1233 + $0x10] sm:$0xf]
        %v3507 = vld [vmem:[%s1233 + $0x14] sm:$0xf]
        %v3508 = vld [vmem:[%s1233 + $0x18] sm:$0xf]
        %v3509 = vld [vmem:[%s1233 + $0x1c] sm:$0xf]
        %v3510 = vld [vmem:[%s1233 + $0x20] sm:$0xf]
        %v3511 = vld [vmem:[%s1233 + $0x24] sm:$0xf]
        %v3512 = vld [vmem:[%s1233 + $0x28] sm:$0xf]
        %v3513 = vld [vmem:[%s1233 + $0x2c] sm:$0xf]
        %v3514 = vld [vmem:[%s1233 + $0x30] sm:$0xf]
        %v3515 = vld [vmem:[%s1233 + $0x34] sm:$0xf]
        %v3516 = vld [vmem:[%s1233 + $0x38] sm:$0xf]
        %v3517 = vld [vmem:[%s1233 + $0x3c] sm:$0xf]
        %v3534 = vunpack.c.l.b16 %v3486
        %v3535 = vunpack.c.l.b16 %v3487
        %v3536 = vunpack.c.l.b16 %v3488
        %v3537 = vunpack.c.l.b16 %v3489
        %v3538 = vunpack.c.l.b16 %v3490
        %v3539 = vunpack.c.l.b16 %v3491
        %v3540 = vunpack.c.l.b16 %v3492
        %v3541 = vunpack.c.l.b16 %v3493
        %v3542 = vunpack.c.l.b16 %v3494
        %v3543 = vunpack.c.l.b16 %v3495
        %v3544 = vunpack.c.l.b16 %v3496
        %v3545 = vunpack.c.l.b16 %v3497
        %v3546 = vunpack.c.l.b16 %v3498
        %v3547 = vunpack.c.l.b16 %v3499
        %v3548 = vunpack.c.l.b16 %v3500
        %v3549 = vunpack.c.l.b16 %v3501
        %v3550 = vpack.c.b16 %v3535, %v3534
        %v3551 = vpack.c.b16 %v3537, %v3536
        %v3552 = vpack.c.b16 %v3539, %v3538
        %v3553 = vpack.c.b16 %v3541, %v3540
        %v3554 = vpack.c.b16 %v3543, %v3542
        %v3555 = vpack.c.b16 %v3545, %v3544
        %v3556 = vpack.c.b16 %v3547, %v3546
        %v3557 = vpack.c.b16 %v3549, %v3548
        %v3582 = vunpack.c.l.b16 %v3502
        %v3583 = vunpack.c.l.b16 %v3503
        %v3584 = vunpack.c.l.b16 %v3504
        %v3585 = vunpack.c.l.b16 %v3505
        %v3586 = vunpack.c.l.b16 %v3506
        %v3587 = vunpack.c.l.b16 %v3507
        %v3588 = vunpack.c.l.b16 %v3508
        %v3589 = vunpack.c.l.b16 %v3509
        %v3590 = vunpack.c.l.b16 %v3510
        %v3591 = vunpack.c.l.b16 %v3511
        %v3592 = vunpack.c.l.b16 %v3512
        %v3593 = vunpack.c.l.b16 %v3513
        %v3594 = vunpack.c.l.b16 %v3514
        %v3595 = vunpack.c.l.b16 %v3515
        %v3596 = vunpack.c.l.b16 %v3516
        %v3597 = vunpack.c.l.b16 %v3517
        %v3598 = vpack.c.b16 %v3583, %v3582
        %v3599 = vpack.c.b16 %v3585, %v3584
        %v3600 = vpack.c.b16 %v3587, %v3586
        %v3601 = vpack.c.b16 %v3589, %v3588
        %v3602 = vpack.c.b16 %v3591, %v3590
        %v3603 = vpack.c.b16 %v3593, %v3592
        %v3604 = vpack.c.b16 %v3595, %v3594
        %v3605 = vpack.c.b16 %v3597, %v3596
        %3614 = vmatprep.subr.bf16.mxu0 0
        %3615 = vmatpush1.bf16.msra.mxu0 %v3605
        %3616 = vmatprep.subr.bf16.mxu0 0
        %3617 = vmatpush1.bf16.msra.mxu0 %v3604
        %3618 = vmatprep.subr.bf16.mxu0 0
        %3619 = vmatpush1.bf16.msra.mxu0 %v3603
        %3620 = vmatprep.subr.bf16.mxu0 0
        %3621 = vmatpush1.bf16.msra.mxu0 %v3602
        %3622 = vmatprep.subr.bf16.mxu0 0
        %3623 = vmatpush1.bf16.msra.mxu0 %v3601
        %3624 = vmatprep.subr.bf16.mxu0 0
        %3625 = vmatpush1.bf16.msra.mxu0 %v3600
        %3626 = vmatprep.subr.bf16.mxu0 0
        %3627 = vmatpush1.bf16.msra.mxu0 %v3599
        %3628 = vmatprep.subr.bf16.mxu0 0
        %3629 = vmatpush1.bf16.msra.mxu0 %v3598
        %3630 = vmatprep.subr.bf16.mxu0 0
        %3631 = vmatpush2.bf16.msra.mxu0 0
        %3632 = vmatprep.subr.bf16.mxu0 0
        %3633 = vmatpush2.bf16.msra.mxu0 0
        %3634 = vmatprep.subr.bf16.mxu0 0
        %3635 = vmatpush2.bf16.msra.mxu0 0
        %3636 = vmatprep.subr.bf16.mxu0 0
        %3637 = vmatpush2.bf16.msra.mxu0 0
        %3638 = vmatprep.subr.bf16.mxu0 0
        %3639 = vmatpush2.bf16.msra.mxu0 0
        %3640 = vmatprep.subr.bf16.mxu0 0
        %3641 = vmatpush2.bf16.msra.mxu0 0
        %3642 = vmatprep.subr.bf16.mxu0 0
        %3643 = vmatpush2.bf16.msra.mxu0 0
        %3644 = vmatprep.subr.bf16.mxu0 0
        %3645 = vmatpush2.bf16.msra.mxu0 0
        %3646 = vmatprep.mubr.bf16.mxu0 0
        %3647 = vmatmul.mubr.bf16.gmra.mxu0 %v3550
        %v3648 = vpop.f32.mrf.mxu0
        %v3649 = vadd.f32 0.0, %v3648
        %v3650 = vpop.f32.mrf.mxu0
        %v3651 = vpop.f32.mrf.mxu0
        %v3652 = vadd.f32 0.0, %v3651
        %v3653 = vpop.f32.mrf.mxu0
        %3654 = vmatprep.mubr.bf16.mxu0 0
        %3655 = vmatmul.mubr.bf16.gmra.mxu0 %v3551
        %v3656 = vpop.f32.mrf.mxu0
        %v3657 = vadd.f32 0.0, %v3656
        %v3658 = vpop.f32.mrf.mxu0
        %v3659 = vpop.f32.mrf.mxu0
        %v3660 = vadd.f32 0.0, %v3659
        %v3661 = vpop.f32.mrf.mxu0
        %3662 = vmatprep.mubr.bf16.mxu0 0
        %3663 = vmatmul.mubr.bf16.gmra.mxu0 %v3552
        %v3664 = vpop.f32.mrf.mxu0
        %v3665 = vadd.f32 0.0, %v3664
        %v3666 = vpop.f32.mrf.mxu0
        %v3667 = vpop.f32.mrf.mxu0
        %v3668 = vadd.f32 0.0, %v3667
        %v3669 = vpop.f32.mrf.mxu0
        %3670 = vmatprep.mubr.bf16.mxu0 0
        %3671 = vmatmul.mubr.bf16.gmra.mxu0 %v3553
        %v3672 = vpop.f32.mrf.mxu0
        %v3673 = vadd.f32 0.0, %v3672
        %v3674 = vpop.f32.mrf.mxu0
        %v3675 = vpop.f32.mrf.mxu0
        %v3676 = vadd.f32 0.0, %v3675
        %v3677 = vpop.f32.mrf.mxu0
        %3678 = vmatprep.mubr.bf16.mxu0 0
        %3679 = vmatmul.mubr.bf16.gmra.mxu0 %v3554
        %v3680 = vpop.f32.mrf.mxu0
        %v3681 = vadd.f32 0.0, %v3680
        %v3682 = vpop.f32.mrf.mxu0
        %v3683 = vpop.f32.mrf.mxu0
        %v3684 = vadd.f32 0.0, %v3683
        %v3685 = vpop.f32.mrf.mxu0
        %3686 = vmatprep.mubr.bf16.mxu0 0
        %3687 = vmatmul.mubr.bf16.gmra.mxu0 %v3555
        %v3688 = vpop.f32.mrf.mxu0
        %v3689 = vadd.f32 0.0, %v3688
        %v3690 = vpop.f32.mrf.mxu0
        %v3691 = vpop.f32.mrf.mxu0
        %v3692 = vadd.f32 0.0, %v3691
        %v3693 = vpop.f32.mrf.mxu0
        %3694 = vmatprep.mubr.bf16.mxu0 0
        %3695 = vmatmul.mubr.bf16.gmra.mxu0 %v3556
        %v3696 = vpop.f32.mrf.mxu0
        %v3697 = vadd.f32 0.0, %v3696
        %v3698 = vpop.f32.mrf.mxu0
        %v3699 = vpop.f32.mrf.mxu0
        %v3700 = vadd.f32 0.0, %v3699
        %v3701 = vpop.f32.mrf.mxu0
        %3702 = vmatprep.mubr.bf16.mxu0 0
        %3703 = vmatmul.mubr.bf16.gmra.mxu0 %v3557
        %v3704 = vpop.f32.mrf.mxu0
        %v3705 = vadd.f32 0.0, %v3704
        %v3706 = vpop.f32.mrf.mxu0
        %v3707 = vpop.f32.mrf.mxu0
        %v3708 = vadd.f32 0.0, %v3707
        %v3709 = vpop.f32.mrf.mxu0
        %3710 = vdwg.mxu0
        %v3711 = vadd.f32 %v3468, %v3649
        %v3712 = vadd.f32 %v3469, %v3652
        %v3713 = vadd.f32 %v3470, %v3657
        %v3714 = vadd.f32 %v3471, %v3660
        %v3715 = vadd.f32 %v3472, %v3665
        %v3716 = vadd.f32 %v3473, %v3668
        %v3717 = vadd.f32 %v3474, %v3673
        %v3718 = vadd.f32 %v3475, %v3676
        %v3719 = vadd.f32 %v3476, %v3681
        %v3720 = vadd.f32 %v3477, %v3684
        %v3721 = vadd.f32 %v3478, %v3689
        %v3722 = vadd.f32 %v3479, %v3692
        %v3723 = vadd.f32 %v3480, %v3697
        %v3724 = vadd.f32 %v3481, %v3700
        %v3725 = vadd.f32 %v3482, %v3705
        %v3726 = vadd.f32 %v3483, %v3708
        %s3727 = smul.addr %s3240, 4
        %s3728 = scalar_lea.vmem [#allocation7], %s3727
        %v3729 = vld [vmem:[%s3728] sm:$0xf]
        %v3730 = vld [vmem:[%s3728 + $0x4] sm:$0xf]
        %v3731 = vld [vmem:[%s3728 + $0x8] sm:$0xf]
        %v3732 = vld [vmem:[%s3728 + $0xc] sm:$0xf]
        %v3733 = vld [vmem:[%s3728 + $0x10] sm:$0xf]
        %v3734 = vld [vmem:[%s3728 + $0x14] sm:$0xf]
        %v3735 = vld [vmem:[%s3728 + $0x18] sm:$0xf]
        %v3736 = vld [vmem:[%s3728 + $0x1c] sm:$0xf]
        %v3737 = vld [vmem:[%s3728 + $0x20] sm:$0xf]
        %v3738 = vld [vmem:[%s3728 + $0x24] sm:$0xf]
        %v3739 = vld [vmem:[%s3728 + $0x28] sm:$0xf]
        %v3740 = vld [vmem:[%s3728 + $0x2c] sm:$0xf]
        %v3741 = vld [vmem:[%s3728 + $0x30] sm:$0xf]
        %v3742 = vld [vmem:[%s3728 + $0x34] sm:$0xf]
        %v3743 = vld [vmem:[%s3728 + $0x38] sm:$0xf]
        %v3744 = vld [vmem:[%s3728 + $0x3c] sm:$0xf]
        %v3745 = vld [vmem:[%s1477] sm:$0xf]
        %v3746 = vld [vmem:[%s1477 + $0x4] sm:$0xf]
        %v3747 = vld [vmem:[%s1477 + $0x8] sm:$0xf]
        %v3748 = vld [vmem:[%s1477 + $0xc] sm:$0xf]
        %v3749 = vld [vmem:[%s1477 + $0x10] sm:$0xf]
        %v3750 = vld [vmem:[%s1477 + $0x14] sm:$0xf]
        %v3751 = vld [vmem:[%s1477 + $0x18] sm:$0xf]
        %v3752 = vld [vmem:[%s1477 + $0x1c] sm:$0xf]
        %v3753 = vld [vmem:[%s1477 + $0x20] sm:$0xf]
        %v3754 = vld [vmem:[%s1477 + $0x24] sm:$0xf]
        %v3755 = vld [vmem:[%s1477 + $0x28] sm:$0xf]
        %v3756 = vld [vmem:[%s1477 + $0x2c] sm:$0xf]
        %v3757 = vld [vmem:[%s1477 + $0x30] sm:$0xf]
        %v3758 = vld [vmem:[%s1477 + $0x34] sm:$0xf]
        %v3759 = vld [vmem:[%s1477 + $0x38] sm:$0xf]
        %v3760 = vld [vmem:[%s1477 + $0x3c] sm:$0xf]
        %v3777 = vunpack.c.l.b16 %v3729
        %v3778 = vunpack.c.l.b16 %v3730
        %v3779 = vunpack.c.l.b16 %v3731
        %v3780 = vunpack.c.l.b16 %v3732
        %v3781 = vunpack.c.l.b16 %v3733
        %v3782 = vunpack.c.l.b16 %v3734
        %v3783 = vunpack.c.l.b16 %v3735
        %v3784 = vunpack.c.l.b16 %v3736
        %v3785 = vunpack.c.l.b16 %v3737
        %v3786 = vunpack.c.l.b16 %v3738
        %v3787 = vunpack.c.l.b16 %v3739
        %v3788 = vunpack.c.l.b16 %v3740
        %v3789 = vunpack.c.l.b16 %v3741
        %v3790 = vunpack.c.l.b16 %v3742
        %v3791 = vunpack.c.l.b16 %v3743
        %v3792 = vunpack.c.l.b16 %v3744
        %v3793 = vpack.c.b16 %v3778, %v3777
        %v3794 = vpack.c.b16 %v3780, %v3779
        %v3795 = vpack.c.b16 %v3782, %v3781
        %v3796 = vpack.c.b16 %v3784, %v3783
        %v3797 = vpack.c.b16 %v3786, %v3785
        %v3798 = vpack.c.b16 %v3788, %v3787
        %v3799 = vpack.c.b16 %v3790, %v3789
        %v3800 = vpack.c.b16 %v3792, %v3791
        %v3825 = vunpack.c.l.b16 %v3745
        %v3826 = vunpack.c.l.b16 %v3746
        %v3827 = vunpack.c.l.b16 %v3747
        %v3828 = vunpack.c.l.b16 %v3748
        %v3829 = vunpack.c.l.b16 %v3749
        %v3830 = vunpack.c.l.b16 %v3750
        %v3831 = vunpack.c.l.b16 %v3751
        %v3832 = vunpack.c.l.b16 %v3752
        %v3833 = vunpack.c.l.b16 %v3753
        %v3834 = vunpack.c.l.b16 %v3754
        %v3835 = vunpack.c.l.b16 %v3755
        %v3836 = vunpack.c.l.b16 %v3756
        %v3837 = vunpack.c.l.b16 %v3757
        %v3838 = vunpack.c.l.b16 %v3758
        %v3839 = vunpack.c.l.b16 %v3759
        %v3840 = vunpack.c.l.b16 %v3760
        %v3841 = vpack.c.b16 %v3826, %v3825
        %v3842 = vpack.c.b16 %v3828, %v3827
        %v3843 = vpack.c.b16 %v3830, %v3829
        %v3844 = vpack.c.b16 %v3832, %v3831
        %v3845 = vpack.c.b16 %v3834, %v3833
        %v3846 = vpack.c.b16 %v3836, %v3835
        %v3847 = vpack.c.b16 %v3838, %v3837
        %v3848 = vpack.c.b16 %v3840, %v3839
        %3857 = vmatprep.subr.bf16.mxu0 0
        %3858 = vmatpush1.bf16.msra.mxu0 %v3848
        %3859 = vmatprep.subr.bf16.mxu0 0
        %3860 = vmatpush1.bf16.msra.mxu0 %v3847
        %3861 = vmatprep.subr.bf16.mxu0 0
        %3862 = vmatpush1.bf16.msra.mxu0 %v3846
        %3863 = vmatprep.subr.bf16.mxu0 0
        %3864 = vmatpush1.bf16.msra.mxu0 %v3845
        %3865 = vmatprep.subr.bf16.mxu0 0
        %3866 = vmatpush1.bf16.msra.mxu0 %v3844
        %3867 = vmatprep.subr.bf16.mxu0 0
        %3868 = vmatpush1.bf16.msra.mxu0 %v3843
        %3869 = vmatprep.subr.bf16.mxu0 0
        %3870 = vmatpush1.bf16.msra.mxu0 %v3842
        %3871 = vmatprep.subr.bf16.mxu0 0
        %3872 = vmatpush1.bf16.msra.mxu0 %v3841
        %3873 = vmatprep.subr.bf16.mxu0 0
        %3874 = vmatpush2.bf16.msra.mxu0 0
        %3875 = vmatprep.subr.bf16.mxu0 0
        %3876 = vmatpush2.bf16.msra.mxu0 0
        %3877 = vmatprep.subr.bf16.mxu0 0
        %3878 = vmatpush2.bf16.msra.mxu0 0
        %3879 = vmatprep.subr.bf16.mxu0 0
        %3880 = vmatpush2.bf16.msra.mxu0 0
        %3881 = vmatprep.subr.bf16.mxu0 0
        %3882 = vmatpush2.bf16.msra.mxu0 0
        %3883 = vmatprep.subr.bf16.mxu0 0
        %3884 = vmatpush2.bf16.msra.mxu0 0
        %3885 = vmatprep.subr.bf16.mxu0 0
        %3886 = vmatpush2.bf16.msra.mxu0 0
        %3887 = vmatprep.subr.bf16.mxu0 0
        %3888 = vmatpush2.bf16.msra.mxu0 0
        %3889 = vmatprep.mubr.bf16.mxu0 0
        %3890 = vmatmul.mubr.bf16.gmra.mxu0 %v3793
        %v3891 = vpop.f32.mrf.mxu0
        %v3892 = vadd.f32 0.0, %v3891
        %v3893 = vpop.f32.mrf.mxu0
        %v3894 = vpop.f32.mrf.mxu0
        %v3895 = vadd.f32 0.0, %v3894
        %v3896 = vpop.f32.mrf.mxu0
        %3897 = vmatprep.mubr.bf16.mxu0 0
        %3898 = vmatmul.mubr.bf16.gmra.mxu0 %v3794
        %v3899 = vpop.f32.mrf.mxu0
        %v3900 = vadd.f32 0.0, %v3899
        %v3901 = vpop.f32.mrf.mxu0
        %v3902 = vpop.f32.mrf.mxu0
        %v3903 = vadd.f32 0.0, %v3902
        %v3904 = vpop.f32.mrf.mxu0
        %3905 = vmatprep.mubr.bf16.mxu0 0
        %3906 = vmatmul.mubr.bf16.gmra.mxu0 %v3795
        %v3907 = vpop.f32.mrf.mxu0
        %v3908 = vadd.f32 0.0, %v3907
        %v3909 = vpop.f32.mrf.mxu0
        %v3910 = vpop.f32.mrf.mxu0
        %v3911 = vadd.f32 0.0, %v3910
        %v3912 = vpop.f32.mrf.mxu0
        %3913 = vmatprep.mubr.bf16.mxu0 0
        %3914 = vmatmul.mubr.bf16.gmra.mxu0 %v3796
        %v3915 = vpop.f32.mrf.mxu0
        %v3916 = vadd.f32 0.0, %v3915
        %v3917 = vpop.f32.mrf.mxu0
        %v3918 = vpop.f32.mrf.mxu0
        %v3919 = vadd.f32 0.0, %v3918
        %v3920 = vpop.f32.mrf.mxu0
        %3921 = vmatprep.mubr.bf16.mxu0 0
        %3922 = vmatmul.mubr.bf16.gmra.mxu0 %v3797
        %v3923 = vpop.f32.mrf.mxu0
        %v3924 = vadd.f32 0.0, %v3923
        %v3925 = vpop.f32.mrf.mxu0
        %v3926 = vpop.f32.mrf.mxu0
        %v3927 = vadd.f32 0.0, %v3926
        %v3928 = vpop.f32.mrf.mxu0
        %3929 = vmatprep.mubr.bf16.mxu0 0
        %3930 = vmatmul.mubr.bf16.gmra.mxu0 %v3798
        %v3931 = vpop.f32.mrf.mxu0
        %v3932 = vadd.f32 0.0, %v3931
        %v3933 = vpop.f32.mrf.mxu0
        %v3934 = vpop.f32.mrf.mxu0
        %v3935 = vadd.f32 0.0, %v3934
        %v3936 = vpop.f32.mrf.mxu0
        %3937 = vmatprep.mubr.bf16.mxu0 0
        %3938 = vmatmul.mubr.bf16.gmra.mxu0 %v3799
        %v3939 = vpop.f32.mrf.mxu0
        %v3940 = vadd.f32 0.0, %v3939
        %v3941 = vpop.f32.mrf.mxu0
        %v3942 = vpop.f32.mrf.mxu0
        %v3943 = vadd.f32 0.0, %v3942
        %v3944 = vpop.f32.mrf.mxu0
        %3945 = vmatprep.mubr.bf16.mxu0 0
        %3946 = vmatmul.mubr.bf16.gmra.mxu0 %v3800
        %v3947 = vpop.f32.mrf.mxu0
        %v3948 = vadd.f32 0.0, %v3947
        %v3949 = vpop.f32.mrf.mxu0
        %v3950 = vpop.f32.mrf.mxu0
        %v3951 = vadd.f32 0.0, %v3950
        %v3952 = vpop.f32.mrf.mxu0
        %3953 = vdwg.mxu0
        %v3954 = vadd.f32 %v3711, %v3892
        %v3955 = vadd.f32 %v3712, %v3895
        %v3956 = vadd.f32 %v3713, %v3900
        %v3957 = vadd.f32 %v3714, %v3903
        %v3958 = vadd.f32 %v3715, %v3908
        %v3959 = vadd.f32 %v3716, %v3911
        %v3960 = vadd.f32 %v3717, %v3916
        %v3961 = vadd.f32 %v3718, %v3919
        %v3962 = vadd.f32 %v3719, %v3924
        %v3963 = vadd.f32 %v3720, %v3927
        %v3964 = vadd.f32 %v3721, %v3932
        %v3965 = vadd.f32 %v3722, %v3935
        %v3966 = vadd.f32 %v3723, %v3940
        %v3967 = vadd.f32 %v3724, %v3943
        %v3968 = vadd.f32 %v3725, %v3948
        %v3969 = vadd.f32 %v3726, %v3951
        %s3970 = sadd.s32 %s1705, 36
        %s3971 = smul.addr %s3970, 4
        %s3972 = scalar_lea.vmem [#allocation2], %s3971
        %v3973 = vld [vmem:[%s3972] sm:$0xf]
        %v3974 = vld [vmem:[%s3972 + $0x4] sm:$0xf]
        %v3975 = vld [vmem:[%s3972 + $0x8] sm:$0xf]
        %v3976 = vld [vmem:[%s3972 + $0xc] sm:$0xf]
        %v3977 = vld [vmem:[%s3972 + $0x10] sm:$0xf]
        %v3978 = vld [vmem:[%s3972 + $0x14] sm:$0xf]
        %v3979 = vld [vmem:[%s3972 + $0x18] sm:$0xf]
        %v3980 = vld [vmem:[%s3972 + $0x1c] sm:$0xf]
        %v3981 = vld [vmem:[%s3972 + $0x20] sm:$0xf]
        %v3982 = vld [vmem:[%s3972 + $0x24] sm:$0xf]
        %v3983 = vld [vmem:[%s3972 + $0x28] sm:$0xf]
        %v3984 = vld [vmem:[%s3972 + $0x2c] sm:$0xf]
        %v3985 = vld [vmem:[%s3972 + $0x30] sm:$0xf]
        %v3986 = vld [vmem:[%s3972 + $0x34] sm:$0xf]
        %v3987 = vld [vmem:[%s3972 + $0x38] sm:$0xf]
        %v3988 = vld [vmem:[%s3972 + $0x3c] sm:$0xf]
        %v3989 = vld [vmem:[%s1725] sm:$0xf]
        %v3990 = vld [vmem:[%s1725 + $0x4] sm:$0xf]
        %v3991 = vld [vmem:[%s1725 + $0x8] sm:$0xf]
        %v3992 = vld [vmem:[%s1725 + $0xc] sm:$0xf]
        %v3993 = vld [vmem:[%s1725 + $0x10] sm:$0xf]
        %v3994 = vld [vmem:[%s1725 + $0x14] sm:$0xf]
        %v3995 = vld [vmem:[%s1725 + $0x18] sm:$0xf]
        %v3996 = vld [vmem:[%s1725 + $0x1c] sm:$0xf]
        %v3997 = vld [vmem:[%s1725 + $0x20] sm:$0xf]
        %v3998 = vld [vmem:[%s1725 + $0x24] sm:$0xf]
        %v3999 = vld [vmem:[%s1725 + $0x28] sm:$0xf]
        %v4000 = vld [vmem:[%s1725 + $0x2c] sm:$0xf]
        %v4001 = vld [vmem:[%s1725 + $0x30] sm:$0xf]
        %v4002 = vld [vmem:[%s1725 + $0x34] sm:$0xf]
        %v4003 = vld [vmem:[%s1725 + $0x38] sm:$0xf]
        %v4004 = vld [vmem:[%s1725 + $0x3c] sm:$0xf]
        %v4021 = vunpack.c.l.b16 %v3973
        %v4022 = vunpack.c.l.b16 %v3974
        %v4023 = vunpack.c.l.b16 %v3975
        %v4024 = vunpack.c.l.b16 %v3976
        %v4025 = vunpack.c.l.b16 %v3977
        %v4026 = vunpack.c.l.b16 %v3978
        %v4027 = vunpack.c.l.b16 %v3979
        %v4028 = vunpack.c.l.b16 %v3980
        %v4029 = vunpack.c.l.b16 %v3981
        %v4030 = vunpack.c.l.b16 %v3982
        %v4031 = vunpack.c.l.b16 %v3983
        %v4032 = vunpack.c.l.b16 %v3984
        %v4033 = vunpack.c.l.b16 %v3985
        %v4034 = vunpack.c.l.b16 %v3986
        %v4035 = vunpack.c.l.b16 %v3987
        %v4036 = vunpack.c.l.b16 %v3988
        %v4037 = vpack.c.b16 %v4022, %v4021
        %v4038 = vpack.c.b16 %v4024, %v4023
        %v4039 = vpack.c.b16 %v4026, %v4025
        %v4040 = vpack.c.b16 %v4028, %v4027
        %v4041 = vpack.c.b16 %v4030, %v4029
        %v4042 = vpack.c.b16 %v4032, %v4031
        %v4043 = vpack.c.b16 %v4034, %v4033
        %v4044 = vpack.c.b16 %v4036, %v4035
        %v4069 = vunpack.c.l.b16 %v3989
        %v4070 = vunpack.c.l.b16 %v3990
        %v4071 = vunpack.c.l.b16 %v3991
        %v4072 = vunpack.c.l.b16 %v3992
        %v4073 = vunpack.c.l.b16 %v3993
        %v4074 = vunpack.c.l.b16 %v3994
        %v4075 = vunpack.c.l.b16 %v3995
        %v4076 = vunpack.c.l.b16 %v3996
        %v4077 = vunpack.c.l.b16 %v3997
        %v4078 = vunpack.c.l.b16 %v3998
        %v4079 = vunpack.c.l.b16 %v3999
        %v4080 = vunpack.c.l.b16 %v4000
        %v4081 = vunpack.c.l.b16 %v4001
        %v4082 = vunpack.c.l.b16 %v4002
        %v4083 = vunpack.c.l.b16 %v4003
        %v4084 = vunpack.c.l.b16 %v4004
        %v4085 = vpack.c.b16 %v4070, %v4069
        %v4086 = vpack.c.b16 %v4072, %v4071
        %v4087 = vpack.c.b16 %v4074, %v4073
        %v4088 = vpack.c.b16 %v4076, %v4075
        %v4089 = vpack.c.b16 %v4078, %v4077
        %v4090 = vpack.c.b16 %v4080, %v4079
        %v4091 = vpack.c.b16 %v4082, %v4081
        %v4092 = vpack.c.b16 %v4084, %v4083
        %4101 = vmatprep.subr.bf16.mxu0 0
        %4102 = vmatpush1.bf16.msra.mxu0 %v4092
        %4103 = vmatprep.subr.bf16.mxu0 0
        %4104 = vmatpush1.bf16.msra.mxu0 %v4091
        %4105 = vmatprep.subr.bf16.mxu0 0
        %4106 = vmatpush1.bf16.msra.mxu0 %v4090
        %4107 = vmatprep.subr.bf16.mxu0 0
        %4108 = vmatpush1.bf16.msra.mxu0 %v4089
        %4109 = vmatprep.subr.bf16.mxu0 0
        %4110 = vmatpush1.bf16.msra.mxu0 %v4088
        %4111 = vmatprep.subr.bf16.mxu0 0
        %4112 = vmatpush1.bf16.msra.mxu0 %v4087
        %4113 = vmatprep.subr.bf16.mxu0 0
        %4114 = vmatpush1.bf16.msra.mxu0 %v4086
        %4115 = vmatprep.subr.bf16.mxu0 0
        %4116 = vmatpush1.bf16.msra.mxu0 %v4085
        %4117 = vmatprep.subr.bf16.mxu0 0
        %4118 = vmatpush2.bf16.msra.mxu0 0
        %4119 = vmatprep.subr.bf16.mxu0 0
        %4120 = vmatpush2.bf16.msra.mxu0 0
        %4121 = vmatprep.subr.bf16.mxu0 0
        %4122 = vmatpush2.bf16.msra.mxu0 0
        %4123 = vmatprep.subr.bf16.mxu0 0
        %4124 = vmatpush2.bf16.msra.mxu0 0
        %4125 = vmatprep.subr.bf16.mxu0 0
        %4126 = vmatpush2.bf16.msra.mxu0 0
        %4127 = vmatprep.subr.bf16.mxu0 0
        %4128 = vmatpush2.bf16.msra.mxu0 0
        %4129 = vmatprep.subr.bf16.mxu0 0
        %4130 = vmatpush2.bf16.msra.mxu0 0
        %4131 = vmatprep.subr.bf16.mxu0 0
        %4132 = vmatpush2.bf16.msra.mxu0 0
        %4133 = vmatprep.mubr.bf16.mxu0 0
        %4134 = vmatmul.mubr.bf16.gmra.mxu0 %v4037
        %v4135 = vpop.f32.mrf.mxu0
        %v4136 = vadd.f32 0.0, %v4135
        %v4137 = vpop.f32.mrf.mxu0
        %v4138 = vpop.f32.mrf.mxu0
        %v4139 = vadd.f32 0.0, %v4138
        %v4140 = vpop.f32.mrf.mxu0
        %4141 = vmatprep.mubr.bf16.mxu0 0
        %4142 = vmatmul.mubr.bf16.gmra.mxu0 %v4038
        %v4143 = vpop.f32.mrf.mxu0
        %v4144 = vadd.f32 0.0, %v4143
        %v4145 = vpop.f32.mrf.mxu0
        %v4146 = vpop.f32.mrf.mxu0
        %v4147 = vadd.f32 0.0, %v4146
        %v4148 = vpop.f32.mrf.mxu0
        %4149 = vmatprep.mubr.bf16.mxu0 0
        %4150 = vmatmul.mubr.bf16.gmra.mxu0 %v4039
        %v4151 = vpop.f32.mrf.mxu0
        %v4152 = vadd.f32 0.0, %v4151
        %v4153 = vpop.f32.mrf.mxu0
        %v4154 = vpop.f32.mrf.mxu0
        %v4155 = vadd.f32 0.0, %v4154
        %v4156 = vpop.f32.mrf.mxu0
        %4157 = vmatprep.mubr.bf16.mxu0 0
        %4158 = vmatmul.mubr.bf16.gmra.mxu0 %v4040
        %v4159 = vpop.f32.mrf.mxu0
        %v4160 = vadd.f32 0.0, %v4159
        %v4161 = vpop.f32.mrf.mxu0
        %v4162 = vpop.f32.mrf.mxu0
        %v4163 = vadd.f32 0.0, %v4162
        %v4164 = vpop.f32.mrf.mxu0
        %4165 = vmatprep.mubr.bf16.mxu0 0
        %4166 = vmatmul.mubr.bf16.gmra.mxu0 %v4041
        %v4167 = vpop.f32.mrf.mxu0
        %v4168 = vadd.f32 0.0, %v4167
        %v4169 = vpop.f32.mrf.mxu0
        %v4170 = vpop.f32.mrf.mxu0
        %v4171 = vadd.f32 0.0, %v4170
        %v4172 = vpop.f32.mrf.mxu0
        %4173 = vmatprep.mubr.bf16.mxu0 0
        %4174 = vmatmul.mubr.bf16.gmra.mxu0 %v4042
        %v4175 = vpop.f32.mrf.mxu0
        %v4176 = vadd.f32 0.0, %v4175
        %v4177 = vpop.f32.mrf.mxu0
        %v4178 = vpop.f32.mrf.mxu0
        %v4179 = vadd.f32 0.0, %v4178
        %v4180 = vpop.f32.mrf.mxu0
        %4181 = vmatprep.mubr.bf16.mxu0 0
        %4182 = vmatmul.mubr.bf16.gmra.mxu0 %v4043
        %v4183 = vpop.f32.mrf.mxu0
        %v4184 = vadd.f32 0.0, %v4183
        %v4185 = vpop.f32.mrf.mxu0
        %v4186 = vpop.f32.mrf.mxu0
        %v4187 = vadd.f32 0.0, %v4186
        %v4188 = vpop.f32.mrf.mxu0
        %4189 = vmatprep.mubr.bf16.mxu0 0
        %4190 = vmatmul.mubr.bf16.gmra.mxu0 %v4044
        %v4191 = vpop.f32.mrf.mxu0
        %v4192 = vadd.f32 0.0, %v4191
        %v4193 = vpop.f32.mrf.mxu0
        %v4194 = vpop.f32.mrf.mxu0
        %v4195 = vadd.f32 0.0, %v4194
        %v4196 = vpop.f32.mrf.mxu0
        %4197 = vdwg.mxu0
        %v4198 = vadd.f32 %v3954, %v4136
        %v4199 = vadd.f32 %v3955, %v4139
        %v4200 = vadd.f32 %v3956, %v4144
        %v4201 = vadd.f32 %v3957, %v4147
        %v4202 = vadd.f32 %v3958, %v4152
        %v4203 = vadd.f32 %v3959, %v4155
        %v4204 = vadd.f32 %v3960, %v4160
        %v4205 = vadd.f32 %v3961, %v4163
        %v4206 = vadd.f32 %v3962, %v4168
        %v4207 = vadd.f32 %v3963, %v4171
        %v4208 = vadd.f32 %v3964, %v4176
        %v4209 = vadd.f32 %v3965, %v4179
        %v4210 = vadd.f32 %v3966, %v4184
        %v4211 = vadd.f32 %v3967, %v4187
        %v4212 = vadd.f32 %v3968, %v4192
        %v4213 = vadd.f32 %v3969, %v4195
        %s4214 = smul.addr %s3970, 4
        %s4215 = scalar_lea.vmem [#allocation5], %s4214
        %v4216 = vld [vmem:[%s4215] sm:$0xf]
        %v4217 = vld [vmem:[%s4215 + $0x4] sm:$0xf]
        %v4218 = vld [vmem:[%s4215 + $0x8] sm:$0xf]
        %v4219 = vld [vmem:[%s4215 + $0xc] sm:$0xf]
        %v4220 = vld [vmem:[%s4215 + $0x10] sm:$0xf]
        %v4221 = vld [vmem:[%s4215 + $0x14] sm:$0xf]
        %v4222 = vld [vmem:[%s4215 + $0x18] sm:$0xf]
        %v4223 = vld [vmem:[%s4215 + $0x1c] sm:$0xf]
        %v4224 = vld [vmem:[%s4215 + $0x20] sm:$0xf]
        %v4225 = vld [vmem:[%s4215 + $0x24] sm:$0xf]
        %v4226 = vld [vmem:[%s4215 + $0x28] sm:$0xf]
        %v4227 = vld [vmem:[%s4215 + $0x2c] sm:$0xf]
        %v4228 = vld [vmem:[%s4215 + $0x30] sm:$0xf]
        %v4229 = vld [vmem:[%s4215 + $0x34] sm:$0xf]
        %v4230 = vld [vmem:[%s4215 + $0x38] sm:$0xf]
        %v4231 = vld [vmem:[%s4215 + $0x3c] sm:$0xf]
        %v4232 = vld [vmem:[%s1969] sm:$0xf]
        %v4233 = vld [vmem:[%s1969 + $0x4] sm:$0xf]
        %v4234 = vld [vmem:[%s1969 + $0x8] sm:$0xf]
        %v4235 = vld [vmem:[%s1969 + $0xc] sm:$0xf]
        %v4236 = vld [vmem:[%s1969 + $0x10] sm:$0xf]
        %v4237 = vld [vmem:[%s1969 + $0x14] sm:$0xf]
        %v4238 = vld [vmem:[%s1969 + $0x18] sm:$0xf]
        %v4239 = vld [vmem:[%s1969 + $0x1c] sm:$0xf]
        %v4240 = vld [vmem:[%s1969 + $0x20] sm:$0xf]
        %v4241 = vld [vmem:[%s1969 + $0x24] sm:$0xf]
        %v4242 = vld [vmem:[%s1969 + $0x28] sm:$0xf]
        %v4243 = vld [vmem:[%s1969 + $0x2c] sm:$0xf]
        %v4244 = vld [vmem:[%s1969 + $0x30] sm:$0xf]
        %v4245 = vld [vmem:[%s1969 + $0x34] sm:$0xf]
        %v4246 = vld [vmem:[%s1969 + $0x38] sm:$0xf]
        %v4247 = vld [vmem:[%s1969 + $0x3c] sm:$0xf]
        %v4264 = vunpack.c.l.b16 %v4216
        %v4265 = vunpack.c.l.b16 %v4217
        %v4266 = vunpack.c.l.b16 %v4218
        %v4267 = vunpack.c.l.b16 %v4219
        %v4268 = vunpack.c.l.b16 %v4220
        %v4269 = vunpack.c.l.b16 %v4221
        %v4270 = vunpack.c.l.b16 %v4222
        %v4271 = vunpack.c.l.b16 %v4223
        %v4272 = vunpack.c.l.b16 %v4224
        %v4273 = vunpack.c.l.b16 %v4225
        %v4274 = vunpack.c.l.b16 %v4226
        %v4275 = vunpack.c.l.b16 %v4227
        %v4276 = vunpack.c.l.b16 %v4228
        %v4277 = vunpack.c.l.b16 %v4229
        %v4278 = vunpack.c.l.b16 %v4230
        %v4279 = vunpack.c.l.b16 %v4231
        %v4280 = vpack.c.b16 %v4265, %v4264
        %v4281 = vpack.c.b16 %v4267, %v4266
        %v4282 = vpack.c.b16 %v4269, %v4268
        %v4283 = vpack.c.b16 %v4271, %v4270
        %v4284 = vpack.c.b16 %v4273, %v4272
        %v4285 = vpack.c.b16 %v4275, %v4274
        %v4286 = vpack.c.b16 %v4277, %v4276
        %v4287 = vpack.c.b16 %v4279, %v4278
        %v4312 = vunpack.c.l.b16 %v4232
        %v4313 = vunpack.c.l.b16 %v4233
        %v4314 = vunpack.c.l.b16 %v4234
        %v4315 = vunpack.c.l.b16 %v4235
        %v4316 = vunpack.c.l.b16 %v4236
        %v4317 = vunpack.c.l.b16 %v4237
        %v4318 = vunpack.c.l.b16 %v4238
        %v4319 = vunpack.c.l.b16 %v4239
        %v4320 = vunpack.c.l.b16 %v4240
        %v4321 = vunpack.c.l.b16 %v4241
        %v4322 = vunpack.c.l.b16 %v4242
        %v4323 = vunpack.c.l.b16 %v4243
        %v4324 = vunpack.c.l.b16 %v4244
        %v4325 = vunpack.c.l.b16 %v4245
        %v4326 = vunpack.c.l.b16 %v4246
        %v4327 = vunpack.c.l.b16 %v4247
        %v4328 = vpack.c.b16 %v4313, %v4312
        %v4329 = vpack.c.b16 %v4315, %v4314
        %v4330 = vpack.c.b16 %v4317, %v4316
        %v4331 = vpack.c.b16 %v4319, %v4318
        %v4332 = vpack.c.b16 %v4321, %v4320
        %v4333 = vpack.c.b16 %v4323, %v4322
        %v4334 = vpack.c.b16 %v4325, %v4324
        %v4335 = vpack.c.b16 %v4327, %v4326
        %4344 = vmatprep.subr.bf16.mxu0 0
        %4345 = vmatpush1.bf16.msra.mxu0 %v4335
        %4346 = vmatprep.subr.bf16.mxu0 0
        %4347 = vmatpush1.bf16.msra.mxu0 %v4334
        %4348 = vmatprep.subr.bf16.mxu0 0
        %4349 = vmatpush1.bf16.msra.mxu0 %v4333
        %4350 = vmatprep.subr.bf16.mxu0 0
        %4351 = vmatpush1.bf16.msra.mxu0 %v4332
        %4352 = vmatprep.subr.bf16.mxu0 0
        %4353 = vmatpush1.bf16.msra.mxu0 %v4331
        %4354 = vmatprep.subr.bf16.mxu0 0
        %4355 = vmatpush1.bf16.msra.mxu0 %v4330
        %4356 = vmatprep.subr.bf16.mxu0 0
        %4357 = vmatpush1.bf16.msra.mxu0 %v4329
        %4358 = vmatprep.subr.bf16.mxu0 0
        %4359 = vmatpush1.bf16.msra.mxu0 %v4328
        %4360 = vmatprep.subr.bf16.mxu0 0
        %4361 = vmatpush2.bf16.msra.mxu0 0
        %4362 = vmatprep.subr.bf16.mxu0 0
        %4363 = vmatpush2.bf16.msra.mxu0 0
        %4364 = vmatprep.subr.bf16.mxu0 0
        %4365 = vmatpush2.bf16.msra.mxu0 0
        %4366 = vmatprep.subr.bf16.mxu0 0
        %4367 = vmatpush2.bf16.msra.mxu0 0
        %4368 = vmatprep.subr.bf16.mxu0 0
        %4369 = vmatpush2.bf16.msra.mxu0 0
        %4370 = vmatprep.subr.bf16.mxu0 0
        %4371 = vmatpush2.bf16.msra.mxu0 0
        %4372 = vmatprep.subr.bf16.mxu0 0
        %4373 = vmatpush2.bf16.msra.mxu0 0
        %4374 = vmatprep.subr.bf16.mxu0 0
        %4375 = vmatpush2.bf16.msra.mxu0 0
        %4376 = vmatprep.mubr.bf16.mxu0 0
        %4377 = vmatmul.mubr.bf16.gmra.mxu0 %v4280
        %v4378 = vpop.f32.mrf.mxu0
        %v4379 = vadd.f32 0.0, %v4378
        %v4380 = vpop.f32.mrf.mxu0
        %v4381 = vpop.f32.mrf.mxu0
        %v4382 = vadd.f32 0.0, %v4381
        %v4383 = vpop.f32.mrf.mxu0
        %4384 = vmatprep.mubr.bf16.mxu0 0
        %4385 = vmatmul.mubr.bf16.gmra.mxu0 %v4281
        %v4386 = vpop.f32.mrf.mxu0
        %v4387 = vadd.f32 0.0, %v4386
        %v4388 = vpop.f32.mrf.mxu0
        %v4389 = vpop.f32.mrf.mxu0
        %v4390 = vadd.f32 0.0, %v4389
        %v4391 = vpop.f32.mrf.mxu0
        %4392 = vmatprep.mubr.bf16.mxu0 0
        %4393 = vmatmul.mubr.bf16.gmra.mxu0 %v4282
        %v4394 = vpop.f32.mrf.mxu0
        %v4395 = vadd.f32 0.0, %v4394
        %v4396 = vpop.f32.mrf.mxu0
        %v4397 = vpop.f32.mrf.mxu0
        %v4398 = vadd.f32 0.0, %v4397
        %v4399 = vpop.f32.mrf.mxu0
        %4400 = vmatprep.mubr.bf16.mxu0 0
        %4401 = vmatmul.mubr.bf16.gmra.mxu0 %v4283
        %v4402 = vpop.f32.mrf.mxu0
        %v4403 = vadd.f32 0.0, %v4402
        %v4404 = vpop.f32.mrf.mxu0
        %v4405 = vpop.f32.mrf.mxu0
        %v4406 = vadd.f32 0.0, %v4405
        %v4407 = vpop.f32.mrf.mxu0
        %4408 = vmatprep.mubr.bf16.mxu0 0
        %4409 = vmatmul.mubr.bf16.gmra.mxu0 %v4284
        %v4410 = vpop.f32.mrf.mxu0
        %v4411 = vadd.f32 0.0, %v4410
        %v4412 = vpop.f32.mrf.mxu0
        %v4413 = vpop.f32.mrf.mxu0
        %v4414 = vadd.f32 0.0, %v4413
        %v4415 = vpop.f32.mrf.mxu0
        %4416 = vmatprep.mubr.bf16.mxu0 0
        %4417 = vmatmul.mubr.bf16.gmra.mxu0 %v4285
        %v4418 = vpop.f32.mrf.mxu0
        %v4419 = vadd.f32 0.0, %v4418
        %v4420 = vpop.f32.mrf.mxu0
        %v4421 = vpop.f32.mrf.mxu0
        %v4422 = vadd.f32 0.0, %v4421
        %v4423 = vpop.f32.mrf.mxu0
        %4424 = vmatprep.mubr.bf16.mxu0 0
        %4425 = vmatmul.mubr.bf16.gmra.mxu0 %v4286
        %v4426 = vpop.f32.mrf.mxu0
        %v4427 = vadd.f32 0.0, %v4426
        %v4428 = vpop.f32.mrf.mxu0
        %v4429 = vpop.f32.mrf.mxu0
        %v4430 = vadd.f32 0.0, %v4429
        %v4431 = vpop.f32.mrf.mxu0
        %4432 = vmatprep.mubr.bf16.mxu0 0
        %4433 = vmatmul.mubr.bf16.gmra.mxu0 %v4287
        %v4434 = vpop.f32.mrf.mxu0
        %v4435 = vadd.f32 0.0, %v4434
        %v4436 = vpop.f32.mrf.mxu0
        %v4437 = vpop.f32.mrf.mxu0
        %v4438 = vadd.f32 0.0, %v4437
        %v4439 = vpop.f32.mrf.mxu0
        %4440 = vdwg.mxu0
        %v4441 = vadd.f32 %v4198, %v4379
        %v4442 = vadd.f32 %v4199, %v4382
        %v4443 = vadd.f32 %v4200, %v4387
        %v4444 = vadd.f32 %v4201, %v4390
        %v4445 = vadd.f32 %v4202, %v4395
        %v4446 = vadd.f32 %v4203, %v4398
        %v4447 = vadd.f32 %v4204, %v4403
        %v4448 = vadd.f32 %v4205, %v4406
        %v4449 = vadd.f32 %v4206, %v4411
        %v4450 = vadd.f32 %v4207, %v4414
        %v4451 = vadd.f32 %v4208, %v4419
        %v4452 = vadd.f32 %v4209, %v4422
        %v4453 = vadd.f32 %v4210, %v4427
        %v4454 = vadd.f32 %v4211, %v4430
        %v4455 = vadd.f32 %v4212, %v4435
        %v4456 = vadd.f32 %v4213, %v4438
        %s4457 = smul.addr %s3970, 4
        %s4458 = scalar_lea.vmem [#allocation7], %s4457
        %v4459 = vld [vmem:[%s4458] sm:$0xf]
        %v4460 = vld [vmem:[%s4458 + $0x4] sm:$0xf]
        %v4461 = vld [vmem:[%s4458 + $0x8] sm:$0xf]
        %v4462 = vld [vmem:[%s4458 + $0xc] sm:$0xf]
        %v4463 = vld [vmem:[%s4458 + $0x10] sm:$0xf]
        %v4464 = vld [vmem:[%s4458 + $0x14] sm:$0xf]
        %v4465 = vld [vmem:[%s4458 + $0x18] sm:$0xf]
        %v4466 = vld [vmem:[%s4458 + $0x1c] sm:$0xf]
        %v4467 = vld [vmem:[%s4458 + $0x20] sm:$0xf]
        %v4468 = vld [vmem:[%s4458 + $0x24] sm:$0xf]
        %v4469 = vld [vmem:[%s4458 + $0x28] sm:$0xf]
        %v4470 = vld [vmem:[%s4458 + $0x2c] sm:$0xf]
        %v4471 = vld [vmem:[%s4458 + $0x30] sm:$0xf]
        %v4472 = vld [vmem:[%s4458 + $0x34] sm:$0xf]
        %v4473 = vld [vmem:[%s4458 + $0x38] sm:$0xf]
        %v4474 = vld [vmem:[%s4458 + $0x3c] sm:$0xf]
        %v4475 = vld [vmem:[%s2213] sm:$0xf]
        %v4476 = vld [vmem:[%s2213 + $0x4] sm:$0xf]
        %v4477 = vld [vmem:[%s2213 + $0x8] sm:$0xf]
        %v4478 = vld [vmem:[%s2213 + $0xc] sm:$0xf]
        %v4479 = vld [vmem:[%s2213 + $0x10] sm:$0xf]
        %v4480 = vld [vmem:[%s2213 + $0x14] sm:$0xf]
        %v4481 = vld [vmem:[%s2213 + $0x18] sm:$0xf]
        %v4482 = vld [vmem:[%s2213 + $0x1c] sm:$0xf]
        %v4483 = vld [vmem:[%s2213 + $0x20] sm:$0xf]
        %v4484 = vld [vmem:[%s2213 + $0x24] sm:$0xf]
        %v4485 = vld [vmem:[%s2213 + $0x28] sm:$0xf]
        %v4486 = vld [vmem:[%s2213 + $0x2c] sm:$0xf]
        %v4487 = vld [vmem:[%s2213 + $0x30] sm:$0xf]
        %v4488 = vld [vmem:[%s2213 + $0x34] sm:$0xf]
        %v4489 = vld [vmem:[%s2213 + $0x38] sm:$0xf]
        %v4490 = vld [vmem:[%s2213 + $0x3c] sm:$0xf]
        %v4507 = vunpack.c.l.b16 %v4459
        %v4508 = vunpack.c.l.b16 %v4460
        %v4509 = vunpack.c.l.b16 %v4461
        %v4510 = vunpack.c.l.b16 %v4462
        %v4511 = vunpack.c.l.b16 %v4463
        %v4512 = vunpack.c.l.b16 %v4464
        %v4513 = vunpack.c.l.b16 %v4465
        %v4514 = vunpack.c.l.b16 %v4466
        %v4515 = vunpack.c.l.b16 %v4467
        %v4516 = vunpack.c.l.b16 %v4468
        %v4517 = vunpack.c.l.b16 %v4469
        %v4518 = vunpack.c.l.b16 %v4470
        %v4519 = vunpack.c.l.b16 %v4471
        %v4520 = vunpack.c.l.b16 %v4472
        %v4521 = vunpack.c.l.b16 %v4473
        %v4522 = vunpack.c.l.b16 %v4474
        %v4523 = vpack.c.b16 %v4508, %v4507
        %v4524 = vpack.c.b16 %v4510, %v4509
        %v4525 = vpack.c.b16 %v4512, %v4511
        %v4526 = vpack.c.b16 %v4514, %v4513
        %v4527 = vpack.c.b16 %v4516, %v4515
        %v4528 = vpack.c.b16 %v4518, %v4517
        %v4529 = vpack.c.b16 %v4520, %v4519
        %v4530 = vpack.c.b16 %v4522, %v4521
        %v4555 = vunpack.c.l.b16 %v4475
        %v4556 = vunpack.c.l.b16 %v4476
        %v4557 = vunpack.c.l.b16 %v4477
        %v4558 = vunpack.c.l.b16 %v4478
        %v4559 = vunpack.c.l.b16 %v4479
        %v4560 = vunpack.c.l.b16 %v4480
        %v4561 = vunpack.c.l.b16 %v4481
        %v4562 = vunpack.c.l.b16 %v4482
        %v4563 = vunpack.c.l.b16 %v4483
        %v4564 = vunpack.c.l.b16 %v4484
        %v4565 = vunpack.c.l.b16 %v4485
        %v4566 = vunpack.c.l.b16 %v4486
        %v4567 = vunpack.c.l.b16 %v4487
        %v4568 = vunpack.c.l.b16 %v4488
        %v4569 = vunpack.c.l.b16 %v4489
        %v4570 = vunpack.c.l.b16 %v4490
        %v4571 = vpack.c.b16 %v4556, %v4555
        %v4572 = vpack.c.b16 %v4558, %v4557
        %v4573 = vpack.c.b16 %v4560, %v4559
        %v4574 = vpack.c.b16 %v4562, %v4561
        %v4575 = vpack.c.b16 %v4564, %v4563
        %v4576 = vpack.c.b16 %v4566, %v4565
        %v4577 = vpack.c.b16 %v4568, %v4567
        %v4578 = vpack.c.b16 %v4570, %v4569
        %4587 = vmatprep.subr.bf16.mxu0 0
        %4588 = vmatpush1.bf16.msra.mxu0 %v4578
        %4589 = vmatprep.subr.bf16.mxu0 0
        %4590 = vmatpush1.bf16.msra.mxu0 %v4577
        %4591 = vmatprep.subr.bf16.mxu0 0
        %4592 = vmatpush1.bf16.msra.mxu0 %v4576
        %4593 = vmatprep.subr.bf16.mxu0 0
        %4594 = vmatpush1.bf16.msra.mxu0 %v4575
        %4595 = vmatprep.subr.bf16.mxu0 0
        %4596 = vmatpush1.bf16.msra.mxu0 %v4574
        %4597 = vmatprep.subr.bf16.mxu0 0
        %4598 = vmatpush1.bf16.msra.mxu0 %v4573
        %4599 = vmatprep.subr.bf16.mxu0 0
        %4600 = vmatpush1.bf16.msra.mxu0 %v4572
        %4601 = vmatprep.subr.bf16.mxu0 0
        %4602 = vmatpush1.bf16.msra.mxu0 %v4571
        %4603 = vmatprep.subr.bf16.mxu0 0
        %4604 = vmatpush2.bf16.msra.mxu0 0
        %4605 = vmatprep.subr.bf16.mxu0 0
        %4606 = vmatpush2.bf16.msra.mxu0 0
        %4607 = vmatprep.subr.bf16.mxu0 0
        %4608 = vmatpush2.bf16.msra.mxu0 0
        %4609 = vmatprep.subr.bf16.mxu0 0
        %4610 = vmatpush2.bf16.msra.mxu0 0
        %4611 = vmatprep.subr.bf16.mxu0 0
        %4612 = vmatpush2.bf16.msra.mxu0 0
        %4613 = vmatprep.subr.bf16.mxu0 0
        %4614 = vmatpush2.bf16.msra.mxu0 0
        %4615 = vmatprep.subr.bf16.mxu0 0
        %4616 = vmatpush2.bf16.msra.mxu0 0
        %4617 = vmatprep.subr.bf16.mxu0 0
        %4618 = vmatpush2.bf16.msra.mxu0 0
        %4619 = vmatprep.mubr.bf16.mxu0 0
        %4620 = vmatmul.mubr.bf16.gmra.mxu0 %v4523
        %v4621 = vpop.f32.mrf.mxu0
        %v4622 = vadd.f32 0.0, %v4621
        %v4623 = vpop.f32.mrf.mxu0
        %v4624 = vpop.f32.mrf.mxu0
        %v4625 = vadd.f32 0.0, %v4624
        %v4626 = vpop.f32.mrf.mxu0
        %4627 = vmatprep.mubr.bf16.mxu0 0
        %4628 = vmatmul.mubr.bf16.gmra.mxu0 %v4524
        %v4629 = vpop.f32.mrf.mxu0
        %v4630 = vadd.f32 0.0, %v4629
        %v4631 = vpop.f32.mrf.mxu0
        %v4632 = vpop.f32.mrf.mxu0
        %v4633 = vadd.f32 0.0, %v4632
        %v4634 = vpop.f32.mrf.mxu0
        %4635 = vmatprep.mubr.bf16.mxu0 0
        %4636 = vmatmul.mubr.bf16.gmra.mxu0 %v4525
        %v4637 = vpop.f32.mrf.mxu0
        %v4638 = vadd.f32 0.0, %v4637
        %v4639 = vpop.f32.mrf.mxu0
        %v4640 = vpop.f32.mrf.mxu0
        %v4641 = vadd.f32 0.0, %v4640
        %v4642 = vpop.f32.mrf.mxu0
        %4643 = vmatprep.mubr.bf16.mxu0 0
        %4644 = vmatmul.mubr.bf16.gmra.mxu0 %v4526
        %v4645 = vpop.f32.mrf.mxu0
        %v4646 = vadd.f32 0.0, %v4645
        %v4647 = vpop.f32.mrf.mxu0
        %v4648 = vpop.f32.mrf.mxu0
        %v4649 = vadd.f32 0.0, %v4648
        %v4650 = vpop.f32.mrf.mxu0
        %4651 = vmatprep.mubr.bf16.mxu0 0
        %4652 = vmatmul.mubr.bf16.gmra.mxu0 %v4527
        %v4653 = vpop.f32.mrf.mxu0
        %v4654 = vadd.f32 0.0, %v4653
        %v4655 = vpop.f32.mrf.mxu0
        %v4656 = vpop.f32.mrf.mxu0
        %v4657 = vadd.f32 0.0, %v4656
        %v4658 = vpop.f32.mrf.mxu0
        %4659 = vmatprep.mubr.bf16.mxu0 0
        %4660 = vmatmul.mubr.bf16.gmra.mxu0 %v4528
        %v4661 = vpop.f32.mrf.mxu0
        %v4662 = vadd.f32 0.0, %v4661
        %v4663 = vpop.f32.mrf.mxu0
        %v4664 = vpop.f32.mrf.mxu0
        %v4665 = vadd.f32 0.0, %v4664
        %v4666 = vpop.f32.mrf.mxu0
        %4667 = vmatprep.mubr.bf16.mxu0 0
        %4668 = vmatmul.mubr.bf16.gmra.mxu0 %v4529
        %v4669 = vpop.f32.mrf.mxu0
        %v4670 = vadd.f32 0.0, %v4669
        %v4671 = vpop.f32.mrf.mxu0
        %v4672 = vpop.f32.mrf.mxu0
        %v4673 = vadd.f32 0.0, %v4672
        %v4674 = vpop.f32.mrf.mxu0
        %4675 = vmatprep.mubr.bf16.mxu0 0
        %4676 = vmatmul.mubr.bf16.gmra.mxu0 %v4530
        %v4677 = vpop.f32.mrf.mxu0
        %v4678 = vadd.f32 0.0, %v4677
        %v4679 = vpop.f32.mrf.mxu0
        %v4680 = vpop.f32.mrf.mxu0
        %v4681 = vadd.f32 0.0, %v4680
        %v4682 = vpop.f32.mrf.mxu0
        %4683 = vdwg.mxu0
        %v4684 = vadd.f32 %v4441, %v4622
        %v4685 = vadd.f32 %v4442, %v4625
        %v4686 = vadd.f32 %v4443, %v4630
        %v4687 = vadd.f32 %v4444, %v4633
        %v4688 = vadd.f32 %v4445, %v4638
        %v4689 = vadd.f32 %v4446, %v4641
        %v4690 = vadd.f32 %v4447, %v4646
        %v4691 = vadd.f32 %v4448, %v4649
        %v4692 = vadd.f32 %v4449, %v4654
        %v4693 = vadd.f32 %v4450, %v4657
        %v4694 = vadd.f32 %v4451, %v4662
        %v4695 = vadd.f32 %v4452, %v4665
        %v4696 = vadd.f32 %v4453, %v4670
        %v4697 = vadd.f32 %v4454, %v4673
        %v4698 = vadd.f32 %v4455, %v4678
        %v4699 = vadd.f32 %v4456, %v4681
        %v4700 = vld [vmem:[%s4] sm:$0x1]
        %v4702 = vlaneseq
        %v4703 = vshrl.u32 %v4702, 7
        %v4704 = vsub.s32 0, %v4703
        %v4705 = vrot.slane %v4700, %v4704
        %v4707 = vadd.f32 %v4684, %v4705
        %v4708 = vadd.f32 %v4685, %v4705
        %v4709 = vadd.f32 %v4686, %v4705
        %v4710 = vadd.f32 %v4687, %v4705
        %v4711 = vadd.f32 %v4688, %v4705
        %v4712 = vadd.f32 %v4689, %v4705
        %v4713 = vadd.f32 %v4690, %v4705
        %v4714 = vadd.f32 %v4691, %v4705
        %v4715 = vadd.f32 %v4692, %v4705
        %v4716 = vadd.f32 %v4693, %v4705
        %v4717 = vadd.f32 %v4694, %v4705
        %v4718 = vadd.f32 %v4695, %v4705
        %v4719 = vadd.f32 %v4696, %v4705
        %v4720 = vadd.f32 %v4697, %v4705
        %v4721 = vadd.f32 %v4698, %v4705
        %v4722 = vadd.f32 %v4699, %v4705
        %v4723 = vpack.c.bf16 %v4708, %v4707
        %v4724 = vpack.c.bf16 %v4710, %v4709
        %v4725 = vpack.c.bf16 %v4712, %v4711
        %v4726 = vpack.c.bf16 %v4714, %v4713
        %v4727 = vpack.c.bf16 %v4716, %v4715
        %v4728 = vpack.c.bf16 %v4718, %v4717
        %v4729 = vpack.c.bf16 %v4720, %v4719
        %v4730 = vpack.c.bf16 %v4722, %v4721
        %v4739 = vunpack.c.l.b16 %v4723
        %v4740 = vunpack.c.h.b16 %v4723
        %v4741 = vunpack.c.l.b16 %v4724
        %v4742 = vunpack.c.h.b16 %v4724
        %v4743 = vunpack.c.l.b16 %v4725
        %v4744 = vunpack.c.h.b16 %v4725
        %v4745 = vunpack.c.l.b16 %v4726
        %v4746 = vunpack.c.h.b16 %v4726
        %v4747 = vunpack.c.l.b16 %v4727
        %v4748 = vunpack.c.h.b16 %v4727
        %v4749 = vunpack.c.l.b16 %v4728
        %v4750 = vunpack.c.h.b16 %v4728
        %v4751 = vunpack.c.l.b16 %v4729
        %v4752 = vunpack.c.h.b16 %v4729
        %v4753 = vunpack.c.l.b16 %v4730
        %v4754 = vunpack.c.h.b16 %v4730
        %v4755 = vpack.c.b16 %v4739, %v4739
        %v4756 = vpack.c.b16 %v4740, %v4740
        %v4757 = vpack.c.b16 %v4741, %v4741
        %v4758 = vpack.c.b16 %v4742, %v4742
        %v4759 = vpack.c.b16 %v4743, %v4743
        %v4760 = vpack.c.b16 %v4744, %v4744
        %v4761 = vpack.c.b16 %v4745, %v4745
        %v4762 = vpack.c.b16 %v4746, %v4746
        %v4763 = vpack.c.b16 %v4747, %v4747
        %v4764 = vpack.c.b16 %v4748, %v4748
        %v4765 = vpack.c.b16 %v4749, %v4749
        %v4766 = vpack.c.b16 %v4750, %v4750
        %v4767 = vpack.c.b16 %v4751, %v4751
        %v4768 = vpack.c.b16 %v4752, %v4752
        %v4769 = vpack.c.b16 %v4753, %v4753
        %v4770 = vpack.c.b16 %v4754, %v4754
        %s4787 = scalar_lea.vmem %s261, 64 [#allocation10]
        %4788 = vst [vmem:[%s4787] sm:$0xf] %v4755
        %4789 = vst [vmem:[%s4787 + $0x4] sm:$0xf] %v4756
        %4790 = vst [vmem:[%s4787 + $0x8] sm:$0xf] %v4757
        %4791 = vst [vmem:[%s4787 + $0xc] sm:$0xf] %v4758
        %4792 = vst [vmem:[%s4787 + $0x10] sm:$0xf] %v4759
        %4793 = vst [vmem:[%s4787 + $0x14] sm:$0xf] %v4760
        %4794 = vst [vmem:[%s4787 + $0x18] sm:$0xf] %v4761
        %4795 = vst [vmem:[%s4787 + $0x1c] sm:$0xf] %v4762
        %4796 = vst [vmem:[%s4787 + $0x20] sm:$0xf] %v4763
        %4797 = vst [vmem:[%s4787 + $0x24] sm:$0xf] %v4764
        %4798 = vst [vmem:[%s4787 + $0x28] sm:$0xf] %v4765
        %4799 = vst [vmem:[%s4787 + $0x2c] sm:$0xf] %v4766
        %4800 = vst [vmem:[%s4787 + $0x30] sm:$0xf] %v4767
        %4801 = vst [vmem:[%s4787 + $0x34] sm:$0xf] %v4768
        %4802 = vst [vmem:[%s4787 + $0x38] sm:$0xf] %v4769
        %4803 = vst [vmem:[%s4787 + $0x3c] sm:$0xf] %v4770
        %s4804 = sand.u32 %s135, 1
        %s4805 = scalar_lea.sflag [#allocation4], %s4804
        %s4806 = sand.u32 %s135, 1
        %s4807 = smul.addr %s4806, 128
        %s4808 = scalar_lea.vmem [#allocation10], %s4807
        // Predicated region
        $region57: #{tpu_custom_call.1} parent=39 // pred_check
          %p4809 = pneg %p145
        $region58: #{tpu_custom_call.1} parent=39 // pred_check_branch
          %4811 = sbr.rel (%p4809) target = $region60
        $region59: #{tpu_custom_call.1} parent=39 // pred_region
          #allocation12 [shape = 'u32[6]{0}', space=smem, size = 0x18, scoped, tag = 'DMA stride descriptor']
          %s4812 = smul.u32 16, %s22
          %s4814 = ssub.s32 2048, 2048
          %4815 = vsyncadd %s4805, %s4814
          %s4816 = smul.addr %s4812, 64
          %s4817 = scalar_lea.hbm %s5, %s4816
          %s4819 = sshll.u32 1, 14
          %s4820 = sxor.u32 4294967295, %s4819
          %s4823 = sshll.u32 7, 18
          %s4824 = sxor.u32 4294967295, %s4823
          %s4825 = sand.u32 0, %s4824
          %s4827 = sor.u32 %s4825, 0
          %s4828 = sshll.u32 %s4808, 4
          %s4829 = int_to_ptr.vmem [resolvable:$true] %s4828
          %4835 = sst [smem:[#allocation12]] 1024
          %s4836 = scalar_lea.smem [#allocation12], 1
          %4837 = sst [smem:[%s4836]] 2048
          %s4838 = scalar_lea.smem [#allocation12], 2
          %4839 = sst [smem:[%s4838]] 16
          %s4840 = scalar_lea.smem [#allocation12], 3
          %4841 = sst [smem:[%s4840]] 64
          %s4842 = scalar_lea.smem [#allocation12], 4
          %4843 = sst [smem:[%s4842]] 64
          %s4844 = scalar_lea.smem [#allocation12], 5
          %4845 = sst [smem:[%s4844]] 4
          %4847 = dma.general %s4829, 2048, %s4817, %s4805, 131072, [#allocation12], %s4827, 0
        $region60: #{tpu_custom_call.1} parent=39 // pred_fallthru
          _
      $region40: #{tpu_custom_call.1} parent=5 // pred_fallthru
        _
      %p4848 = scmp.le.s32.totalorder 2, %s17
      // Predicated region
      $region61: #{tpu_custom_call.1} parent=5 // pred_check
        %p4849 = pneg %p4848
      $region62: #{tpu_custom_call.1} parent=5 // pred_check_branch
        %4851 = sbr.rel (%p4849) target = $region64
      $region63: #{tpu_custom_call.1} parent=5 // pred_region
        %s4852 = ssub.s32 %s17, 2
        // Predicated region
        $region65: #{tpu_custom_call.1} parent=63 // pred_check
          %p4853 = pneg %p151
        $region66: #{tpu_custom_call.1} parent=63 // pred_check_branch
          %4855 = sbr.rel (%p4853) target = $region68
        $region67: #{tpu_custom_call.1} parent=63 // pred_region
          %s4856 = sand.u32 %s136, 1
          %s4857 = scalar_lea.sflag [#allocation4], %s4856
          %s4858 = sand.u32 %s136, 1
          %s4859 = smul.addr %s4858, 128
          %s4860 = scalar_lea.vmem [#allocation10], %s4859
          %4861 = dma.done %s4857, 2048
        $region68: #{tpu_custom_call.1} parent=63 // pred_fallthru
          _
      $region64: #{tpu_custom_call.1} parent=5 // pred_fallthru
        _
    $region6: #{tpu_custom_call.1} parent=1 // loop_footer
      %s21 = sadd.s32 1, %s17
    $region7: #{tpu_custom_call.1} parent=1 // loop_footer_branch
      %16 = sbr.rel target = $region3
    $region8: #{tpu_custom_call.1} parent=1 // loop_exit
      _
    %4862 = vsyncpa [#allocation3], 1
    %s4863 = scalar_lea.sflag [#allocation3], 1
    %4864 = vsyncpa %s4863, 1
    %4865 = vsyncpa [#allocation6], 1
    %4866 = vsyncpa [#allocation9], 1
    %4867 = vsyncpa [#allocation4], 1
    %s4868 = scalar_lea.sflag [#allocation4], 1
    %4869 = vsyncpa %s4868, 1

</llo_original>
